<compile_context>
chip_gen: v7x
topology: tpu7x:2x2x1
jax: 0.10.0
libtpu: 0.0.40
codegen_flags: <defaults>
</compile_context>

<pallas_src>
import math

import jax
import jax.numpy as jnp
import numpy as np
from jax.experimental import pallas as pl
from jax.experimental.pallas import tpu as pltpu

# ---- sizes (small, consistent with the module) -------------------------------
B, S, H = 2, 8, 32          # batch, seq, hidden
NH = 4                      # num_attention_heads
D = H // NH                 # attention_head_size = 8
I = 64                      # intermediate_size
N_REL = 3                   # input_unlabel_graph -> embedding table of size 3
EPS = 1e-12                 # BERT layer_norm_eps
SCALE = 1.0 / math.sqrt(D)


def _layernorm(x, gamma, beta):
    mu = jnp.mean(x, axis=-1, keepdims=True)
    xc = x - mu
    var = jnp.mean(xc * xc, axis=-1, keepdims=True)
    return xc * jax.lax.rsqrt(var + EPS) * gamma + beta


def _gelu(x):
    # TODO(synk): tanh approximation of GELU; exact erf-based GELU pending Mosaic erf support.
    c = math.sqrt(2.0 / math.pi)
    return 0.5 * x * (1.0 + jnp.tanh(c * (x + 0.044715 * x * x * x)))


# ---- fused layer kernel (one batch element per grid step) ---------------------
def layer_kernel(x_ref, wqkv_ref, bqkv_ref, embkT_ref, embv_ref, arc_ref, mask_ref,
                 wo_ref, bo_ref, g1_ref, be1_ref,
                 wi_ref, bi_ref, w2_ref, b2_ref, g2_ref, be2_ref,
                 out_ref):
    x = x_ref[0]                                   # (S, H)
    mask = mask_ref[0]                             # (1, S) additive mask, bcast over rows
    arc = arc_ref[0]                               # (S, S) int32 relation ids

    # Fused QKV projection: one MXU push instead of three.
    qkv = jnp.dot(x, wqkv_ref[...], preferred_element_type=jnp.float32) + bqkv_ref[...]
    q = qkv[:, 0:H]
    k = qkv[:, H:2 * H]
    v = qkv[:, 2 * H:3 * H]

    emb_kT = embkT_ref[...]                        # (D, N_REL)
    emb_v = embv_ref[...]                          # (N_REL, D)

    # One-hot relation masks (S, S); the embedding gather never materializes (S,S,D).
    oh = [(arc == r).astype(jnp.float32) for r in range(N_REL)]

    # Self-attention; head merge is folded into the SelfOutput projection:
    #   a = sum_h ctx_h @ wo[h*D:(h+1)*D, :]  (no concatenate, no scratch).
    a = None
    for h in range(NH):                            # static unrolled head loop
        sl = slice(h * D, (h + 1) * D)
        qh, kh, vh = q[:, sl], k[:, sl], v[:, sl]  # (S, D)
        scores = jnp.dot(qh, kh.T, preferred_element_type=jnp.float32) * SCALE

        # Graph-relative key term:
        #   rel[i, j] = sum_d qh[i, d] * emb_k[arc[i, j], d] = (qh @ emb_k.T)[i, arc[i, j]]
        qe = jnp.dot(qh, emb_kT, preferred_element_type=jnp.float32)   # (S, N_REL)
        rel = qe[:, 0:1] * oh[0] + qe[:, 1:2] * oh[1] + qe[:, 2:3] * oh[2]

        scores = scores + rel + mask
        m = jnp.max(scores, axis=-1, keepdims=True)
        e = jnp.exp(scores - m)
        probs = e * pl.reciprocal(jnp.sum(e, axis=-1, keepdims=True), approx=True)

        ctx = jnp.dot(probs, vh, preferred_element_type=jnp.float32)   # (S, D)
        # Graph-relative value term:
        #   ctx[i,:] += sum_r (sum_j probs[i,j] * 1[arc[i,j]=r]) * emb_v[r,:]
        for r in range(N_REL):
            pr = jnp.sum(probs * oh[r], axis=-1, keepdims=True)        # (S, 1)
            ctx = ctx + pr * emb_v[r:r + 1, :]

        contrib = jnp.dot(ctx, wo_ref[sl, :], preferred_element_type=jnp.float32)
        a = contrib if a is None else a + contrib

    # BertSelfOutput: dense (accumulated above) + bias + residual + LayerNorm
    a = _layernorm(a + bo_ref[...] + x, g1_ref[...], be1_ref[...])
    # BertIntermediate
    inter = _gelu(jnp.dot(a, wi_ref[...], preferred_element_type=jnp.float32) + bi_ref[...])
    # BertOutput
    o = jnp.dot(inter, w2_ref[...], preferred_element_type=jnp.float32) + b2_ref[...]
    out_ref[0] = _layernorm(o + a, g2_ref[...], be2_ref[...])


# ---- wrapper ------------------------------------------------------------------
def _full(shape):
    return pl.BlockSpec(shape, lambda b: (0,) * len(shape))


def bert_graph_layer(hidden_states, attention_mask, graph_arc, p):
    # fold the three projection weights into one matrix (done once, outside the kernel)
    wqkv = jnp.concatenate([p["wq"], p["wk"], p["wv"]], axis=1)    # (H, 3H)
    bqkv = jnp.concatenate([p["bq"], p["bk"], p["bv"]], axis=1)    # (1, 3H)
    emb_kT = p["emb_k"].T                                          # (D, N_REL)

    return pl.pallas_call(
        layer_kernel,
        out_shape=jax.ShapeDtypeStruct((B, S, H), jnp.float32),
        grid=(B,),
        in_specs=[
            pl.BlockSpec((1, S, H), lambda b: (b, 0, 0)),          # hidden_states
            _full((H, 3 * H)), _full((1, 3 * H)),                  # wqkv, bqkv
            _full((D, N_REL)), _full((N_REL, D)),                  # emb_k.T, emb_v
            pl.BlockSpec((1, S, S), lambda b: (b, 0, 0)),          # graph_arc (int32)
            pl.BlockSpec((1, 1, S), lambda b: (b, 0, 0)),          # attention_mask
            _full((H, H)), _full((1, H)), _full((1, H)), _full((1, H)),   # wo,bo,g1,be1
            _full((H, I)), _full((1, I)),                                  # wi,bi
            _full((I, H)), _full((1, H)), _full((1, H)), _full((1, H)),   # w2,b2,g2,be2
        ],
        out_specs=pl.BlockSpec((1, S, H), lambda b: (b, 0, 0)),
        compiler_params=pltpu.CompilerParams(dimension_semantics=("parallel",)),
    )(hidden_states, wqkv, bqkv, emb_kT, p["emb_v"], graph_arc, attention_mask,
      p["wo"], p["bo"], p["g1"], p["be1"],
      p["wi"], p["bi"], p["w2"], p["b2"], p["g2"], p["be2"])


# ---- pure-JAX reference (same math, for a sanity check) -----------------------
def reference(hidden_states, attention_mask, graph_arc, p):
    x = hidden_states
    q = (x @ p["wq"] + p["bq"]).reshape(B, S, NH, D).transpose(0, 2, 1, 3)
    k = (x @ p["wk"] + p["bk"]).reshape(B, S, NH, D).transpose(0, 2, 1, 3)
    v = (x @ p["wv"] + p["bv"]).reshape(B, S, NH, D).transpose(0, 2, 1, 3)
    dpk = p["emb_k"][graph_arc]
    dpv = p["emb_v"][graph_arc]
    scores = jnp.einsum("bhid,bhjd->bhij", q, k) * SCALE
    scores = scores + jnp.einsum("bhid,bijd->bhij", q, dpk)
    scores = scores + attention_mask[:, :, None, :]      # (B,1,1,S) broadcast
    probs = jax.nn.softmax(scores, axis=-1)
    ctx = jnp.einsum("bhij,bhjd->bhid", probs, v)
    ctx = ctx + jnp.einsum("bhij,bijd->bhid", probs, dpv)
    ctx = ctx.transpose(0, 2, 1, 3).reshape(B, S, H)
    a = _layernorm(ctx @ p["wo"] + p["bo"] + x, p["g1"], p["be1"])
    inter = _gelu(a @ p["wi"] + p["bi"])
    return _layernorm(inter @ p["w2"] + p["b2"] + a, p["g2"], p["be2"])


# ---- deterministic parameter construction --------------------------------------
def make_params(key):
    ks = jax.random.split(key, 12)

    def lin(k, din, dout):
        return jax.random.normal(k, (din, dout), jnp.float32) * 0.02

    def bias(k, d):
        return jax.random.normal(k, (1, d), jnp.float32) * 0.02

    # xavier_uniform for relation embeddings, row 0 zeroed (reset_parameters)
    a = math.sqrt(6.0 / (N_REL + D))
    emb_k = jax.random.uniform(ks[8], (N_REL, D), jnp.float32, -a, a).at[0].set(0.0)
    emb_v = jax.random.uniform(ks[9], (N_REL, D), jnp.float32, -a, a).at[0].set(0.0)

    return dict(
        wq=lin(ks[0], H, H), bq=bias(ks[1], H),
        wk=lin(ks[2], H, H), bk=bias(ks[3], H),
        wv=lin(ks[4], H, H), bv=bias(ks[5], H),
        wo=lin(ks[6], H, H), bo=bias(ks[7], H),
        g1=jnp.ones((1, H), jnp.float32), be1=jnp.zeros((1, H), jnp.float32),
        wi=lin(ks[10], H, I), bi=jnp.zeros((1, I), jnp.float32),
        w2=lin(ks[11], I, H), b2=jnp.zeros((1, H), jnp.float32),
        g2=jnp.ones((1, H), jnp.float32), be2=jnp.zeros((1, H), jnp.float32),
        emb_k=emb_k, emb_v=emb_v,
    )


if __name__ == "__main__":
    key = jax.random.PRNGKey(0)
    k_x, k_arc, k_p = jax.random.split(key, 3)

    hidden_states = jax.random.normal(k_x, (B, S, H), jnp.float32)
    graph_arc = jax.random.randint(k_arc, (B, S, S), 0, N_REL)
    # additive attention mask, stored as (B, 1, S); last 2 keys of batch 1 masked out
    attention_mask = jnp.zeros((B, 1, S), jnp.float32).at[1, :, S - 2:].set(-10000.0)

    params = make_params(k_p)

    out = bert_graph_layer(hidden_states, attention_mask, graph_arc, params)
    out = jax.block_until_ready(out)

    ref = reference(hidden_states, attention_mask, graph_arc, params)
    np.testing.assert_allclose(np.asarray(out), np.asarray(ref), atol=1e-3, rtol=1e-3)

    print("KERNEL_OK")
</pallas_src>

<mosaic_0001>
module attributes {stable_mosaic.version = 11 : i64} {
  func.func @layer_kernel(%arg0: i32, %arg1: memref<1x8x32xf32, #tpu.memory_space<vmem>>, %arg2: memref<32x96xf32, #tpu.memory_space<vmem>>, %arg3: memref<1x96xf32, #tpu.memory_space<vmem>>, %arg4: memref<8x3xf32, #tpu.memory_space<vmem>>, %arg5: memref<3x8xf32, #tpu.memory_space<vmem>>, %arg6: memref<1x8x8xi32, #tpu.memory_space<vmem>>, %arg7: memref<1x1x8xf32, #tpu.memory_space<vmem>>, %arg8: memref<32x32xf32, #tpu.memory_space<vmem>>, %arg9: memref<1x32xf32, #tpu.memory_space<vmem>>, %arg10: memref<1x32xf32, #tpu.memory_space<vmem>>, %arg11: memref<1x32xf32, #tpu.memory_space<vmem>>, %arg12: memref<32x64xf32, #tpu.memory_space<vmem>>, %arg13: memref<1x64xf32, #tpu.memory_space<vmem>>, %arg14: memref<64x32xf32, #tpu.memory_space<vmem>>, %arg15: memref<1x32xf32, #tpu.memory_space<vmem>>, %arg16: memref<1x32xf32, #tpu.memory_space<vmem>>, %arg17: memref<1x32xf32, #tpu.memory_space<vmem>>, %arg18: memref<1x8x32xf32, #tpu.memory_space<vmem>>) attributes {dimension_semantics = [#tpu.dimension_semantics<parallel>], iteration_bounds = array<i64: 2>, scalar_prefetch = 0 : i64, scratch_operands = 0 : i64, tpu.core_type = #tpu.core_type<tc>, window_params = [{transform_indices = @transform_0, window_bounds = array<i64: 1, 8, 32>}, {pipeline_mode = #tpu.pipeline_mode<synchronous>, transform_indices = @transform_1, window_bounds = array<i64: 32, 96>}, {pipeline_mode = #tpu.pipeline_mode<synchronous>, transform_indices = @transform_2, window_bounds = array<i64: 1, 96>}, {pipeline_mode = #tpu.pipeline_mode<synchronous>, transform_indices = @transform_3, window_bounds = array<i64: 8, 3>}, {pipeline_mode = #tpu.pipeline_mode<synchronous>, transform_indices = @transform_4, window_bounds = array<i64: 3, 8>}, {transform_indices = @transform_5, window_bounds = array<i64: 1, 8, 8>}, {transform_indices = @transform_6, window_bounds = array<i64: 1, 1, 8>}, {pipeline_mode = #tpu.pipeline_mode<synchronous>, transform_indices = @transform_7, window_bounds = array<i64: 32, 32>}, {pipeline_mode = #tpu.pipeline_mode<synchronous>, transform_indices = @transform_8, window_bounds = array<i64: 1, 32>}, {pipeline_mode = #tpu.pipeline_mode<synchronous>, transform_indices = @transform_9, window_bounds = array<i64: 1, 32>}, {pipeline_mode = #tpu.pipeline_mode<synchronous>, transform_indices = @transform_10, window_bounds = array<i64: 1, 32>}, {pipeline_mode = #tpu.pipeline_mode<synchronous>, transform_indices = @transform_11, window_bounds = array<i64: 32, 64>}, {pipeline_mode = #tpu.pipeline_mode<synchronous>, transform_indices = @transform_12, window_bounds = array<i64: 1, 64>}, {pipeline_mode = #tpu.pipeline_mode<synchronous>, transform_indices = @transform_13, window_bounds = array<i64: 64, 32>}, {pipeline_mode = #tpu.pipeline_mode<synchronous>, transform_indices = @transform_14, window_bounds = array<i64: 1, 32>}, {pipeline_mode = #tpu.pipeline_mode<synchronous>, transform_indices = @transform_15, window_bounds = array<i64: 1, 32>}, {pipeline_mode = #tpu.pipeline_mode<synchronous>, transform_indices = @transform_16, window_bounds = array<i64: 1, 32>}, {transform_indices = @transform_17, window_bounds = array<i64: 1, 8, 32>}]} {
    %c0 = arith.constant 0 : index
    %c0_0 = arith.constant 0 : index
    %c0_1 = arith.constant 0 : index
    %0 = vector.load %arg1[%c0, %c0_0, %c0_1] : memref<1x8x32xf32, #tpu.memory_space<vmem>>, vector<1x8x32xf32>
    %1 = vector.shape_cast %0 : vector<1x8x32xf32> to vector<8x32xf32>
    %c0_2 = arith.constant 0 : index
    %c0_3 = arith.constant 0 : index
    %c0_4 = arith.constant 0 : index
    %2 = vector.load %arg7[%c0_2, %c0_3, %c0_4] : memref<1x1x8xf32, #tpu.memory_space<vmem>>, vector<1x1x8xf32>
    %3 = vector.shape_cast %2 : vector<1x1x8xf32> to vector<1x8xf32>
    %c0_5 = arith.constant 0 : index
    %c0_6 = arith.constant 0 : index
    %c0_7 = arith.constant 0 : index
    %4 = vector.load %arg6[%c0_5, %c0_6, %c0_7] : memref<1x8x8xi32, #tpu.memory_space<vmem>>, vector<1x8x8xi32>
    %5 = vector.shape_cast %4 : vector<1x8x8xi32> to vector<8x8xi32>
    %c0_8 = arith.constant 0 : index
    %c0_9 = arith.constant 0 : index
    %6 = vector.load %arg2[%c0_8, %c0_9] : memref<32x96xf32, #tpu.memory_space<vmem>>, vector<32x96xf32>
    %cst = arith.constant dense<0.000000e+00> : vector<8x96xf32>
    %7 = tpu.matmul %1, %6, %cst {dimension_numbers = #tpu.dot_dimension_numbers<[1], [0], [0], [1], [0, 0, 1, 1], [], []>} : vector<8x32xf32>, vector<32x96xf32>, vector<8x96xf32> -> vector<8x96xf32>
    %c0_10 = arith.constant 0 : index
    %c0_11 = arith.constant 0 : index
    %8 = vector.load %arg3[%c0_10, %c0_11] : memref<1x96xf32, #tpu.memory_space<vmem>>, vector<1x96xf32>
    %9 = vector.broadcast %8 : vector<1x96xf32> to vector<8x96xf32>
    %10 = arith.addf %7, %9 : vector<8x96xf32>
    %11 = vector.extract_strided_slice %10 {offsets = [0, 0], sizes = [8, 32], strides = [1, 1]} : vector<8x96xf32> to vector<8x32xf32>
    %12 = vector.extract_strided_slice %10 {offsets = [0, 32], sizes = [8, 32], strides = [1, 1]} : vector<8x96xf32> to vector<8x32xf32>
    %13 = vector.extract_strided_slice %10 {offsets = [0, 64], sizes = [8, 32], strides = [1, 1]} : vector<8x96xf32> to vector<8x32xf32>
    %c0_12 = arith.constant 0 : index
    %c0_13 = arith.constant 0 : index
    %14 = vector.load %arg4[%c0_12, %c0_13] : memref<8x3xf32, #tpu.memory_space<vmem>>, vector<8x3xf32>
    %c0_14 = arith.constant 0 : index
    %c0_15 = arith.constant 0 : index
    %15 = vector.load %arg5[%c0_14, %c0_15] : memref<3x8xf32, #tpu.memory_space<vmem>>, vector<3x8xf32>
    %c0_i32 = arith.constant 0 : i32
    %16 = vector.broadcast %c0_i32 : i32 to vector<8x8xi32>
    %17 = arith.cmpi eq, %5, %16 : vector<8x8xi32>
    %18 = arith.extui %17 : vector<8x8xi1> to vector<8x8xi32>
    %19 = arith.sitofp %18 : vector<8x8xi32> to vector<8x8xf32>
    %c1_i32 = arith.constant 1 : i32
    %20 = vector.broadcast %c1_i32 : i32 to vector<8x8xi32>
    %21 = arith.cmpi eq, %5, %20 : vector<8x8xi32>
    %22 = arith.extui %21 : vector<8x8xi1> to vector<8x8xi32>
    %23 = arith.sitofp %22 : vector<8x8xi32> to vector<8x8xf32>
    %c2_i32 = arith.constant 2 : i32
    %24 = vector.broadcast %c2_i32 : i32 to vector<8x8xi32>
    %25 = arith.cmpi eq, %5, %24 : vector<8x8xi32>
    %26 = arith.extui %25 : vector<8x8xi1> to vector<8x8xi32>
    %27 = arith.sitofp %26 : vector<8x8xi32> to vector<8x8xf32>
    %28 = vector.extract_strided_slice %11 {offsets = [0, 0], sizes = [8, 8], strides = [1, 1]} : vector<8x32xf32> to vector<8x8xf32>
    %29 = vector.extract_strided_slice %12 {offsets = [0, 0], sizes = [8, 8], strides = [1, 1]} : vector<8x32xf32> to vector<8x8xf32>
    %30 = vector.extract_strided_slice %13 {offsets = [0, 0], sizes = [8, 8], strides = [1, 1]} : vector<8x32xf32> to vector<8x8xf32>
    %31 = tpu.transpose %29, [1, 0] : vector<8x8xf32> -> vector<8x8xf32>
    %cst_16 = arith.constant dense<0.000000e+00> : vector<8x8xf32>
    %32 = tpu.matmul %28, %31, %cst_16 {dimension_numbers = #tpu.dot_dimension_numbers<[1], [0], [0], [1], [0, 0, 1, 1], [], []>} : vector<8x8xf32>, vector<8x8xf32>, vector<8x8xf32> -> vector<8x8xf32>
    %cst_17 = arith.constant 0.353553385 : f32
    %33 = vector.broadcast %cst_17 : f32 to vector<8x8xf32>
    %34 = arith.mulf %32, %33 : vector<8x8xf32>
    %cst_18 = arith.constant dense<0.000000e+00> : vector<8x3xf32>
    %35 = tpu.matmul %28, %14, %cst_18 {dimension_numbers = #tpu.dot_dimension_numbers<[1], [0], [0], [1], [0, 0, 1, 1], [], []>} : vector<8x8xf32>, vector<8x3xf32>, vector<8x3xf32> -> vector<8x3xf32>
    %36 = vector.extract_strided_slice %35 {offsets = [0, 0], sizes = [8, 1], strides = [1, 1]} : vector<8x3xf32> to vector<8x1xf32>
    %37 = vector.broadcast %36 : vector<8x1xf32> to vector<8x8xf32>
    %38 = arith.mulf %37, %19 : vector<8x8xf32>
    %39 = vector.extract_strided_slice %35 {offsets = [0, 1], sizes = [8, 1], strides = [1, 1]} : vector<8x3xf32> to vector<8x1xf32>
    %40 = vector.broadcast %39 : vector<8x1xf32> to vector<8x8xf32>
    %41 = arith.mulf %40, %23 : vector<8x8xf32>
    %42 = arith.addf %38, %41 : vector<8x8xf32>
    %43 = vector.extract_strided_slice %35 {offsets = [0, 2], sizes = [8, 1], strides = [1, 1]} : vector<8x3xf32> to vector<8x1xf32>
    %44 = vector.broadcast %43 : vector<8x1xf32> to vector<8x8xf32>
    %45 = arith.mulf %44, %27 : vector<8x8xf32>
    %46 = arith.addf %42, %45 : vector<8x8xf32>
    %47 = arith.addf %34, %46 : vector<8x8xf32>
    %48 = vector.broadcast %3 : vector<1x8xf32> to vector<8x8xf32>
    %49 = arith.addf %47, %48 : vector<8x8xf32>
    %cst_19 = arith.constant dense<0xFF800000> : vector<8xf32>
    %50 = vector.multi_reduction <maximumf>, %49, %cst_19 [1] : vector<8x8xf32> to vector<8xf32>
    %51 = vector.shape_cast %50 : vector<8xf32> to vector<8x1xf32>
    %52 = vector.broadcast %51 : vector<8x1xf32> to vector<8x8xf32>
    %53 = arith.subf %49, %52 : vector<8x8xf32>
    %54 = math.exp %53 : vector<8x8xf32>
    %cst_20 = arith.constant dense<0.000000e+00> : vector<8xf32>
    %55 = vector.multi_reduction <add>, %54, %cst_20 [1] : vector<8x8xf32> to vector<8xf32>
    %56 = vector.shape_cast %55 : vector<8xf32> to vector<8x1xf32>
    %57 = tpu.reciprocal %56 {approx = true} : vector<8x1xf32> -> vector<8x1xf32>
    %58 = vector.broadcast %57 : vector<8x1xf32> to vector<8x8xf32>
    %59 = arith.mulf %54, %58 : vector<8x8xf32>
    %cst_21 = arith.constant dense<0.000000e+00> : vector<8x8xf32>
    %60 = tpu.matmul %59, %30, %cst_21 {dimension_numbers = #tpu.dot_dimension_numbers<[1], [0], [0], [1], [0, 0, 1, 1], [], []>} : vector<8x8xf32>, vector<8x8xf32>, vector<8x8xf32> -> vector<8x8xf32>
    %61 = arith.mulf %59, %19 : vector<8x8xf32>
    %cst_22 = arith.constant dense<0.000000e+00> : vector<8xf32>
    %62 = vector.multi_reduction <add>, %61, %cst_22 [1] : vector<8x8xf32> to vector<8xf32>
    %63 = vector.shape_cast %62 : vector<8xf32> to vector<8x1xf32>
    %64 = vector.extract_strided_slice %15 {offsets = [0, 0], sizes = [1, 8], strides = [1, 1]} : vector<3x8xf32> to vector<1x8xf32>
    %65 = vector.broadcast %63 : vector<8x1xf32> to vector<8x8xf32>
    %66 = vector.broadcast %64 : vector<1x8xf32> to vector<8x8xf32>
    %67 = arith.mulf %65, %66 : vector<8x8xf32>
    %68 = arith.addf %60, %67 : vector<8x8xf32>
    %69 = arith.mulf %59, %23 : vector<8x8xf32>
    %cst_23 = arith.constant dense<0.000000e+00> : vector<8xf32>
    %70 = vector.multi_reduction <add>, %69, %cst_23 [1] : vector<8x8xf32> to vector<8xf32>
    %71 = vector.shape_cast %70 : vector<8xf32> to vector<8x1xf32>
    %72 = vector.extract_strided_slice %15 {offsets = [1, 0], sizes = [1, 8], strides = [1, 1]} : vector<3x8xf32> to vector<1x8xf32>
    %73 = vector.broadcast %71 : vector<8x1xf32> to vector<8x8xf32>
    %74 = vector.broadcast %72 : vector<1x8xf32> to vector<8x8xf32>
    %75 = arith.mulf %73, %74 : vector<8x8xf32>
    %76 = arith.addf %68, %75 : vector<8x8xf32>
    %77 = arith.mulf %59, %27 : vector<8x8xf32>
    %cst_24 = arith.constant dense<0.000000e+00> : vector<8xf32>
    %78 = vector.multi_reduction <add>, %77, %cst_24 [1] : vector<8x8xf32> to vector<8xf32>
    %79 = vector.shape_cast %78 : vector<8xf32> to vector<8x1xf32>
    %80 = vector.extract_strided_slice %15 {offsets = [2, 0], sizes = [1, 8], strides = [1, 1]} : vector<3x8xf32> to vector<1x8xf32>
    %81 = vector.broadcast %79 : vector<8x1xf32> to vector<8x8xf32>
    %82 = vector.broadcast %80 : vector<1x8xf32> to vector<8x8xf32>
    %83 = arith.mulf %81, %82 : vector<8x8xf32>
    %84 = arith.addf %76, %83 : vector<8x8xf32>
    %c0_25 = arith.constant 0 : index
    %c0_26 = arith.constant 0 : index
    %85 = vector.load %arg8[%c0_25, %c0_26] : memref<32x32xf32, #tpu.memory_space<vmem>>, vector<8x32xf32>
    %cst_27 = arith.constant dense<0.000000e+00> : vector<8x32xf32>
    %86 = tpu.matmul %84, %85, %cst_27 {dimension_numbers = #tpu.dot_dimension_numbers<[1], [0], [0], [1], [0, 0, 1, 1], [], []>} : vector<8x8xf32>, vector<8x32xf32>, vector<8x32xf32> -> vector<8x32xf32>
    %87 = vector.extract_strided_slice %11 {offsets = [0, 8], sizes = [8, 8], strides = [1, 1]} : vector<8x32xf32> to vector<8x8xf32>
    %88 = vector.extract_strided_slice %12 {offsets = [0, 8], sizes = [8, 8], strides = [1, 1]} : vector<8x32xf32> to vector<8x8xf32>
    %89 = vector.extract_strided_slice %13 {offsets = [0, 8], sizes = [8, 8], strides = [1, 1]} : vector<8x32xf32> to vector<8x8xf32>
    %90 = tpu.transpose %88, [1, 0] : vector<8x8xf32> -> vector<8x8xf32>
    %cst_28 = arith.constant dense<0.000000e+00> : vector<8x8xf32>
    %91 = tpu.matmul %87, %90, %cst_28 {dimension_numbers = #tpu.dot_dimension_numbers<[1], [0], [0], [1], [0, 0, 1, 1], [], []>} : vector<8x8xf32>, vector<8x8xf32>, vector<8x8xf32> -> vector<8x8xf32>
    %cst_29 = arith.constant 0.353553385 : f32
    %92 = vector.broadcast %cst_29 : f32 to vector<8x8xf32>
    %93 = arith.mulf %91, %92 : vector<8x8xf32>
    %cst_30 = arith.constant dense<0.000000e+00> : vector<8x3xf32>
    %94 = tpu.matmul %87, %14, %cst_30 {dimension_numbers = #tpu.dot_dimension_numbers<[1], [0], [0], [1], [0, 0, 1, 1], [], []>} : vector<8x8xf32>, vector<8x3xf32>, vector<8x3xf32> -> vector<8x3xf32>
    %95 = vector.extract_strided_slice %94 {offsets = [0, 0], sizes = [8, 1], strides = [1, 1]} : vector<8x3xf32> to vector<8x1xf32>
    %96 = vector.broadcast %95 : vector<8x1xf32> to vector<8x8xf32>
    %97 = arith.mulf %96, %19 : vector<8x8xf32>
    %98 = vector.extract_strided_slice %94 {offsets = [0, 1], sizes = [8, 1], strides = [1, 1]} : vector<8x3xf32> to vector<8x1xf32>
    %99 = vector.broadcast %98 : vector<8x1xf32> to vector<8x8xf32>
    %100 = arith.mulf %99, %23 : vector<8x8xf32>
    %101 = arith.addf %97, %100 : vector<8x8xf32>
    %102 = vector.extract_strided_slice %94 {offsets = [0, 2], sizes = [8, 1], strides = [1, 1]} : vector<8x3xf32> to vector<8x1xf32>
    %103 = vector.broadcast %102 : vector<8x1xf32> to vector<8x8xf32>
    %104 = arith.mulf %103, %27 : vector<8x8xf32>
    %105 = arith.addf %101, %104 : vector<8x8xf32>
    %106 = arith.addf %93, %105 : vector<8x8xf32>
    %107 = vector.broadcast %3 : vector<1x8xf32> to vector<8x8xf32>
    %108 = arith.addf %106, %107 : vector<8x8xf32>
    %cst_31 = arith.constant dense<0xFF800000> : vector<8xf32>
    %109 = vector.multi_reduction <maximumf>, %108, %cst_31 [1] : vector<8x8xf32> to vector<8xf32>
    %110 = vector.shape_cast %109 : vector<8xf32> to vector<8x1xf32>
    %111 = vector.broadcast %110 : vector<8x1xf32> to vector<8x8xf32>
    %112 = arith.subf %108, %111 : vector<8x8xf32>
    %113 = math.exp %112 : vector<8x8xf32>
    %cst_32 = arith.constant dense<0.000000e+00> : vector<8xf32>
    %114 = vector.multi_reduction <add>, %113, %cst_32 [1] : vector<8x8xf32> to vector<8xf32>
    %115 = vector.shape_cast %114 : vector<8xf32> to vector<8x1xf32>
    %116 = tpu.reciprocal %115 {approx = true} : vector<8x1xf32> -> vector<8x1xf32>
    %117 = vector.broadcast %116 : vector<8x1xf32> to vector<8x8xf32>
    %118 = arith.mulf %113, %117 : vector<8x8xf32>
    %cst_33 = arith.constant dense<0.000000e+00> : vector<8x8xf32>
    %119 = tpu.matmul %118, %89, %cst_33 {dimension_numbers = #tpu.dot_dimension_numbers<[1], [0], [0], [1], [0, 0, 1, 1], [], []>} : vector<8x8xf32>, vector<8x8xf32>, vector<8x8xf32> -> vector<8x8xf32>
    %120 = arith.mulf %118, %19 : vector<8x8xf32>
    %cst_34 = arith.constant dense<0.000000e+00> : vector<8xf32>
    %121 = vector.multi_reduction <add>, %120, %cst_34 [1] : vector<8x8xf32> to vector<8xf32>
    %122 = vector.shape_cast %121 : vector<8xf32> to vector<8x1xf32>
    %123 = vector.extract_strided_slice %15 {offsets = [0, 0], sizes = [1, 8], strides = [1, 1]} : vector<3x8xf32> to vector<1x8xf32>
    %124 = vector.broadcast %122 : vector<8x1xf32> to vector<8x8xf32>
    %125 = vector.broadcast %123 : vector<1x8xf32> to vector<8x8xf32>
    %126 = arith.mulf %124, %125 : vector<8x8xf32>
    %127 = arith.addf %119, %126 : vector<8x8xf32>
    %128 = arith.mulf %118, %23 : vector<8x8xf32>
    %cst_35 = arith.constant dense<0.000000e+00> : vector<8xf32>
    %129 = vector.multi_reduction <add>, %128, %cst_35 [1] : vector<8x8xf32> to vector<8xf32>
    %130 = vector.shape_cast %129 : vector<8xf32> to vector<8x1xf32>
    %131 = vector.extract_strided_slice %15 {offsets = [1, 0], sizes = [1, 8], strides = [1, 1]} : vector<3x8xf32> to vector<1x8xf32>
    %132 = vector.broadcast %130 : vector<8x1xf32> to vector<8x8xf32>
    %133 = vector.broadcast %131 : vector<1x8xf32> to vector<8x8xf32>
    %134 = arith.mulf %132, %133 : vector<8x8xf32>
    %135 = arith.addf %127, %134 : vector<8x8xf32>
    %136 = arith.mulf %118, %27 : vector<8x8xf32>
    %cst_36 = arith.constant dense<0.000000e+00> : vector<8xf32>
    %137 = vector.multi_reduction <add>, %136, %cst_36 [1] : vector<8x8xf32> to vector<8xf32>
    %138 = vector.shape_cast %137 : vector<8xf32> to vector<8x1xf32>
    %139 = vector.extract_strided_slice %15 {offsets = [2, 0], sizes = [1, 8], strides = [1, 1]} : vector<3x8xf32> to vector<1x8xf32>
    %140 = vector.broadcast %138 : vector<8x1xf32> to vector<8x8xf32>
    %141 = vector.broadcast %139 : vector<1x8xf32> to vector<8x8xf32>
    %142 = arith.mulf %140, %141 : vector<8x8xf32>
    %143 = arith.addf %135, %142 : vector<8x8xf32>
    %c8 = arith.constant 8 : index
    %c0_37 = arith.constant 0 : index
    %144 = vector.load %arg8[%c8, %c0_37] : memref<32x32xf32, #tpu.memory_space<vmem>>, vector<8x32xf32>
    %cst_38 = arith.constant dense<0.000000e+00> : vector<8x32xf32>
    %145 = tpu.matmul %143, %144, %cst_38 {dimension_numbers = #tpu.dot_dimension_numbers<[1], [0], [0], [1], [0, 0, 1, 1], [], []>} : vector<8x8xf32>, vector<8x32xf32>, vector<8x32xf32> -> vector<8x32xf32>
    %146 = arith.addf %86, %145 : vector<8x32xf32>
    %147 = vector.extract_strided_slice %11 {offsets = [0, 16], sizes = [8, 8], strides = [1, 1]} : vector<8x32xf32> to vector<8x8xf32>
    %148 = vector.extract_strided_slice %12 {offsets = [0, 16], sizes = [8, 8], strides = [1, 1]} : vector<8x32xf32> to vector<8x8xf32>
    %149 = vector.extract_strided_slice %13 {offsets = [0, 16], sizes = [8, 8], strides = [1, 1]} : vector<8x32xf32> to vector<8x8xf32>
    %150 = tpu.transpose %148, [1, 0] : vector<8x8xf32> -> vector<8x8xf32>
    %cst_39 = arith.constant dense<0.000000e+00> : vector<8x8xf32>
    %151 = tpu.matmul %147, %150, %cst_39 {dimension_numbers = #tpu.dot_dimension_numbers<[1], [0], [0], [1], [0, 0, 1, 1], [], []>} : vector<8x8xf32>, vector<8x8xf32>, vector<8x8xf32> -> vector<8x8xf32>
    %cst_40 = arith.constant 0.353553385 : f32
    %152 = vector.broadcast %cst_40 : f32 to vector<8x8xf32>
    %153 = arith.mulf %151, %152 : vector<8x8xf32>
    %cst_41 = arith.constant dense<0.000000e+00> : vector<8x3xf32>
    %154 = tpu.matmul %147, %14, %cst_41 {dimension_numbers = #tpu.dot_dimension_numbers<[1], [0], [0], [1], [0, 0, 1, 1], [], []>} : vector<8x8xf32>, vector<8x3xf32>, vector<8x3xf32> -> vector<8x3xf32>
    %155 = vector.extract_strided_slice %154 {offsets = [0, 0], sizes = [8, 1], strides = [1, 1]} : vector<8x3xf32> to vector<8x1xf32>
    %156 = vector.broadcast %155 : vector<8x1xf32> to vector<8x8xf32>
    %157 = arith.mulf %156, %19 : vector<8x8xf32>
    %158 = vector.extract_strided_slice %154 {offsets = [0, 1], sizes = [8, 1], strides = [1, 1]} : vector<8x3xf32> to vector<8x1xf32>
    %159 = vector.broadcast %158 : vector<8x1xf32> to vector<8x8xf32>
    %160 = arith.mulf %159, %23 : vector<8x8xf32>
    %161 = arith.addf %157, %160 : vector<8x8xf32>
    %162 = vector.extract_strided_slice %154 {offsets = [0, 2], sizes = [8, 1], strides = [1, 1]} : vector<8x3xf32> to vector<8x1xf32>
    %163 = vector.broadcast %162 : vector<8x1xf32> to vector<8x8xf32>
    %164 = arith.mulf %163, %27 : vector<8x8xf32>
    %165 = arith.addf %161, %164 : vector<8x8xf32>
    %166 = arith.addf %153, %165 : vector<8x8xf32>
    %167 = vector.broadcast %3 : vector<1x8xf32> to vector<8x8xf32>
    %168 = arith.addf %166, %167 : vector<8x8xf32>
    %cst_42 = arith.constant dense<0xFF800000> : vector<8xf32>
    %169 = vector.multi_reduction <maximumf>, %168, %cst_42 [1] : vector<8x8xf32> to vector<8xf32>
    %170 = vector.shape_cast %169 : vector<8xf32> to vector<8x1xf32>
    %171 = vector.broadcast %170 : vector<8x1xf32> to vector<8x8xf32>
    %172 = arith.subf %168, %171 : vector<8x8xf32>
    %173 = math.exp %172 : vector<8x8xf32>
    %cst_43 = arith.constant dense<0.000000e+00> : vector<8xf32>
    %174 = vector.multi_reduction <add>, %173, %cst_43 [1] : vector<8x8xf32> to vector<8xf32>
    %175 = vector.shape_cast %174 : vector<8xf32> to vector<8x1xf32>
    %176 = tpu.reciprocal %175 {approx = true} : vector<8x1xf32> -> vector<8x1xf32>
    %177 = vector.broadcast %176 : vector<8x1xf32> to vector<8x8xf32>
    %178 = arith.mulf %173, %177 : vector<8x8xf32>
    %cst_44 = arith.constant dense<0.000000e+00> : vector<8x8xf32>
    %179 = tpu.matmul %178, %149, %cst_44 {dimension_numbers = #tpu.dot_dimension_numbers<[1], [0], [0], [1], [0, 0, 1, 1], [], []>} : vector<8x8xf32>, vector<8x8xf32>, vector<8x8xf32> -> vector<8x8xf32>
    %180 = arith.mulf %178, %19 : vector<8x8xf32>
    %cst_45 = arith.constant dense<0.000000e+00> : vector<8xf32>
    %181 = vector.multi_reduction <add>, %180, %cst_45 [1] : vector<8x8xf32> to vector<8xf32>
    %182 = vector.shape_cast %181 : vector<8xf32> to vector<8x1xf32>
    %183 = vector.extract_strided_slice %15 {offsets = [0, 0], sizes = [1, 8], strides = [1, 1]} : vector<3x8xf32> to vector<1x8xf32>
    %184 = vector.broadcast %182 : vector<8x1xf32> to vector<8x8xf32>
    %185 = vector.broadcast %183 : vector<1x8xf32> to vector<8x8xf32>
    %186 = arith.mulf %184, %185 : vector<8x8xf32>
    %187 = arith.addf %179, %186 : vector<8x8xf32>
    %188 = arith.mulf %178, %23 : vector<8x8xf32>
    %cst_46 = arith.constant dense<0.000000e+00> : vector<8xf32>
    %189 = vector.multi_reduction <add>, %188, %cst_46 [1] : vector<8x8xf32> to vector<8xf32>
    %190 = vector.shape_cast %189 : vector<8xf32> to vector<8x1xf32>
    %191 = vector.extract_strided_slice %15 {offsets = [1, 0], sizes = [1, 8], strides = [1, 1]} : vector<3x8xf32> to vector<1x8xf32>
    %192 = vector.broadcast %190 : vector<8x1xf32> to vector<8x8xf32>
    %193 = vector.broadcast %191 : vector<1x8xf32> to vector<8x8xf32>
    %194 = arith.mulf %192, %193 : vector<8x8xf32>
    %195 = arith.addf %187, %194 : vector<8x8xf32>
    %196 = arith.mulf %178, %27 : vector<8x8xf32>
    %cst_47 = arith.constant dense<0.000000e+00> : vector<8xf32>
    %197 = vector.multi_reduction <add>, %196, %cst_47 [1] : vector<8x8xf32> to vector<8xf32>
    %198 = vector.shape_cast %197 : vector<8xf32> to vector<8x1xf32>
    %199 = vector.extract_strided_slice %15 {offsets = [2, 0], sizes = [1, 8], strides = [1, 1]} : vector<3x8xf32> to vector<1x8xf32>
    %200 = vector.broadcast %198 : vector<8x1xf32> to vector<8x8xf32>
    %201 = vector.broadcast %199 : vector<1x8xf32> to vector<8x8xf32>
    %202 = arith.mulf %200, %201 : vector<8x8xf32>
    %203 = arith.addf %195, %202 : vector<8x8xf32>
    %c16 = arith.constant 16 : index
    %c0_48 = arith.constant 0 : index
    %204 = vector.load %arg8[%c16, %c0_48] : memref<32x32xf32, #tpu.memory_space<vmem>>, vector<8x32xf32>
    %cst_49 = arith.constant dense<0.000000e+00> : vector<8x32xf32>
    %205 = tpu.matmul %203, %204, %cst_49 {dimension_numbers = #tpu.dot_dimension_numbers<[1], [0], [0], [1], [0, 0, 1, 1], [], []>} : vector<8x8xf32>, vector<8x32xf32>, vector<8x32xf32> -> vector<8x32xf32>
    %206 = arith.addf %146, %205 : vector<8x32xf32>
    %207 = vector.extract_strided_slice %11 {offsets = [0, 24], sizes = [8, 8], strides = [1, 1]} : vector<8x32xf32> to vector<8x8xf32>
    %208 = vector.extract_strided_slice %12 {offsets = [0, 24], sizes = [8, 8], strides = [1, 1]} : vector<8x32xf32> to vector<8x8xf32>
    %209 = vector.extract_strided_slice %13 {offsets = [0, 24], sizes = [8, 8], strides = [1, 1]} : vector<8x32xf32> to vector<8x8xf32>
    %210 = tpu.transpose %208, [1, 0] : vector<8x8xf32> -> vector<8x8xf32>
    %cst_50 = arith.constant dense<0.000000e+00> : vector<8x8xf32>
    %211 = tpu.matmul %207, %210, %cst_50 {dimension_numbers = #tpu.dot_dimension_numbers<[1], [0], [0], [1], [0, 0, 1, 1], [], []>} : vector<8x8xf32>, vector<8x8xf32>, vector<8x8xf32> -> vector<8x8xf32>
    %cst_51 = arith.constant 0.353553385 : f32
    %212 = vector.broadcast %cst_51 : f32 to vector<8x8xf32>
    %213 = arith.mulf %211, %212 : vector<8x8xf32>
    %cst_52 = arith.constant dense<0.000000e+00> : vector<8x3xf32>
    %214 = tpu.matmul %207, %14, %cst_52 {dimension_numbers = #tpu.dot_dimension_numbers<[1], [0], [0], [1], [0, 0, 1, 1], [], []>} : vector<8x8xf32>, vector<8x3xf32>, vector<8x3xf32> -> vector<8x3xf32>
    %215 = vector.extract_strided_slice %214 {offsets = [0, 0], sizes = [8, 1], strides = [1, 1]} : vector<8x3xf32> to vector<8x1xf32>
    %216 = vector.broadcast %215 : vector<8x1xf32> to vector<8x8xf32>
    %217 = arith.mulf %216, %19 : vector<8x8xf32>
    %218 = vector.extract_strided_slice %214 {offsets = [0, 1], sizes = [8, 1], strides = [1, 1]} : vector<8x3xf32> to vector<8x1xf32>
    %219 = vector.broadcast %218 : vector<8x1xf32> to vector<8x8xf32>
    %220 = arith.mulf %219, %23 : vector<8x8xf32>
    %221 = arith.addf %217, %220 : vector<8x8xf32>
    %222 = vector.extract_strided_slice %214 {offsets = [0, 2], sizes = [8, 1], strides = [1, 1]} : vector<8x3xf32> to vector<8x1xf32>
    %223 = vector.broadcast %222 : vector<8x1xf32> to vector<8x8xf32>
    %224 = arith.mulf %223, %27 : vector<8x8xf32>
    %225 = arith.addf %221, %224 : vector<8x8xf32>
    %226 = arith.addf %213, %225 : vector<8x8xf32>
    %227 = vector.broadcast %3 : vector<1x8xf32> to vector<8x8xf32>
    %228 = arith.addf %226, %227 : vector<8x8xf32>
    %cst_53 = arith.constant dense<0xFF800000> : vector<8xf32>
    %229 = vector.multi_reduction <maximumf>, %228, %cst_53 [1] : vector<8x8xf32> to vector<8xf32>
    %230 = vector.shape_cast %229 : vector<8xf32> to vector<8x1xf32>
    %231 = vector.broadcast %230 : vector<8x1xf32> to vector<8x8xf32>
    %232 = arith.subf %228, %231 : vector<8x8xf32>
    %233 = math.exp %232 : vector<8x8xf32>
    %cst_54 = arith.constant dense<0.000000e+00> : vector<8xf32>
    %234 = vector.multi_reduction <add>, %233, %cst_54 [1] : vector<8x8xf32> to vector<8xf32>
    %235 = vector.shape_cast %234 : vector<8xf32> to vector<8x1xf32>
    %236 = tpu.reciprocal %235 {approx = true} : vector<8x1xf32> -> vector<8x1xf32>
    %237 = vector.broadcast %236 : vector<8x1xf32> to vector<8x8xf32>
    %238 = arith.mulf %233, %237 : vector<8x8xf32>
    %cst_55 = arith.constant dense<0.000000e+00> : vector<8x8xf32>
    %239 = tpu.matmul %238, %209, %cst_55 {dimension_numbers = #tpu.dot_dimension_numbers<[1], [0], [0], [1], [0, 0, 1, 1], [], []>} : vector<8x8xf32>, vector<8x8xf32>, vector<8x8xf32> -> vector<8x8xf32>
    %240 = arith.mulf %238, %19 : vector<8x8xf32>
    %cst_56 = arith.constant dense<0.000000e+00> : vector<8xf32>
    %241 = vector.multi_reduction <add>, %240, %cst_56 [1] : vector<8x8xf32> to vector<8xf32>
    %242 = vector.shape_cast %241 : vector<8xf32> to vector<8x1xf32>
    %243 = vector.extract_strided_slice %15 {offsets = [0, 0], sizes = [1, 8], strides = [1, 1]} : vector<3x8xf32> to vector<1x8xf32>
    %244 = vector.broadcast %242 : vector<8x1xf32> to vector<8x8xf32>
    %245 = vector.broadcast %243 : vector<1x8xf32> to vector<8x8xf32>
    %246 = arith.mulf %244, %245 : vector<8x8xf32>
    %247 = arith.addf %239, %246 : vector<8x8xf32>
    %248 = arith.mulf %238, %23 : vector<8x8xf32>
    %cst_57 = arith.constant dense<0.000000e+00> : vector<8xf32>
    %249 = vector.multi_reduction <add>, %248, %cst_57 [1] : vector<8x8xf32> to vector<8xf32>
    %250 = vector.shape_cast %249 : vector<8xf32> to vector<8x1xf32>
    %251 = vector.extract_strided_slice %15 {offsets = [1, 0], sizes = [1, 8], strides = [1, 1]} : vector<3x8xf32> to vector<1x8xf32>
    %252 = vector.broadcast %250 : vector<8x1xf32> to vector<8x8xf32>
    %253 = vector.broadcast %251 : vector<1x8xf32> to vector<8x8xf32>
    %254 = arith.mulf %252, %253 : vector<8x8xf32>
    %255 = arith.addf %247, %254 : vector<8x8xf32>
    %256 = arith.mulf %238, %27 : vector<8x8xf32>
    %cst_58 = arith.constant dense<0.000000e+00> : vector<8xf32>
    %257 = vector.multi_reduction <add>, %256, %cst_58 [1] : vector<8x8xf32> to vector<8xf32>
    %258 = vector.shape_cast %257 : vector<8xf32> to vector<8x1xf32>
    %259 = vector.extract_strided_slice %15 {offsets = [2, 0], sizes = [1, 8], strides = [1, 1]} : vector<3x8xf32> to vector<1x8xf32>
    %260 = vector.broadcast %258 : vector<8x1xf32> to vector<8x8xf32>
    %261 = vector.broadcast %259 : vector<1x8xf32> to vector<8x8xf32>
    %262 = arith.mulf %260, %261 : vector<8x8xf32>
    %263 = arith.addf %255, %262 : vector<8x8xf32>
    %c24 = arith.constant 24 : index
    %c0_59 = arith.constant 0 : index
    %264 = vector.load %arg8[%c24, %c0_59] : memref<32x32xf32, #tpu.memory_space<vmem>>, vector<8x32xf32>
    %cst_60 = arith.constant dense<0.000000e+00> : vector<8x32xf32>
    %265 = tpu.matmul %263, %264, %cst_60 {dimension_numbers = #tpu.dot_dimension_numbers<[1], [0], [0], [1], [0, 0, 1, 1], [], []>} : vector<8x8xf32>, vector<8x32xf32>, vector<8x32xf32> -> vector<8x32xf32>
    %266 = arith.addf %206, %265 : vector<8x32xf32>
    %c0_61 = arith.constant 0 : index
    %c0_62 = arith.constant 0 : index
    %267 = vector.load %arg9[%c0_61, %c0_62] : memref<1x32xf32, #tpu.memory_space<vmem>>, vector<1x32xf32>
    %268 = vector.broadcast %267 : vector<1x32xf32> to vector<8x32xf32>
    %269 = arith.addf %266, %268 : vector<8x32xf32>
    %270 = arith.addf %269, %1 : vector<8x32xf32>
    %c0_63 = arith.constant 0 : index
    %c0_64 = arith.constant 0 : index
    %271 = vector.load %arg10[%c0_63, %c0_64] : memref<1x32xf32, #tpu.memory_space<vmem>>, vector<1x32xf32>
    %c0_65 = arith.constant 0 : index
    %c0_66 = arith.constant 0 : index
    %272 = vector.load %arg11[%c0_65, %c0_66] : memref<1x32xf32, #tpu.memory_space<vmem>>, vector<1x32xf32>
    %cst_67 = arith.constant dense<0.000000e+00> : vector<8xf32>
    %273 = vector.multi_reduction <add>, %270, %cst_67 [1] : vector<8x32xf32> to vector<8xf32>
    %274 = vector.shape_cast %273 : vector<8xf32> to vector<8x1xf32>
    %cst_68 = arith.constant 3.200000e+01 : f32
    %275 = vector.broadcast %cst_68 : f32 to vector<8x1xf32>
    %276 = arith.divf %274, %275 : vector<8x1xf32>
    %277 = vector.broadcast %276 : vector<8x1xf32> to vector<8x32xf32>
    %278 = arith.subf %270, %277 : vector<8x32xf32>
    %279 = arith.mulf %278, %278 : vector<8x32xf32>
    %cst_69 = arith.constant dense<0.000000e+00> : vector<8xf32>
    %280 = vector.multi_reduction <add>, %279, %cst_69 [1] : vector<8x32xf32> to vector<8xf32>
    %281 = vector.shape_cast %280 : vector<8xf32> to vector<8x1xf32>
    %cst_70 = arith.constant 3.200000e+01 : f32
    %282 = vector.broadcast %cst_70 : f32 to vector<8x1xf32>
    %283 = arith.divf %281, %282 : vector<8x1xf32>
    %cst_71 = arith.constant 9.99999996E-13 : f32
    %284 = vector.broadcast %cst_71 : f32 to vector<8x1xf32>
    %285 = arith.addf %283, %284 : vector<8x1xf32>
    %286 = math.rsqrt %285 : vector<8x1xf32>
    %287 = vector.broadcast %286 : vector<8x1xf32> to vector<8x32xf32>
    %288 = arith.mulf %278, %287 : vector<8x32xf32>
    %289 = vector.broadcast %271 : vector<1x32xf32> to vector<8x32xf32>
    %290 = arith.mulf %288, %289 : vector<8x32xf32>
    %291 = vector.broadcast %272 : vector<1x32xf32> to vector<8x32xf32>
    %292 = arith.addf %290, %291 : vector<8x32xf32>
    %c0_72 = arith.constant 0 : index
    %c0_73 = arith.constant 0 : index
    %293 = vector.load %arg12[%c0_72, %c0_73] : memref<32x64xf32, #tpu.memory_space<vmem>>, vector<32x64xf32>
    %cst_74 = arith.constant dense<0.000000e+00> : vector<8x64xf32>
    %294 = tpu.matmul %292, %293, %cst_74 {dimension_numbers = #tpu.dot_dimension_numbers<[1], [0], [0], [1], [0, 0, 1, 1], [], []>} : vector<8x32xf32>, vector<32x64xf32>, vector<8x64xf32> -> vector<8x64xf32>
    %c0_75 = arith.constant 0 : index
    %c0_76 = arith.constant 0 : index
    %295 = vector.load %arg13[%c0_75, %c0_76] : memref<1x64xf32, #tpu.memory_space<vmem>>, vector<1x64xf32>
    %296 = vector.broadcast %295 : vector<1x64xf32> to vector<8x64xf32>
    %297 = arith.addf %294, %296 : vector<8x64xf32>
    %cst_77 = arith.constant 5.000000e-01 : f32
    %298 = vector.broadcast %cst_77 : f32 to vector<8x64xf32>
    %299 = arith.mulf %298, %297 : vector<8x64xf32>
    %cst_78 = arith.constant 4.471500e-02 : f32
    %300 = vector.broadcast %cst_78 : f32 to vector<8x64xf32>
    %301 = arith.mulf %300, %297 : vector<8x64xf32>
    %302 = arith.mulf %301, %297 : vector<8x64xf32>
    %303 = arith.mulf %302, %297 : vector<8x64xf32>
    %304 = arith.addf %297, %303 : vector<8x64xf32>
    %cst_79 = arith.constant 0.797884583 : f32
    %305 = vector.broadcast %cst_79 : f32 to vector<8x64xf32>
    %306 = arith.mulf %305, %304 : vector<8x64xf32>
    %307 = math.tanh %306 : vector<8x64xf32>
    %cst_80 = arith.constant 1.000000e+00 : f32
    %308 = vector.broadcast %cst_80 : f32 to vector<8x64xf32>
    %309 = arith.addf %308, %307 : vector<8x64xf32>
    %310 = arith.mulf %299, %309 : vector<8x64xf32>
    %c0_81 = arith.constant 0 : index
    %c0_82 = arith.constant 0 : index
    %311 = vector.load %arg14[%c0_81, %c0_82] : memref<64x32xf32, #tpu.memory_space<vmem>>, vector<64x32xf32>
    %cst_83 = arith.constant dense<0.000000e+00> : vector<8x32xf32>
    %312 = tpu.matmul %310, %311, %cst_83 {dimension_numbers = #tpu.dot_dimension_numbers<[1], [0], [0], [1], [0, 0, 1, 1], [], []>} : vector<8x64xf32>, vector<64x32xf32>, vector<8x32xf32> -> vector<8x32xf32>
    %c0_84 = arith.constant 0 : index
    %c0_85 = arith.constant 0 : index
    %313 = vector.load %arg15[%c0_84, %c0_85] : memref<1x32xf32, #tpu.memory_space<vmem>>, vector<1x32xf32>
    %314 = vector.broadcast %313 : vector<1x32xf32> to vector<8x32xf32>
    %315 = arith.addf %312, %314 : vector<8x32xf32>
    %316 = arith.addf %315, %292 : vector<8x32xf32>
    %c0_86 = arith.constant 0 : index
    %c0_87 = arith.constant 0 : index
    %317 = vector.load %arg16[%c0_86, %c0_87] : memref<1x32xf32, #tpu.memory_space<vmem>>, vector<1x32xf32>
    %c0_88 = arith.constant 0 : index
    %c0_89 = arith.constant 0 : index
    %318 = vector.load %arg17[%c0_88, %c0_89] : memref<1x32xf32, #tpu.memory_space<vmem>>, vector<1x32xf32>
    %cst_90 = arith.constant dense<0.000000e+00> : vector<8xf32>
    %319 = vector.multi_reduction <add>, %316, %cst_90 [1] : vector<8x32xf32> to vector<8xf32>
    %320 = vector.shape_cast %319 : vector<8xf32> to vector<8x1xf32>
    %cst_91 = arith.constant 3.200000e+01 : f32
    %321 = vector.broadcast %cst_91 : f32 to vector<8x1xf32>
    %322 = arith.divf %320, %321 : vector<8x1xf32>
    %323 = vector.broadcast %322 : vector<8x1xf32> to vector<8x32xf32>
    %324 = arith.subf %316, %323 : vector<8x32xf32>
    %325 = arith.mulf %324, %324 : vector<8x32xf32>
    %cst_92 = arith.constant dense<0.000000e+00> : vector<8xf32>
    %326 = vector.multi_reduction <add>, %325, %cst_92 [1] : vector<8x32xf32> to vector<8xf32>
    %327 = vector.shape_cast %326 : vector<8xf32> to vector<8x1xf32>
    %cst_93 = arith.constant 3.200000e+01 : f32
    %328 = vector.broadcast %cst_93 : f32 to vector<8x1xf32>
    %329 = arith.divf %327, %328 : vector<8x1xf32>
    %cst_94 = arith.constant 9.99999996E-13 : f32
    %330 = vector.broadcast %cst_94 : f32 to vector<8x1xf32>
    %331 = arith.addf %329, %330 : vector<8x1xf32>
    %332 = math.rsqrt %331 : vector<8x1xf32>
    %333 = vector.broadcast %332 : vector<8x1xf32> to vector<8x32xf32>
    %334 = arith.mulf %324, %333 : vector<8x32xf32>
    %335 = vector.broadcast %317 : vector<1x32xf32> to vector<8x32xf32>
    %336 = arith.mulf %334, %335 : vector<8x32xf32>
    %337 = vector.broadcast %318 : vector<1x32xf32> to vector<8x32xf32>
    %338 = arith.addf %336, %337 : vector<8x32xf32>
    %c0_95 = arith.constant 0 : index
    %c0_96 = arith.constant 0 : index
    %c0_97 = arith.constant 0 : index
    %339 = vector.load %arg18[%c0_95, %c0_96, %c0_97] : memref<1x8x32xf32, #tpu.memory_space<vmem>>, vector<1x8x32xf32>
    %340 = vector.shape_cast %339 : vector<1x8x32xf32> to vector<8x32xf32>
    %341 = vector.shape_cast %338 : vector<8x32xf32> to vector<1x8x32xf32>
    tpu.vector_store %arg18[%c0_95, %c0_96, %c0_97], %341 {strides = array<i32>} : memref<1x8x32xf32, #tpu.memory_space<vmem>>, vector<1x8x32xf32>,
    return
  }
  func.func @transform_0(%arg0: i32) -> (i32, i32, i32) {
    %c0_i32 = arith.constant 0 : i32
    %c0_i32_0 = arith.constant 0 : i32
    %c0_i32_1 = arith.constant 0 : i32
    return %arg0, %c0_i32, %c0_i32_0 : i32, i32, i32
  }
  func.func @transform_1(%arg0: i32) -> (i32, i32) {
    %c0_i32 = arith.constant 0 : i32
    %c0_i32_0 = arith.constant 0 : i32
    %c0_i32_1 = arith.constant 0 : i32
    return %c0_i32, %c0_i32_0 : i32, i32
  }
  func.func @transform_2(%arg0: i32) -> (i32, i32) {
    %c0_i32 = arith.constant 0 : i32
    %c0_i32_0 = arith.constant 0 : i32
    %c0_i32_1 = arith.constant 0 : i32
    return %c0_i32, %c0_i32_0 : i32, i32
  }
  func.func @transform_3(%arg0: i32) -> (i32, i32) {
    %c0_i32 = arith.constant 0 : i32
    %c0_i32_0 = arith.constant 0 : i32
    %c0_i32_1 = arith.constant 0 : i32
    return %c0_i32, %c0_i32_0 : i32, i32
  }
  func.func @transform_4(%arg0: i32) -> (i32, i32) {
    %c0_i32 = arith.constant 0 : i32
    %c0_i32_0 = arith.constant 0 : i32
    %c0_i32_1 = arith.constant 0 : i32
    return %c0_i32, %c0_i32_0 : i32, i32
  }
  func.func @transform_5(%arg0: i32) -> (i32, i32, i32) {
    %c0_i32 = arith.constant 0 : i32
    %c0_i32_0 = arith.constant 0 : i32
    %c0_i32_1 = arith.constant 0 : i32
    return %arg0, %c0_i32, %c0_i32_0 : i32, i32, i32
  }
  func.func @transform_6(%arg0: i32) -> (i32, i32, i32) {
    %c0_i32 = arith.constant 0 : i32
    %c0_i32_0 = arith.constant 0 : i32
    %c0_i32_1 = arith.constant 0 : i32
    return %arg0, %c0_i32, %c0_i32_0 : i32, i32, i32
  }
  func.func @transform_7(%arg0: i32) -> (i32, i32) {
    %c0_i32 = arith.constant 0 : i32
    %c0_i32_0 = arith.constant 0 : i32
    %c0_i32_1 = arith.constant 0 : i32
    return %c0_i32, %c0_i32_0 : i32, i32
  }
  func.func @transform_8(%arg0: i32) -> (i32, i32) {
    %c0_i32 = arith.constant 0 : i32
    %c0_i32_0 = arith.constant 0 : i32
    %c0_i32_1 = arith.constant 0 : i32
    return %c0_i32, %c0_i32_0 : i32, i32
  }
  func.func @transform_9(%arg0: i32) -> (i32, i32) {
    %c0_i32 = arith.constant 0 : i32
    %c0_i32_0 = arith.constant 0 : i32
    %c0_i32_1 = arith.constant 0 : i32
    return %c0_i32, %c0_i32_0 : i32, i32
  }
  func.func @transform_10(%arg0: i32) -> (i32, i32) {
    %c0_i32 = arith.constant 0 : i32
    %c0_i32_0 = arith.constant 0 : i32
    %c0_i32_1 = arith.constant 0 : i32
    return %c0_i32, %c0_i32_0 : i32, i32
  }
  func.func @transform_11(%arg0: i32) -> (i32, i32) {
    %c0_i32 = arith.constant 0 : i32
    %c0_i32_0 = arith.constant 0 : i32
    %c0_i32_1 = arith.constant 0 : i32
    return %c0_i32, %c0_i32_0 : i32, i32
  }
  func.func @transform_12(%arg0: i32) -> (i32, i32) {
    %c0_i32 = arith.constant 0 : i32
    %c0_i32_0 = arith.constant 0 : i32
    %c0_i32_1 = arith.constant 0 : i32
    return %c0_i32, %c0_i32_0 : i32, i32
  }
  func.func @transform_13(%arg0: i32) -> (i32, i32) {
    %c0_i32 = arith.constant 0 : i32
    %c0_i32_0 = arith.constant 0 : i32
    %c0_i32_1 = arith.constant 0 : i32
    return %c0_i32, %c0_i32_0 : i32, i32
  }
  func.func @transform_14(%arg0: i32) -> (i32, i32) {
    %c0_i32 = arith.constant 0 : i32
    %c0_i32_0 = arith.constant 0 : i32
    %c0_i32_1 = arith.constant 0 : i32
    return %c0_i32, %c0_i32_0 : i32, i32
  }
  func.func @transform_15(%arg0: i32) -> (i32, i32) {
    %c0_i32 = arith.constant 0 : i32
    %c0_i32_0 = arith.constant 0 : i32
    %c0_i32_1 = arith.constant 0 : i32
    return %c0_i32, %c0_i32_0 : i32, i32
  }
  func.func @transform_16(%arg0: i32) -> (i32, i32) {
    %c0_i32 = arith.constant 0 : i32
    %c0_i32_0 = arith.constant 0 : i32
    %c0_i32_1 = arith.constant 0 : i32
    return %c0_i32, %c0_i32_0 : i32, i32
  }
  func.func @transform_17(%arg0: i32) -> (i32, i32, i32) {
    %c0_i32 = arith.constant 0 : i32
    %c0_i32_0 = arith.constant 0 : i32
    %c0_i32_1 = arith.constant 0 : i32
    return %arg0, %c0_i32, %c0_i32_0 : i32, i32, i32
  }
}

</mosaic_0001>

<llo_original>
// kernel: tpu_custom_call.1
$region0: #{tpu_custom_call.1}
  #allocation0 [shape = 'u32[]', space=smem, size = 0x4, offset = 0x4, fixed_abs, tag = 'smem constant byte address 0x4 - core index']
  #allocation1 [shape = 'u32[144,128]{1,0:T(1,128)}', space=vmem, size = 0x12000, scoped, tag = 'internal scratch']
  %s0 = inlined_call_operand.hbm [shape: f32[2,8,32], index: 0, kind: input, shape index: {}]
  %s1 = inlined_call_operand.vmem [shape: f32[32,96], index: 1, kind: input, shape index: {}]
  %s2 = inlined_call_operand.vmem [shape: f32[1,96], index: 2, kind: input, shape index: {}]
  %s3 = inlined_call_operand.vmem [shape: f32[8,3], index: 3, kind: input, shape index: {}]
  %s4 = inlined_call_operand.vmem [shape: f32[3,8], index: 4, kind: input, shape index: {}]
  %s5 = inlined_call_operand.vmem [shape: s32[2,8,8], index: 5, kind: input, shape index: {}]
  %s6 = inlined_call_operand.vmem [shape: f32[2,1,8], index: 6, kind: input, shape index: {}]
  %s7 = inlined_call_operand.vmem [shape: f32[32,32], index: 7, kind: input, shape index: {}]
  %s8 = inlined_call_operand.vmem [shape: f32[1,32], index: 8, kind: input, shape index: {}]
  %s9 = inlined_call_operand.vmem [shape: f32[1,32], index: 9, kind: input, shape index: {}]
  %s10 = inlined_call_operand.vmem [shape: f32[1,32], index: 10, kind: input, shape index: {}]
  %s11 = inlined_call_operand.vmem [shape: f32[32,64], index: 11, kind: input, shape index: {}]
  %s12 = inlined_call_operand.vmem [shape: f32[1,64], index: 12, kind: input, shape index: {}]
  %s13 = inlined_call_operand.vmem [shape: f32[64,32], index: 13, kind: input, shape index: {}]
  %s14 = inlined_call_operand.vmem [shape: f32[1,32], index: 14, kind: input, shape index: {}]
  %s15 = inlined_call_operand.vmem [shape: f32[1,32], index: 15, kind: input, shape index: {}]
  %s16 = inlined_call_operand.vmem [shape: f32[1,32], index: 16, kind: input, shape index: {}]
  %s17 = inlined_call_operand.hbm [shape: f32[2,8,32], index: 17, kind: output, shape index: {}]
  %s18 = sld [smem:[#allocation0]]
  $region105: #{tpu_custom_call.1} parent=0
    _
  %s20 = ssub.s32 1, %s18
  %s21 = scalar_select 0, %s20, %s18
  $region1: #{tpu_custom_call.1} parent=0
    #allocation2 [shape = 'u8[8192]{0}', space=vmem, size = 0x2000, scoped, tag = 'input window, operand 0']
    #allocation3 [shape = 's32[2]{0}', space=sflag, size = 0x8, scoped, tag = 'scoped memory for tpu_custom_call.1']
    #allocation4 [shape = 's32[2]{0}', space=sflag, size = 0x8, scoped, tag = 'scoped memory for tpu_custom_call.1']
    #allocation5 [shape = 'u8[8192]{0}', space=vmem, size = 0x2000, scoped, tag = 'output window, operand 0']
    %22 = vsyncpa [#allocation3], 0
    %s23 = scalar_lea.sflag [#allocation3], 1
    %24 = vsyncpa %s23, 0
    %25 = vsyncpa [#allocation4], 0
    %s26 = scalar_lea.sflag [#allocation4], 1
    %27 = vsyncpa %s26, 0
    loop: start=0, step=1, limit=4
    $region2: #{tpu_custom_call.1} parent=1 // loop_pre_header
      _
    $region3: #{tpu_custom_call.1} parent=1 // loop_header
      %s29 = sphi 0, %s33
      %p30 = scmp.ge.s32.totalorder %s29, 4
      %s39 = sphi 0, %s41
      %s42 = sphi 0, %s39
      %s43 = sphi 0, %s42
      %s59 = sphi 0, %s43
      %s63 = sphi 0, %s63
      %s65 = sphi 0, %s63
      %s66 = sphi 0, %s65
      %s80 = sphi 0, %s66
      %s84 = sphi 0, %s84
      %s86 = sphi 0, %s84
      %s87 = sphi 0, %s86
      %s101 = sphi 0, %s87
      %s105 = sphi 0, %s105
      %s107 = sphi 0, %s105
      %s108 = sphi 0, %s107
      %s122 = sphi 0, %s108
      %s126 = sphi 0, %s126
      %s128 = sphi 0, %s126
      %s129 = sphi 0, %s128
      %s143 = sphi 0, %s129
      %s149 = sphi 0, %s151
      %s152 = sphi 0, %s149
      %s153 = sphi 0, %s152
      %s169 = sphi 0, %s153
      %s175 = sphi 0, %s177
      %s178 = sphi 0, %s175
      %s179 = sphi 0, %s178
      %s195 = sphi 0, %s179
      %s199 = sphi 0, %s199
      %s201 = sphi 0, %s199
      %s202 = sphi 0, %s201
      %s216 = sphi 0, %s202
      %s220 = sphi 0, %s220
      %s222 = sphi 0, %s220
      %s223 = sphi 0, %s222
      %s237 = sphi 0, %s223
      %s241 = sphi 0, %s241
      %s243 = sphi 0, %s241
      %s244 = sphi 0, %s243
      %s258 = sphi 0, %s244
      %s262 = sphi 0, %s262
      %s264 = sphi 0, %s262
      %s265 = sphi 0, %s264
      %s279 = sphi 0, %s265
      %s283 = sphi 0, %s283
      %s285 = sphi 0, %s283
      %s286 = sphi 0, %s285
      %s300 = sphi 0, %s286
      %s304 = sphi 0, %s304
      %s306 = sphi 0, %s304
      %s307 = sphi 0, %s306
      %s321 = sphi 0, %s307
      %s325 = sphi 0, %s325
      %s327 = sphi 0, %s325
      %s328 = sphi 0, %s327
      %s342 = sphi 0, %s328
      %s346 = sphi 0, %s346
      %s348 = sphi 0, %s346
      %s349 = sphi 0, %s348
      %s363 = sphi 0, %s349
      %s367 = sphi 0, %s367
      %s369 = sphi 0, %s367
      %s370 = sphi 0, %s369
      %s384 = sphi 0, %s370
      %s388 = sphi 0, %s388
      %s390 = sphi 0, %s388
      %s391 = sphi 0, %s390
      %s405 = sphi 0, %s391
      %s411 = sphi 0, %s413
      %s414 = sphi 0, %s411
      %s415 = sphi 0, %s414
      %s431 = sphi 0, %s415
    $region4: #{tpu_custom_call.1} parent=1 // loop_header_branch
      %32 = sbr.rel (%p30) target = $region8
    $region5: #{tpu_custom_call.1} parent=1 // loop_body
      %s34 = ssub.s32 %s29, 1
      %s35 = ssub.s32 %s29, 2
      %s36 = sadd.s32 %s29, 1
      %s37 = ssub.s32 %s29, %s36
      %p38 = scmp.eq.s32.totalorder %s37, 0
      %s40 = sadd.s32 %s39, 1
      %s41 = scalar_select %p38, %s39, %s40
      %p44 = pneg %p38
      %p45 = scmp.eq.s32.totalorder %s29, 1
      %p46 = por %p44, %p45
      %p47 = scmp.ne.s32.totalorder %s39, %s42
      %p48 = scmp.eq.s32.totalorder %s29, 0
      %p49 = por %p47, %p48
      %p50 = scmp.ne.s32.totalorder %s39, %s42
      %p51 = scmp.eq.s32.totalorder %s34, 1
      %p52 = por %p50, %p51
      %p53 = scmp.ne.s32.totalorder %s42, %s43
      %p54 = scmp.eq.s32.totalorder %s34, 0
      %p55 = por %p53, %p54
      %p56 = scmp.ne.s32.totalorder %s42, %s43
      %p57 = scmp.eq.s32.totalorder %s35, 1
      %p58 = por %p56, %p57
      %p60 = scmp.ne.s32.totalorder %s43, %s59
      %p61 = scmp.eq.s32.totalorder %s35, 0
      %p62 = por %p60, %p61
      %s64 = sadd.s32 %s63, 1
      %p67 = scmp.eq.s32.totalorder %s29, 1
      %p68 = scmp.ne.s32.totalorder %s63, %s65
      %p69 = scmp.eq.s32.totalorder %s29, 0
      %p70 = por %p68, %p69
      %p71 = scmp.ne.s32.totalorder %s63, %s65
      %p72 = scmp.eq.s32.totalorder %s34, 1
      %p73 = por %p71, %p72
      %p74 = scmp.ne.s32.totalorder %s65, %s66
      %p75 = scmp.eq.s32.totalorder %s34, 0
      %p76 = por %p74, %p75
      %p77 = scmp.ne.s32.totalorder %s65, %s66
      %p78 = scmp.eq.s32.totalorder %s35, 1
      %p79 = por %p77, %p78
      %p81 = scmp.ne.s32.totalorder %s66, %s80
      %p82 = scmp.eq.s32.totalorder %s35, 0
      %p83 = por %p81, %p82
      %s85 = sadd.s32 %s84, 1
      %p88 = scmp.eq.s32.totalorder %s29, 1
      %p89 = scmp.ne.s32.totalorder %s84, %s86
      %p90 = scmp.eq.s32.totalorder %s29, 0
      %p91 = por %p89, %p90
      %p92 = scmp.ne.s32.totalorder %s84, %s86
      %p93 = scmp.eq.s32.totalorder %s34, 1
      %p94 = por %p92, %p93
      %p95 = scmp.ne.s32.totalorder %s86, %s87
      %p96 = scmp.eq.s32.totalorder %s34, 0
      %p97 = por %p95, %p96
      %p98 = scmp.ne.s32.totalorder %s86, %s87
      %p99 = scmp.eq.s32.totalorder %s35, 1
      %p100 = por %p98, %p99
      %p102 = scmp.ne.s32.totalorder %s87, %s101
      %p103 = scmp.eq.s32.totalorder %s35, 0
      %p104 = por %p102, %p103
      %s106 = sadd.s32 %s105, 1
      %p109 = scmp.eq.s32.totalorder %s29, 1
      %p110 = scmp.ne.s32.totalorder %s105, %s107
      %p111 = scmp.eq.s32.totalorder %s29, 0
      %p112 = por %p110, %p111
      %p113 = scmp.ne.s32.totalorder %s105, %s107
      %p114 = scmp.eq.s32.totalorder %s34, 1
      %p115 = por %p113, %p114
      %p116 = scmp.ne.s32.totalorder %s107, %s108
      %p117 = scmp.eq.s32.totalorder %s34, 0
      %p118 = por %p116, %p117
      %p119 = scmp.ne.s32.totalorder %s107, %s108
      %p120 = scmp.eq.s32.totalorder %s35, 1
      %p121 = por %p119, %p120
      %p123 = scmp.ne.s32.totalorder %s108, %s122
      %p124 = scmp.eq.s32.totalorder %s35, 0
      %p125 = por %p123, %p124
      %s127 = sadd.s32 %s126, 1
      %p130 = scmp.eq.s32.totalorder %s29, 1
      %p131 = scmp.ne.s32.totalorder %s126, %s128
      %p132 = scmp.eq.s32.totalorder %s29, 0
      %p133 = por %p131, %p132
      %p134 = scmp.ne.s32.totalorder %s126, %s128
      %p135 = scmp.eq.s32.totalorder %s34, 1
      %p136 = por %p134, %p135
      %p137 = scmp.ne.s32.totalorder %s128, %s129
      %p138 = scmp.eq.s32.totalorder %s34, 0
      %p139 = por %p137, %p138
      %p140 = scmp.ne.s32.totalorder %s128, %s129
      %p141 = scmp.eq.s32.totalorder %s35, 1
      %p142 = por %p140, %p141
      %p144 = scmp.ne.s32.totalorder %s129, %s143
      %p145 = scmp.eq.s32.totalorder %s35, 0
      %p146 = por %p144, %p145
      %s147 = ssub.s32 %s29, %s36
      %p148 = scmp.eq.s32.totalorder %s147, 0
      %s150 = sadd.s32 %s149, 1
      %s151 = scalar_select %p148, %s149, %s150
      %p154 = pneg %p148
      %p155 = scmp.eq.s32.totalorder %s29, 1
      %p156 = por %p154, %p155
      %p157 = scmp.ne.s32.totalorder %s149, %s152
      %p158 = scmp.eq.s32.totalorder %s29, 0
      %p159 = por %p157, %p158
      %p160 = scmp.ne.s32.totalorder %s149, %s152
      %p161 = scmp.eq.s32.totalorder %s34, 1
      %p162 = por %p160, %p161
      %p163 = scmp.ne.s32.totalorder %s152, %s153
      %p164 = scmp.eq.s32.totalorder %s34, 0
      %p165 = por %p163, %p164
      %p166 = scmp.ne.s32.totalorder %s152, %s153
      %p167 = scmp.eq.s32.totalorder %s35, 1
      %p168 = por %p166, %p167
      %p170 = scmp.ne.s32.totalorder %s153, %s169
      %p171 = scmp.eq.s32.totalorder %s35, 0
      %p172 = por %p170, %p171
      %s173 = ssub.s32 %s29, %s36
      %p174 = scmp.eq.s32.totalorder %s173, 0
      %s176 = sadd.s32 %s175, 1
      %s177 = scalar_select %p174, %s175, %s176
      %p180 = pneg %p174
      %p181 = scmp.eq.s32.totalorder %s29, 1
      %p182 = por %p180, %p181
      %p183 = scmp.ne.s32.totalorder %s175, %s178
      %p184 = scmp.eq.s32.totalorder %s29, 0
      %p185 = por %p183, %p184
      %p186 = scmp.ne.s32.totalorder %s175, %s178
      %p187 = scmp.eq.s32.totalorder %s34, 1
      %p188 = por %p186, %p187
      %p189 = scmp.ne.s32.totalorder %s178, %s179
      %p190 = scmp.eq.s32.totalorder %s34, 0
      %p191 = por %p189, %p190
      %p192 = scmp.ne.s32.totalorder %s178, %s179
      %p193 = scmp.eq.s32.totalorder %s35, 1
      %p194 = por %p192, %p193
      %p196 = scmp.ne.s32.totalorder %s179, %s195
      %p197 = scmp.eq.s32.totalorder %s35, 0
      %p198 = por %p196, %p197
      %s200 = sadd.s32 %s199, 1
      %p203 = scmp.eq.s32.totalorder %s29, 1
      %p204 = scmp.ne.s32.totalorder %s199, %s201
      %p205 = scmp.eq.s32.totalorder %s29, 0
      %p206 = por %p204, %p205
      %p207 = scmp.ne.s32.totalorder %s199, %s201
      %p208 = scmp.eq.s32.totalorder %s34, 1
      %p209 = por %p207, %p208
      %p210 = scmp.ne.s32.totalorder %s201, %s202
      %p211 = scmp.eq.s32.totalorder %s34, 0
      %p212 = por %p210, %p211
      %p213 = scmp.ne.s32.totalorder %s201, %s202
      %p214 = scmp.eq.s32.totalorder %s35, 1
      %p215 = por %p213, %p214
      %p217 = scmp.ne.s32.totalorder %s202, %s216
      %p218 = scmp.eq.s32.totalorder %s35, 0
      %p219 = por %p217, %p218
      %s221 = sadd.s32 %s220, 1
      %p224 = scmp.eq.s32.totalorder %s29, 1
      %p225 = scmp.ne.s32.totalorder %s220, %s222
      %p226 = scmp.eq.s32.totalorder %s29, 0
      %p227 = por %p225, %p226
      %p228 = scmp.ne.s32.totalorder %s220, %s222
      %p229 = scmp.eq.s32.totalorder %s34, 1
      %p230 = por %p228, %p229
      %p231 = scmp.ne.s32.totalorder %s222, %s223
      %p232 = scmp.eq.s32.totalorder %s34, 0
      %p233 = por %p231, %p232
      %p234 = scmp.ne.s32.totalorder %s222, %s223
      %p235 = scmp.eq.s32.totalorder %s35, 1
      %p236 = por %p234, %p235
      %p238 = scmp.ne.s32.totalorder %s223, %s237
      %p239 = scmp.eq.s32.totalorder %s35, 0
      %p240 = por %p238, %p239
      %s242 = sadd.s32 %s241, 1
      %p245 = scmp.eq.s32.totalorder %s29, 1
      %p246 = scmp.ne.s32.totalorder %s241, %s243
      %p247 = scmp.eq.s32.totalorder %s29, 0
      %p248 = por %p246, %p247
      %p249 = scmp.ne.s32.totalorder %s241, %s243
      %p250 = scmp.eq.s32.totalorder %s34, 1
      %p251 = por %p249, %p250
      %p252 = scmp.ne.s32.totalorder %s243, %s244
      %p253 = scmp.eq.s32.totalorder %s34, 0
      %p254 = por %p252, %p253
      %p255 = scmp.ne.s32.totalorder %s243, %s244
      %p256 = scmp.eq.s32.totalorder %s35, 1
      %p257 = por %p255, %p256
      %p259 = scmp.ne.s32.totalorder %s244, %s258
      %p260 = scmp.eq.s32.totalorder %s35, 0
      %p261 = por %p259, %p260
      %s263 = sadd.s32 %s262, 1
      %p266 = scmp.eq.s32.totalorder %s29, 1
      %p267 = scmp.ne.s32.totalorder %s262, %s264
      %p268 = scmp.eq.s32.totalorder %s29, 0
      %p269 = por %p267, %p268
      %p270 = scmp.ne.s32.totalorder %s262, %s264
      %p271 = scmp.eq.s32.totalorder %s34, 1
      %p272 = por %p270, %p271
      %p273 = scmp.ne.s32.totalorder %s264, %s265
      %p274 = scmp.eq.s32.totalorder %s34, 0
      %p275 = por %p273, %p274
      %p276 = scmp.ne.s32.totalorder %s264, %s265
      %p277 = scmp.eq.s32.totalorder %s35, 1
      %p278 = por %p276, %p277
      %p280 = scmp.ne.s32.totalorder %s265, %s279
      %p281 = scmp.eq.s32.totalorder %s35, 0
      %p282 = por %p280, %p281
      %s284 = sadd.s32 %s283, 1
      %p287 = scmp.eq.s32.totalorder %s29, 1
      %p288 = scmp.ne.s32.totalorder %s283, %s285
      %p289 = scmp.eq.s32.totalorder %s29, 0
      %p290 = por %p288, %p289
      %p291 = scmp.ne.s32.totalorder %s283, %s285
      %p292 = scmp.eq.s32.totalorder %s34, 1
      %p293 = por %p291, %p292
      %p294 = scmp.ne.s32.totalorder %s285, %s286
      %p295 = scmp.eq.s32.totalorder %s34, 0
      %p296 = por %p294, %p295
      %p297 = scmp.ne.s32.totalorder %s285, %s286
      %p298 = scmp.eq.s32.totalorder %s35, 1
      %p299 = por %p297, %p298
      %p301 = scmp.ne.s32.totalorder %s286, %s300
      %p302 = scmp.eq.s32.totalorder %s35, 0
      %p303 = por %p301, %p302
      %s305 = sadd.s32 %s304, 1
      %p308 = scmp.eq.s32.totalorder %s29, 1
      %p309 = scmp.ne.s32.totalorder %s304, %s306
      %p310 = scmp.eq.s32.totalorder %s29, 0
      %p311 = por %p309, %p310
      %p312 = scmp.ne.s32.totalorder %s304, %s306
      %p313 = scmp.eq.s32.totalorder %s34, 1
      %p314 = por %p312, %p313
      %p315 = scmp.ne.s32.totalorder %s306, %s307
      %p316 = scmp.eq.s32.totalorder %s34, 0
      %p317 = por %p315, %p316
      %p318 = scmp.ne.s32.totalorder %s306, %s307
      %p319 = scmp.eq.s32.totalorder %s35, 1
      %p320 = por %p318, %p319
      %p322 = scmp.ne.s32.totalorder %s307, %s321
      %p323 = scmp.eq.s32.totalorder %s35, 0
      %p324 = por %p322, %p323
      %s326 = sadd.s32 %s325, 1
      %p329 = scmp.eq.s32.totalorder %s29, 1
      %p330 = scmp.ne.s32.totalorder %s325, %s327
      %p331 = scmp.eq.s32.totalorder %s29, 0
      %p332 = por %p330, %p331
      %p333 = scmp.ne.s32.totalorder %s325, %s327
      %p334 = scmp.eq.s32.totalorder %s34, 1
      %p335 = por %p333, %p334
      %p336 = scmp.ne.s32.totalorder %s327, %s328
      %p337 = scmp.eq.s32.totalorder %s34, 0
      %p338 = por %p336, %p337
      %p339 = scmp.ne.s32.totalorder %s327, %s328
      %p340 = scmp.eq.s32.totalorder %s35, 1
      %p341 = por %p339, %p340
      %p343 = scmp.ne.s32.totalorder %s328, %s342
      %p344 = scmp.eq.s32.totalorder %s35, 0
      %p345 = por %p343, %p344
      %s347 = sadd.s32 %s346, 1
      %p350 = scmp.eq.s32.totalorder %s29, 1
      %p351 = scmp.ne.s32.totalorder %s346, %s348
      %p352 = scmp.eq.s32.totalorder %s29, 0
      %p353 = por %p351, %p352
      %p354 = scmp.ne.s32.totalorder %s346, %s348
      %p355 = scmp.eq.s32.totalorder %s34, 1
      %p356 = por %p354, %p355
      %p357 = scmp.ne.s32.totalorder %s348, %s349
      %p358 = scmp.eq.s32.totalorder %s34, 0
      %p359 = por %p357, %p358
      %p360 = scmp.ne.s32.totalorder %s348, %s349
      %p361 = scmp.eq.s32.totalorder %s35, 1
      %p362 = por %p360, %p361
      %p364 = scmp.ne.s32.totalorder %s349, %s363
      %p365 = scmp.eq.s32.totalorder %s35, 0
      %p366 = por %p364, %p365
      %s368 = sadd.s32 %s367, 1
      %p371 = scmp.eq.s32.totalorder %s29, 1
      %p372 = scmp.ne.s32.totalorder %s367, %s369
      %p373 = scmp.eq.s32.totalorder %s29, 0
      %p374 = por %p372, %p373
      %p375 = scmp.ne.s32.totalorder %s367, %s369
      %p376 = scmp.eq.s32.totalorder %s34, 1
      %p377 = por %p375, %p376
      %p378 = scmp.ne.s32.totalorder %s369, %s370
      %p379 = scmp.eq.s32.totalorder %s34, 0
      %p380 = por %p378, %p379
      %p381 = scmp.ne.s32.totalorder %s369, %s370
      %p382 = scmp.eq.s32.totalorder %s35, 1
      %p383 = por %p381, %p382
      %p385 = scmp.ne.s32.totalorder %s370, %s384
      %p386 = scmp.eq.s32.totalorder %s35, 0
      %p387 = por %p385, %p386
      %s389 = sadd.s32 %s388, 1
      %p392 = scmp.eq.s32.totalorder %s29, 1
      %p393 = scmp.ne.s32.totalorder %s388, %s390
      %p394 = scmp.eq.s32.totalorder %s29, 0
      %p395 = por %p393, %p394
      %p396 = scmp.ne.s32.totalorder %s388, %s390
      %p397 = scmp.eq.s32.totalorder %s34, 1
      %p398 = por %p396, %p397
      %p399 = scmp.ne.s32.totalorder %s390, %s391
      %p400 = scmp.eq.s32.totalorder %s34, 0
      %p401 = por %p399, %p400
      %p402 = scmp.ne.s32.totalorder %s390, %s391
      %p403 = scmp.eq.s32.totalorder %s35, 1
      %p404 = por %p402, %p403
      %p406 = scmp.ne.s32.totalorder %s391, %s405
      %p407 = scmp.eq.s32.totalorder %s35, 0
      %p408 = por %p406, %p407
      %s409 = ssub.s32 %s29, %s36
      %p410 = scmp.eq.s32.totalorder %s409, 0
      %s412 = sadd.s32 %s411, 1
      %s413 = scalar_select %p410, %s411, %s412
      %p416 = pneg %p410
      %p417 = scmp.eq.s32.totalorder %s29, 1
      %p418 = por %p416, %p417
      %p419 = scmp.ne.s32.totalorder %s411, %s414
      %p420 = scmp.eq.s32.totalorder %s29, 0
      %p421 = por %p419, %p420
      %p422 = scmp.ne.s32.totalorder %s411, %s414
      %p423 = scmp.eq.s32.totalorder %s34, 1
      %p424 = por %p422, %p423
      %p425 = scmp.ne.s32.totalorder %s414, %s415
      %p426 = scmp.eq.s32.totalorder %s34, 0
      %p427 = por %p425, %p426
      %p428 = scmp.ne.s32.totalorder %s414, %s415
      %p429 = scmp.eq.s32.totalorder %s35, 1
      %p430 = por %p428, %p429
      %p432 = scmp.ne.s32.totalorder %s415, %s431
      %p433 = scmp.eq.s32.totalorder %s35, 0
      %p434 = por %p432, %p433
      %p435 = scmp.le.s32.totalorder 1, %s29
      %p436 = scmp.lt.s32.totalorder %s29, 3
      %p437 = pnand %p435, %p436
      %p438 = pneg %p437
      // Predicated region
      $region9: #{tpu_custom_call.1} parent=5 // pred_check
        _
      $region10: #{tpu_custom_call.1} parent=5 // pred_check_branch
        %440 = sbr.rel (%p437) target = $region12
      $region11: #{tpu_custom_call.1} parent=5 // pred_region
        %s441 = ssub.s32 %s29, 1
        // Predicated region
        $region13: #{tpu_custom_call.1} parent=11 // pred_check
          %p442 = pneg %p76
        $region14: #{tpu_custom_call.1} parent=11 // pred_check_branch
          %444 = sbr.rel (%p442) target = $region16
        $region15: #{tpu_custom_call.1} parent=11 // pred_region
          _
        $region16: #{tpu_custom_call.1} parent=11 // pred_fallthru
          _
        // Predicated region
        $region17: #{tpu_custom_call.1} parent=11 // pred_check
          %p445 = pneg %p97
        $region18: #{tpu_custom_call.1} parent=11 // pred_check_branch
          %447 = sbr.rel (%p445) target = $region20
        $region19: #{tpu_custom_call.1} parent=11 // pred_region
          _
        $region20: #{tpu_custom_call.1} parent=11 // pred_fallthru
          _
        // Predicated region
        $region21: #{tpu_custom_call.1} parent=11 // pred_check
          %p448 = pneg %p118
        $region22: #{tpu_custom_call.1} parent=11 // pred_check_branch
          %450 = sbr.rel (%p448) target = $region24
        $region23: #{tpu_custom_call.1} parent=11 // pred_region
          _
        $region24: #{tpu_custom_call.1} parent=11 // pred_fallthru
          _
        // Predicated region
        $region25: #{tpu_custom_call.1} parent=11 // pred_check
          %p451 = pneg %p139
        $region26: #{tpu_custom_call.1} parent=11 // pred_check_branch
          %453 = sbr.rel (%p451) target = $region28
        $region27: #{tpu_custom_call.1} parent=11 // pred_region
          _
        $region28: #{tpu_custom_call.1} parent=11 // pred_fallthru
          _
        // Predicated region
        $region29: #{tpu_custom_call.1} parent=11 // pred_check
          %p454 = pneg %p212
        $region30: #{tpu_custom_call.1} parent=11 // pred_check_branch
          %456 = sbr.rel (%p454) target = $region32
        $region31: #{tpu_custom_call.1} parent=11 // pred_region
          _
        $region32: #{tpu_custom_call.1} parent=11 // pred_fallthru
          _
        // Predicated region
        $region33: #{tpu_custom_call.1} parent=11 // pred_check
          %p457 = pneg %p233
        $region34: #{tpu_custom_call.1} parent=11 // pred_check_branch
          %459 = sbr.rel (%p457) target = $region36
        $region35: #{tpu_custom_call.1} parent=11 // pred_region
          _
        $region36: #{tpu_custom_call.1} parent=11 // pred_fallthru
          _
        // Predicated region
        $region37: #{tpu_custom_call.1} parent=11 // pred_check
          %p460 = pneg %p254
        $region38: #{tpu_custom_call.1} parent=11 // pred_check_branch
          %462 = sbr.rel (%p460) target = $region40
        $region39: #{tpu_custom_call.1} parent=11 // pred_region
          _
        $region40: #{tpu_custom_call.1} parent=11 // pred_fallthru
          _
        // Predicated region
        $region41: #{tpu_custom_call.1} parent=11 // pred_check
          %p463 = pneg %p275
        $region42: #{tpu_custom_call.1} parent=11 // pred_check_branch
          %465 = sbr.rel (%p463) target = $region44
        $region43: #{tpu_custom_call.1} parent=11 // pred_region
          _
        $region44: #{tpu_custom_call.1} parent=11 // pred_fallthru
          _
        // Predicated region
        $region45: #{tpu_custom_call.1} parent=11 // pred_check
          %p466 = pneg %p296
        $region46: #{tpu_custom_call.1} parent=11 // pred_check_branch
          %468 = sbr.rel (%p466) target = $region48
        $region47: #{tpu_custom_call.1} parent=11 // pred_region
          _
        $region48: #{tpu_custom_call.1} parent=11 // pred_fallthru
          _
        // Predicated region
        $region49: #{tpu_custom_call.1} parent=11 // pred_check
          %p469 = pneg %p317
        $region50: #{tpu_custom_call.1} parent=11 // pred_check_branch
          %471 = sbr.rel (%p469) target = $region52
        $region51: #{tpu_custom_call.1} parent=11 // pred_region
          _
        $region52: #{tpu_custom_call.1} parent=11 // pred_fallthru
          _
        // Predicated region
        $region53: #{tpu_custom_call.1} parent=11 // pred_check
          %p472 = pneg %p338
        $region54: #{tpu_custom_call.1} parent=11 // pred_check_branch
          %474 = sbr.rel (%p472) target = $region56
        $region55: #{tpu_custom_call.1} parent=11 // pred_region
          _
        $region56: #{tpu_custom_call.1} parent=11 // pred_fallthru
          _
        // Predicated region
        $region57: #{tpu_custom_call.1} parent=11 // pred_check
          %p475 = pneg %p359
        $region58: #{tpu_custom_call.1} parent=11 // pred_check_branch
          %477 = sbr.rel (%p475) target = $region60
        $region59: #{tpu_custom_call.1} parent=11 // pred_region
          _
        $region60: #{tpu_custom_call.1} parent=11 // pred_fallthru
          _
        // Predicated region
        $region61: #{tpu_custom_call.1} parent=11 // pred_check
          %p478 = pneg %p380
        $region62: #{tpu_custom_call.1} parent=11 // pred_check_branch
          %480 = sbr.rel (%p478) target = $region64
        $region63: #{tpu_custom_call.1} parent=11 // pred_region
          _
        $region64: #{tpu_custom_call.1} parent=11 // pred_fallthru
          _
        // Predicated region
        $region65: #{tpu_custom_call.1} parent=11 // pred_check
          %p481 = pneg %p401
        $region66: #{tpu_custom_call.1} parent=11 // pred_check_branch
          %483 = sbr.rel (%p481) target = $region68
        $region67: #{tpu_custom_call.1} parent=11 // pred_region
          _
        $region68: #{tpu_custom_call.1} parent=11 // pred_fallthru
          _
      $region12: #{tpu_custom_call.1} parent=5 // pred_fallthru
        _
      %p484 = scmp.lt.s32.totalorder %s29, 2
      // Predicated region
      $region69: #{tpu_custom_call.1} parent=5 // pred_check
        %p485 = pneg %p484
      $region70: #{tpu_custom_call.1} parent=5 // pred_check_branch
        %487 = sbr.rel (%p485) target = $region72
      $region71: #{tpu_custom_call.1} parent=5 // pred_region
        // Predicated region
        $region73: #{tpu_custom_call.1} parent=71 // pred_check
          %p488 = pneg %p49
        $region74: #{tpu_custom_call.1} parent=71 // pred_check_branch
          %490 = sbr.rel (%p488) target = $region76
        $region75: #{tpu_custom_call.1} parent=71 // pred_region
          %s491 = sand.u32 %s39, 1
          %s492 = scalar_lea.sflag [#allocation3], %s491
          %s493 = sand.u32 %s39, 1
          %s494 = smul.addr %s493, 8
          %s495 = scalar_lea.vmem [#allocation2], %s494
          %s497 = ssub.s32 128, 128
          %498 = vsyncadd %s492, %s497
          %s499 = smul.addr %s29, 128
          %s500 = scalar_lea.hbm %s0, %s499
          %s502 = sshll.u32 %s495, 4
          %s503 = int_to_ptr.vmem [resolvable:$true] %s502
          %505 = dma.hbm_to_vmem [thread:$0]  %s500, 128, %s503, %s492
        $region76: #{tpu_custom_call.1} parent=71 // pred_fallthru
          _
        // Predicated region
        $region77: #{tpu_custom_call.1} parent=71 // pred_check
          %p506 = pneg %p159
        $region78: #{tpu_custom_call.1} parent=71 // pred_check_branch
          %508 = sbr.rel (%p506) target = $region80
        $region79: #{tpu_custom_call.1} parent=71 // pred_region
          %p509 = scmp.lt.s32.totalorder %s29, 1
          %s510 = scalar_select %p509, %s29, 1
          %s511 = smul.addr %s510, 8
          %s512 = scalar_lea.vmem %s5, %s511
        $region80: #{tpu_custom_call.1} parent=71 // pred_fallthru
          _
        // Predicated region
        $region81: #{tpu_custom_call.1} parent=71 // pred_check
          %p513 = pneg %p185
        $region82: #{tpu_custom_call.1} parent=71 // pred_check_branch
          %515 = sbr.rel (%p513) target = $region84
        $region83: #{tpu_custom_call.1} parent=71 // pred_region
          %p516 = scmp.lt.s32.totalorder %s29, 1
          %s517 = scalar_select %p516, %s29, 1
          %s518 = scalar_lea.vmem %s6, %s517
        $region84: #{tpu_custom_call.1} parent=71 // pred_fallthru
          _
      $region72: #{tpu_custom_call.1} parent=5 // pred_fallthru
        _
      %p519 = scmp.le.s32.totalorder 1, %s29
      %p520 = scmp.lt.s32.totalorder %s29, 3
      %p521 = pnand %p519, %p520
      %p522 = pneg %p521
      // Predicated region
      $region85: #{tpu_custom_call.1} parent=5 // pred_check
        _
      $region86: #{tpu_custom_call.1} parent=5 // pred_check_branch
        %524 = sbr.rel (%p521) target = $region88
      $region87: #{tpu_custom_call.1} parent=5 // pred_region
        %s525 = ssub.s32 %s29, 1
        %s526 = sand.u32 %s42, 1
        %s527 = scalar_lea.sflag [#allocation3], %s526
        %s528 = sand.u32 %s42, 1
        %s529 = smul.addr %s528, 8
        %s530 = scalar_lea.vmem [#allocation2], %s529
        // Predicated region
        $region89: #{tpu_custom_call.1} parent=87 // pred_check
          %p531 = pneg %p55
        $region90: #{tpu_custom_call.1} parent=87 // pred_check_branch
          %533 = sbr.rel (%p531) target = $region92
        $region91: #{tpu_custom_call.1} parent=87 // pred_region
          %534 = dma.done %s527, 128
        $region92: #{tpu_custom_call.1} parent=87 // pred_fallthru
          _
        %s535 = sand.u32 %s42, 1
        %s536 = scalar_lea.sflag [#allocation3], %s535
        %s537 = sand.u32 %s42, 1
        %s538 = smul.addr %s537, 8
        %s539 = scalar_lea.vmem [#allocation2], %s538
        %p540 = pneg %p55
        %p541 = pneg %p52
        %p542 = pneg %p76
        %p543 = pneg %p73
        %p544 = pneg %p97
        %p545 = pneg %p94
        %p546 = pneg %p118
        %p547 = pneg %p115
        %p548 = pneg %p139
        %p549 = pneg %p136
        %p550 = scmp.lt.s32.totalorder %s34, 1
        %s551 = scalar_select %p550, %s34, 1
        %s552 = smul.addr %s551, 8
        %s553 = scalar_lea.vmem %s5, %s552
        %p554 = pneg %p165
        %p555 = pneg %p162
        %p556 = scmp.lt.s32.totalorder %s34, 1
        %s557 = scalar_select %p556, %s34, 1
        %s558 = scalar_lea.vmem %s6, %s557
        %p559 = pneg %p191
        %p560 = pneg %p188
        %p561 = pneg %p212
        %p562 = pneg %p209
        %p563 = pneg %p233
        %p564 = pneg %p230
        %p565 = pneg %p254
        %p566 = pneg %p251
        %p567 = pneg %p275
        %p568 = pneg %p272
        %p569 = pneg %p296
        %p570 = pneg %p293
        %p571 = pneg %p317
        %p572 = pneg %p314
        %p573 = pneg %p338
        %p574 = pneg %p335
        %p575 = pneg %p359
        %p576 = pneg %p356
        %p577 = pneg %p380
        %p578 = pneg %p377
        %p579 = pneg %p401
        %p580 = pneg %p398
        %p581 = pneg %p427
        %p582 = pneg %p424
        %s583 = sand.u32 %s414, 1
        %s584 = scalar_lea.sflag [#allocation4], %s583
        %s585 = sand.u32 %s414, 1
        %s586 = smul.addr %s585, 8
        %s587 = scalar_lea.vmem [#allocation5], %s586
        %p588 = scmp.lt.s32.totalorder %s34, 1
        %s589 = scalar_select %p588, %s34, 1
        %s590 = smul.addr %s589, 8
        %s591 = scalar_lea.vmem %s5, %s590
        %p592 = scmp.lt.s32.totalorder %s34, 1
        %s593 = scalar_select %p592, %s34, 1
        %s594 = scalar_lea.vmem %s6, %s593
        %v595 = vld [vmem:[%s530] sm:$0xff]
        %v596 = vld [vmem:[%s594] sm:$0x1]
        %v597 = vld [vmem:[%s591] sm:$0xff]
        %v598 = vld [vmem:[%s1] sm:$0xff]
        %v599 = vld [vmem:[%s1 + $0x8] sm:$0xff]
        %v600 = vld [vmem:[%s1 + $0x10] sm:$0xff]
        %v601 = vld [vmem:[%s1 + $0x18] sm:$0xff]
        %v602 = vld [vmem:[%s2] sm:$0x1]
        %v604 = vlaneseq
        %v605 = vshrl.u32 %v604, 7
        %v606 = vsub.s32 0, %v605
        %v607 = vrot.slane %v602, %v606
        %vm609 = vcmask 261120
        %v611 = vsel %vm609, %v595, 0
        %613 = vmatprep.subr.mxu0 0.0
        %614 = vmatpush1.msra.mxu0 %v598
        %615 = vmatprep.subr.mxu0 0.0
        %616 = vmatpush1.msra.mxu0 %v599
        %617 = vmatprep.subr.mxu0 0.0
        %618 = vmatpush1.msra.mxu0 %v600
        %619 = vmatprep.subr.mxu0 0.0
        %620 = vmatpush1.msra.mxu0 %v601
        %621 = vmatprep.subr.mxu0 0.0
        %622 = vmatpush1.msra.mxu0 0.0
        %623 = vmatprep.subr.mxu0 0.0
        %624 = vmatpush1.msra.mxu0 0.0
        %625 = vmatprep.subr.mxu0 0.0
        %626 = vmatpush1.msra.mxu0 0.0
        %627 = vmatprep.subr.mxu0 0.0
        %628 = vmatpush1.msra.mxu0 0.0
        %629 = vmatprep.subr.mxu0 0.0
        %630 = vmatpush1.msra.mxu0 0.0
        %631 = vmatprep.subr.mxu0 0.0
        %632 = vmatpush1.msra.mxu0 0.0
        %633 = vmatprep.subr.mxu0 0.0
        %634 = vmatpush1.msra.mxu0 0.0
        %635 = vmatprep.subr.mxu0 0.0
        %636 = vmatpush1.msra.mxu0 0.0
        %637 = vmatprep.subr.mxu0 0.0
        %638 = vmatpush1.msra.mxu0 0.0
        %639 = vmatprep.subr.mxu0 0.0
        %640 = vmatpush1.msra.mxu0 0.0
        %641 = vmatprep.subr.mxu0 0.0
        %642 = vmatpush1.msra.mxu0 0.0
        %643 = vmatprep.subr.mxu0 0.0
        %644 = vmatpush1.msra.mxu0 0.0
        %645 = vmatprep.subr.mxu0 0.0
        %646 = vmatpush1.msra.mxu0 0.0
        %647 = vmatprep.subr.mxu0 0.0
        %648 = vmatpush1.msra.mxu0 0.0
        %649 = vmatprep.subr.mxu0 0.0
        %650 = vmatpush1.msra.mxu0 0.0
        %651 = vmatprep.subr.mxu0 0.0
        %652 = vmatpush1.msra.mxu0 0.0
        %653 = vmatprep.subr.mxu0 0.0
        %654 = vmatpush1.msra.mxu0 0.0
        %655 = vmatprep.subr.mxu0 0.0
        %656 = vmatpush1.msra.mxu0 0.0
        %657 = vmatprep.subr.mxu0 0.0
        %658 = vmatpush1.msra.mxu0 0.0
        %659 = vmatprep.subr.mxu0 0.0
        %660 = vmatpush1.msra.mxu0 0.0
        %661 = vmatprep.subr.mxu0 0.0
        %662 = vmatpush1.msra.mxu0 0.0
        %663 = vmatprep.subr.mxu0 0.0
        %664 = vmatpush1.msra.mxu0 0.0
        %665 = vmatprep.subr.mxu0 0.0
        %666 = vmatpush1.msra.mxu0 0.0
        %667 = vmatprep.subr.mxu0 0.0
        %668 = vmatpush1.msra.mxu0 0.0
        %669 = vmatprep.subr.mxu0 0.0
        %670 = vmatpush1.msra.mxu0 0.0
        %671 = vmatprep.subr.mxu0 0.0
        %672 = vmatpush1.msra.mxu0 0.0
        %673 = vmatprep.subr.mxu0 0.0
        %674 = vmatpush1.msra.mxu0 0.0
        %675 = vmatprep.subr.mxu0 0.0
        %676 = vmatpush1.msra.mxu0 0.0
        %677 = vmatprep.mubr.f32.mxu0 0.0
        %678 = vmatmul.mubr.f32.gmra.mrb[0].mxu0 %v611
        %v679 = vpop.f32.mrb[0].mxu0
        %v680 = vadd.f32 %v607, %v679
        %v681 = vpop.f32.mrb[0].mxu0
        %682 = vdwg.mxu0
        %v683 = vld [vmem:[%s3] sm:$0xff]
        %v684 = vld [vmem:[%s4] sm:$0x7]
        %vm685 = vcmp.eq.s32.totalorder %v597, 0
        %v686 = vsel %vm685, 1, 0
        %v687 = vcvt.s32.f32 %v686
        %vm688 = vcmp.eq.s32.totalorder %v597, 1
        %v689 = vsel %vm688, 1, 0
        %v690 = vcvt.s32.f32 %v689
        %vm691 = vcmp.eq.s32.totalorder %v597, 2
        %v692 = vsel %vm691, 1, 0
        %v693 = vcvt.s32.f32 %v692
        %695 = vrot.lane.b32.xlu0 %v680, 96
        %v696 = vpop.permute.xlu0 %695
        %vm697 = vcmask 64512
        %v698 = vsel %vm697, %v680, 0
        %v700 = vsel %vm697, %v696, 0
        %702 = vmatprep.subr.mxu0 0.0
        %703 = vmatpush1.xpose.msra.mxu0 %v700
        %704 = vmatprep.subr.mxu0 0.0
        %705 = vmatpush1.xpose.msra.mxu0 0.0
        %706 = vmatprep.subr.mxu0 0.0
        %707 = vmatpush1.xpose.msra.mxu0 0.0
        %708 = vmatprep.subr.mxu0 0.0
        %709 = vmatpush1.xpose.msra.mxu0 0.0
        %710 = vmatprep.subr.mxu0 0.0
        %711 = vmatpush1.xpose.msra.mxu0 0.0
        %712 = vmatprep.subr.mxu0 0.0
        %713 = vmatpush1.xpose.msra.mxu0 0.0
        %714 = vmatprep.subr.mxu0 0.0
        %715 = vmatpush1.xpose.msra.mxu0 0.0
        %716 = vmatprep.subr.mxu0 0.0
        %717 = vmatpush1.xpose.msra.mxu0 0.0
        %718 = vmatprep.subr.mxu0 0.0
        %719 = vmatpush1.xpose.msra.mxu0 0.0
        %720 = vmatprep.subr.mxu0 0.0
        %721 = vmatpush1.xpose.msra.mxu0 0.0
        %722 = vmatprep.subr.mxu0 0.0
        %723 = vmatpush1.xpose.msra.mxu0 0.0
        %724 = vmatprep.subr.mxu0 0.0
        %725 = vmatpush1.xpose.msra.mxu0 0.0
        %726 = vmatprep.subr.mxu0 0.0
        %727 = vmatpush1.xpose.msra.mxu0 0.0
        %728 = vmatprep.subr.mxu0 0.0
        %729 = vmatpush1.xpose.msra.mxu0 0.0
        %730 = vmatprep.subr.mxu0 0.0
        %731 = vmatpush1.xpose.msra.mxu0 0.0
        %732 = vmatprep.subr.mxu0 0.0
        %733 = vmatpush1.xpose.msra.mxu0 0.0
        %734 = vmatprep.subr.mxu0 0.0
        %735 = vmatpush1.xpose.msra.mxu0 0.0
        %736 = vmatprep.subr.mxu0 0.0
        %737 = vmatpush1.xpose.msra.mxu0 0.0
        %738 = vmatprep.subr.mxu0 0.0
        %739 = vmatpush1.xpose.msra.mxu0 0.0
        %740 = vmatprep.subr.mxu0 0.0
        %741 = vmatpush1.xpose.msra.mxu0 0.0
        %742 = vmatprep.subr.mxu0 0.0
        %743 = vmatpush1.xpose.msra.mxu0 0.0
        %744 = vmatprep.subr.mxu0 0.0
        %745 = vmatpush1.xpose.msra.mxu0 0.0
        %746 = vmatprep.subr.mxu0 0.0
        %747 = vmatpush1.xpose.msra.mxu0 0.0
        %748 = vmatprep.subr.mxu0 0.0
        %749 = vmatpush1.xpose.msra.mxu0 0.0
        %750 = vmatprep.subr.mxu0 0.0
        %751 = vmatpush1.xpose.msra.mxu0 0.0
        %752 = vmatprep.subr.mxu0 0.0
        %753 = vmatpush1.xpose.msra.mxu0 0.0
        %754 = vmatprep.subr.mxu0 0.0
        %755 = vmatpush1.xpose.msra.mxu0 0.0
        %756 = vmatprep.subr.mxu0 0.0
        %757 = vmatpush1.xpose.msra.mxu0 0.0
        %758 = vmatprep.subr.mxu0 0.0
        %759 = vmatpush1.xpose.msra.mxu0 0.0
        %760 = vmatprep.subr.mxu0 0.0
        %761 = vmatpush1.xpose.msra.mxu0 0.0
        %762 = vmatprep.subr.mxu0 0.0
        %763 = vmatpush1.xpose.msra.mxu0 0.0
        %764 = vmatprep.subr.mxu0 0.0
        %765 = vmatpush1.xpose.msra.mxu0 0.0
        %766 = vmatprep.mubr.f32.mxu0 0.0
        %767 = vmatmul.mubr.f32.gmra.mrb[0].mxu0 %v698
        %v768 = vpop.f32.mrb[0].mxu0
        %v769 = vadd.f32 0.0, %v768
        %v770 = vpop.f32.mrb[0].mxu0
        %771 = vdwg.mxu0
        %v772 = vmul.f32 %v769, 0.35355338
        %773 = vmatprep.subr.mxu0 0.0
        %774 = vmatpush1.msra.mxu0 %v683
        %775 = vmatprep.subr.mxu0 0.0
        %776 = vmatpush1.msra.mxu0 0.0
        %777 = vmatprep.subr.mxu0 0.0
        %778 = vmatpush1.msra.mxu0 0.0
        %779 = vmatprep.subr.mxu0 0.0
        %780 = vmatpush1.msra.mxu0 0.0
        %781 = vmatprep.subr.mxu0 0.0
        %782 = vmatpush1.msra.mxu0 0.0
        %783 = vmatprep.subr.mxu0 0.0
        %784 = vmatpush1.msra.mxu0 0.0
        %785 = vmatprep.subr.mxu0 0.0
        %786 = vmatpush1.msra.mxu0 0.0
        %787 = vmatprep.subr.mxu0 0.0
        %788 = vmatpush1.msra.mxu0 0.0
        %789 = vmatprep.subr.mxu0 0.0
        %790 = vmatpush1.msra.mxu0 0.0
        %791 = vmatprep.subr.mxu0 0.0
        %792 = vmatpush1.msra.mxu0 0.0
        %793 = vmatprep.subr.mxu0 0.0
        %794 = vmatpush1.msra.mxu0 0.0
        %795 = vmatprep.subr.mxu0 0.0
        %796 = vmatpush1.msra.mxu0 0.0
        %797 = vmatprep.subr.mxu0 0.0
        %798 = vmatpush1.msra.mxu0 0.0
        %799 = vmatprep.subr.mxu0 0.0
        %800 = vmatpush1.msra.mxu0 0.0
        %801 = vmatprep.subr.mxu0 0.0
        %802 = vmatpush1.msra.mxu0 0.0
        %803 = vmatprep.subr.mxu0 0.0
        %804 = vmatpush1.msra.mxu0 0.0
        %805 = vmatprep.subr.mxu0 0.0
        %806 = vmatpush1.msra.mxu0 0.0
        %807 = vmatprep.subr.mxu0 0.0
        %808 = vmatpush1.msra.mxu0 0.0
        %809 = vmatprep.subr.mxu0 0.0
        %810 = vmatpush1.msra.mxu0 0.0
        %811 = vmatprep.subr.mxu0 0.0
        %812 = vmatpush1.msra.mxu0 0.0
        %813 = vmatprep.subr.mxu0 0.0
        %814 = vmatpush1.msra.mxu0 0.0
        %815 = vmatprep.subr.mxu0 0.0
        %816 = vmatpush1.msra.mxu0 0.0
        %817 = vmatprep.subr.mxu0 0.0
        %818 = vmatpush1.msra.mxu0 0.0
        %819 = vmatprep.subr.mxu0 0.0
        %820 = vmatpush1.msra.mxu0 0.0
        %821 = vmatprep.subr.mxu0 0.0
        %822 = vmatpush1.msra.mxu0 0.0
        %823 = vmatprep.subr.mxu0 0.0
        %824 = vmatpush1.msra.mxu0 0.0
        %825 = vmatprep.subr.mxu0 0.0
        %826 = vmatpush1.msra.mxu0 0.0
        %827 = vmatprep.subr.mxu0 0.0
        %828 = vmatpush1.msra.mxu0 0.0
        %829 = vmatprep.subr.mxu0 0.0
        %830 = vmatpush1.msra.mxu0 0.0
        %831 = vmatprep.subr.mxu0 0.0
        %832 = vmatpush1.msra.mxu0 0.0
        %833 = vmatprep.subr.mxu0 0.0
        %834 = vmatpush1.msra.mxu0 0.0
        %835 = vmatprep.subr.mxu0 0.0
        %836 = vmatpush1.msra.mxu0 0.0
        %837 = vmatprep.mubr.f32.mxu0 0.0
        %838 = vmatmul.mubr.f32.gmra.mrb[0].mxu0 %v698
        %v839 = vpop.f32.mrb[0].mxu0
        %v840 = vadd.f32 0.0, %v839
        %v841 = vpop.f32.mrb[0].mxu0
        %842 = vdwg.mxu0
        %844 = vset.pattern.permute.xlu0 0
        %845 = vperm.xlu0 %844, %v840
        %v846 = vpop.permute.xlu0 %845
        %v848 = vmul.f32 %v846, %v687
        %849 = vset.pattern.permute.xlu0 1
        %850 = vperm.xlu0 %849, %v840
        %v851 = vpop.permute.xlu0 %850
        %v853 = vmul.f32 %v851, %v690
        %v854 = vadd.f32 %v848, %v853
        %855 = vset.pattern.permute.xlu0 2
        %856 = vperm.xlu0 %855, %v840
        %v857 = vpop.permute.xlu0 %856
        %v859 = vmul.f32 %v857, %v693
        %v860 = vadd.f32 %v854, %v859
        %v861 = vadd.f32 %v772, %v860
        %v863 = vlaneseq
        %v864 = vshrl.u32 %v863, 7
        %v865 = vsub.s32 0, %v864
        %v866 = vrot.slane %v596, %v865
        %v868 = vadd.f32 %v861, %v866
        %v869 = vsel %vm697, %v868, -inf
        %870 = vmax.xlane.f32.xlu0 %v869
        %v871 = vpop.xlane.xlu0 %870
        %v872 = vsub.f32 %v868, %v871
        %v873 = vmul.f32 %v872, 1.442695
        %v874 = vpow.pop %v873
        %v875 = vsel %vm697, %v874, 0.0
        %876 = vadd.xlane.f32.xlu0 %v875
        %v877 = vpop.xlane.xlu0 %876
        %v878 = vrcp.pop %v877
        %v879 = vmul.f32 %v874, %v878
        %v880 = vmul.f32 %v879, %v687
        %v881 = vsel %vm697, %v880, 0.0
        %882 = vadd.xlane.f32.xlu0 %v881
        %v883 = vpop.xlane.xlu0 %882
        %v884 = vlaneseq
        %v885 = vshrl.u32 %v884, 7
        %v886 = vsub.s32 0, %v885
        %v887 = vrot.slane %v684, %v886
        %v888 = vmul.f32 %v883, %v887
        %889 = vrot.lane.b32.xlu0 %v680, 64
        %v890 = vpop.permute.xlu0 %889
        %v893 = vsel %vm697, %v879, 0
        %895 = vmatprep.subr.mxu0 0.0
        %896 = vmatpush1.msra.mxu0 %v890
        %897 = vmatprep.subr.mxu0 0.0
        %898 = vmatpush1.msra.mxu0 0.0
        %899 = vmatprep.subr.mxu0 0.0
        %900 = vmatpush1.msra.mxu0 0.0
        %901 = vmatprep.subr.mxu0 0.0
        %902 = vmatpush1.msra.mxu0 0.0
        %903 = vmatprep.subr.mxu0 0.0
        %904 = vmatpush1.msra.mxu0 0.0
        %905 = vmatprep.subr.mxu0 0.0
        %906 = vmatpush1.msra.mxu0 0.0
        %907 = vmatprep.subr.mxu0 0.0
        %908 = vmatpush1.msra.mxu0 0.0
        %909 = vmatprep.subr.mxu0 0.0
        %910 = vmatpush1.msra.mxu0 0.0
        %911 = vmatprep.subr.mxu0 0.0
        %912 = vmatpush1.msra.mxu0 0.0
        %913 = vmatprep.subr.mxu0 0.0
        %914 = vmatpush1.msra.mxu0 0.0
        %915 = vmatprep.subr.mxu0 0.0
        %916 = vmatpush1.msra.mxu0 0.0
        %917 = vmatprep.subr.mxu0 0.0
        %918 = vmatpush1.msra.mxu0 0.0
        %919 = vmatprep.subr.mxu0 0.0
        %920 = vmatpush1.msra.mxu0 0.0
        %921 = vmatprep.subr.mxu0 0.0
        %922 = vmatpush1.msra.mxu0 0.0
        %923 = vmatprep.subr.mxu0 0.0
        %924 = vmatpush1.msra.mxu0 0.0
        %925 = vmatprep.subr.mxu0 0.0
        %926 = vmatpush1.msra.mxu0 0.0
        %927 = vmatprep.subr.mxu0 0.0
        %928 = vmatpush1.msra.mxu0 0.0
        %929 = vmatprep.subr.mxu0 0.0
        %930 = vmatpush1.msra.mxu0 0.0
        %931 = vmatprep.subr.mxu0 0.0
        %932 = vmatpush1.msra.mxu0 0.0
        %933 = vmatprep.subr.mxu0 0.0
        %934 = vmatpush1.msra.mxu0 0.0
        %935 = vmatprep.subr.mxu0 0.0
        %936 = vmatpush1.msra.mxu0 0.0
        %937 = vmatprep.subr.mxu0 0.0
        %938 = vmatpush1.msra.mxu0 0.0
        %939 = vmatprep.subr.mxu0 0.0
        %940 = vmatpush1.msra.mxu0 0.0
        %941 = vmatprep.subr.mxu0 0.0
        %942 = vmatpush1.msra.mxu0 0.0
        %943 = vmatprep.subr.mxu0 0.0
        %944 = vmatpush1.msra.mxu0 0.0
        %945 = vmatprep.subr.mxu0 0.0
        %946 = vmatpush1.msra.mxu0 0.0
        %947 = vmatprep.subr.mxu0 0.0
        %948 = vmatpush1.msra.mxu0 0.0
        %949 = vmatprep.subr.mxu0 0.0
        %950 = vmatpush1.msra.mxu0 0.0
        %951 = vmatprep.subr.mxu0 0.0
        %952 = vmatpush1.msra.mxu0 0.0
        %953 = vmatprep.subr.mxu0 0.0
        %954 = vmatpush1.msra.mxu0 0.0
        %955 = vmatprep.subr.mxu0 0.0
        %956 = vmatpush1.msra.mxu0 0.0
        %957 = vmatprep.subr.mxu0 0.0
        %958 = vmatpush1.msra.mxu0 0.0
        %959 = vmatprep.mubr.f32.mxu0 0.0
        %960 = vmatmul.mubr.f32.gmra.mrb[0].mxu0 %v893
        %v961 = vpop.f32.mrb[0].mxu0
        %v962 = vadd.f32 %v888, %v961
        %v963 = vpop.f32.mrb[0].mxu0
        %964 = vdwg.mxu0
        %v965 = vmul.f32 %v879, %v690
        %v966 = vsel %vm697, %v965, 0.0
        %967 = vadd.xlane.f32.xlu0 %v966
        %v968 = vpop.xlane.xlu0 %967
        %v969 = vlaneseq
        %v970 = vshrl.u32 %v969, 7
        %v971 = vsub.s32 1, %v970
        %v972 = vrot.slane %v684, %v971
        %v973 = vmul.f32 %v968, %v972
        %v974 = vadd.f32 %v962, %v973
        %v975 = vmul.f32 %v879, %v693
        %v976 = vsel %vm697, %v975, 0.0
        %977 = vadd.xlane.f32.xlu0 %v976
        %v978 = vpop.xlane.xlu0 %977
        %v979 = vlaneseq
        %v980 = vshrl.u32 %v979, 7
        %v981 = vsub.s32 2, %v980
        %v982 = vrot.slane %v684, %v981
        %v983 = vmul.f32 %v978, %v982
        %v984 = vadd.f32 %v974, %v983
        %v985 = vld [vmem:[%s7] sm:$0xff]
        %986 = vrot.lane.b32.xlu0 %v680, 120
        %v987 = vpop.permute.xlu0 %986
        %988 = vrot.lane.b32.xlu0 %v680, 88
        %v989 = vpop.permute.xlu0 %988
        %v990 = vsel %vm697, %v987, 0
        %v992 = vsel %vm697, %v989, 0
        %994 = vmatprep.subr.mxu0 0.0
        %995 = vmatpush1.xpose.msra.mxu0 %v992
        %996 = vmatprep.subr.mxu0 0.0
        %997 = vmatpush1.xpose.msra.mxu0 0.0
        %998 = vmatprep.subr.mxu0 0.0
        %999 = vmatpush1.xpose.msra.mxu0 0.0
        %1000 = vmatprep.subr.mxu0 0.0
        %1001 = vmatpush1.xpose.msra.mxu0 0.0
        %1002 = vmatprep.subr.mxu0 0.0
        %1003 = vmatpush1.xpose.msra.mxu0 0.0
        %1004 = vmatprep.subr.mxu0 0.0
        %1005 = vmatpush1.xpose.msra.mxu0 0.0
        %1006 = vmatprep.subr.mxu0 0.0
        %1007 = vmatpush1.xpose.msra.mxu0 0.0
        %1008 = vmatprep.subr.mxu0 0.0
        %1009 = vmatpush1.xpose.msra.mxu0 0.0
        %1010 = vmatprep.subr.mxu0 0.0
        %1011 = vmatpush1.xpose.msra.mxu0 0.0
        %1012 = vmatprep.subr.mxu0 0.0
        %1013 = vmatpush1.xpose.msra.mxu0 0.0
        %1014 = vmatprep.subr.mxu0 0.0
        %1015 = vmatpush1.xpose.msra.mxu0 0.0
        %1016 = vmatprep.subr.mxu0 0.0
        %1017 = vmatpush1.xpose.msra.mxu0 0.0
        %1018 = vmatprep.subr.mxu0 0.0
        %1019 = vmatpush1.xpose.msra.mxu0 0.0
        %1020 = vmatprep.subr.mxu0 0.0
        %1021 = vmatpush1.xpose.msra.mxu0 0.0
        %1022 = vmatprep.subr.mxu0 0.0
        %1023 = vmatpush1.xpose.msra.mxu0 0.0
        %1024 = vmatprep.subr.mxu0 0.0
        %1025 = vmatpush1.xpose.msra.mxu0 0.0
        %1026 = vmatprep.subr.mxu0 0.0
        %1027 = vmatpush1.xpose.msra.mxu0 0.0
        %1028 = vmatprep.subr.mxu0 0.0
        %1029 = vmatpush1.xpose.msra.mxu0 0.0
        %1030 = vmatprep.subr.mxu0 0.0
        %1031 = vmatpush1.xpose.msra.mxu0 0.0
        %1032 = vmatprep.subr.mxu0 0.0
        %1033 = vmatpush1.xpose.msra.mxu0 0.0
        %1034 = vmatprep.subr.mxu0 0.0
        %1035 = vmatpush1.xpose.msra.mxu0 0.0
        %1036 = vmatprep.subr.mxu0 0.0
        %1037 = vmatpush1.xpose.msra.mxu0 0.0
        %1038 = vmatprep.subr.mxu0 0.0
        %1039 = vmatpush1.xpose.msra.mxu0 0.0
        %1040 = vmatprep.subr.mxu0 0.0
        %1041 = vmatpush1.xpose.msra.mxu0 0.0
        %1042 = vmatprep.subr.mxu0 0.0
        %1043 = vmatpush1.xpose.msra.mxu0 0.0
        %1044 = vmatprep.subr.mxu0 0.0
        %1045 = vmatpush1.xpose.msra.mxu0 0.0
        %1046 = vmatprep.subr.mxu0 0.0
        %1047 = vmatpush1.xpose.msra.mxu0 0.0
        %1048 = vmatprep.subr.mxu0 0.0
        %1049 = vmatpush1.xpose.msra.mxu0 0.0
        %1050 = vmatprep.subr.mxu0 0.0
        %1051 = vmatpush1.xpose.msra.mxu0 0.0
        %1052 = vmatprep.subr.mxu0 0.0
        %1053 = vmatpush1.xpose.msra.mxu0 0.0
        %1054 = vmatprep.subr.mxu0 0.0
        %1055 = vmatpush1.xpose.msra.mxu0 0.0
        %1056 = vmatprep.subr.mxu0 0.0
        %1057 = vmatpush1.xpose.msra.mxu0 0.0
        %1058 = vmatprep.mubr.f32.mxu0 0.0
        %1059 = vmatmul.mubr.f32.gmra.mrb[0].mxu0 %v990
        %v1060 = vpop.f32.mrb[0].mxu0
        %v1061 = vadd.f32 0.0, %v1060
        %v1062 = vpop.f32.mrb[0].mxu0
        %1063 = vdwg.mxu0
        %v1064 = vmul.f32 %v1061, 0.35355338
        %1065 = vmatprep.subr.mxu0 0.0
        %1066 = vmatpush1.msra.mxu0 %v683
        %1067 = vmatprep.subr.mxu0 0.0
        %1068 = vmatpush1.msra.mxu0 0.0
        %1069 = vmatprep.subr.mxu0 0.0
        %1070 = vmatpush1.msra.mxu0 0.0
        %1071 = vmatprep.subr.mxu0 0.0
        %1072 = vmatpush1.msra.mxu0 0.0
        %1073 = vmatprep.subr.mxu0 0.0
        %1074 = vmatpush1.msra.mxu0 0.0
        %1075 = vmatprep.subr.mxu0 0.0
        %1076 = vmatpush1.msra.mxu0 0.0
        %1077 = vmatprep.subr.mxu0 0.0
        %1078 = vmatpush1.msra.mxu0 0.0
        %1079 = vmatprep.subr.mxu0 0.0
        %1080 = vmatpush1.msra.mxu0 0.0
        %1081 = vmatprep.subr.mxu0 0.0
        %1082 = vmatpush1.msra.mxu0 0.0
        %1083 = vmatprep.subr.mxu0 0.0
        %1084 = vmatpush1.msra.mxu0 0.0
        %1085 = vmatprep.subr.mxu0 0.0
        %1086 = vmatpush1.msra.mxu0 0.0
        %1087 = vmatprep.subr.mxu0 0.0
        %1088 = vmatpush1.msra.mxu0 0.0
        %1089 = vmatprep.subr.mxu0 0.0
        %1090 = vmatpush1.msra.mxu0 0.0
        %1091 = vmatprep.subr.mxu0 0.0
        %1092 = vmatpush1.msra.mxu0 0.0
        %1093 = vmatprep.subr.mxu0 0.0
        %1094 = vmatpush1.msra.mxu0 0.0
        %1095 = vmatprep.subr.mxu0 0.0
        %1096 = vmatpush1.msra.mxu0 0.0
        %1097 = vmatprep.subr.mxu0 0.0
        %1098 = vmatpush1.msra.mxu0 0.0
        %1099 = vmatprep.subr.mxu0 0.0
        %1100 = vmatpush1.msra.mxu0 0.0
        %1101 = vmatprep.subr.mxu0 0.0
        %1102 = vmatpush1.msra.mxu0 0.0
        %1103 = vmatprep.subr.mxu0 0.0
        %1104 = vmatpush1.msra.mxu0 0.0
        %1105 = vmatprep.subr.mxu0 0.0
        %1106 = vmatpush1.msra.mxu0 0.0
        %1107 = vmatprep.subr.mxu0 0.0
        %1108 = vmatpush1.msra.mxu0 0.0
        %1109 = vmatprep.subr.mxu0 0.0
        %1110 = vmatpush1.msra.mxu0 0.0
        %1111 = vmatprep.subr.mxu0 0.0
        %1112 = vmatpush1.msra.mxu0 0.0
        %1113 = vmatprep.subr.mxu0 0.0
        %1114 = vmatpush1.msra.mxu0 0.0
        %1115 = vmatprep.subr.mxu0 0.0
        %1116 = vmatpush1.msra.mxu0 0.0
        %1117 = vmatprep.subr.mxu0 0.0
        %1118 = vmatpush1.msra.mxu0 0.0
        %1119 = vmatprep.subr.mxu0 0.0
        %1120 = vmatpush1.msra.mxu0 0.0
        %1121 = vmatprep.subr.mxu0 0.0
        %1122 = vmatpush1.msra.mxu0 0.0
        %1123 = vmatprep.subr.mxu0 0.0
        %1124 = vmatpush1.msra.mxu0 0.0
        %1125 = vmatprep.subr.mxu0 0.0
        %1126 = vmatpush1.msra.mxu0 0.0
        %1127 = vmatprep.subr.mxu0 0.0
        %1128 = vmatpush1.msra.mxu0 0.0
        %1129 = vmatprep.mubr.f32.mxu0 0.0
        %1130 = vmatmul.mubr.f32.gmra.mrb[0].mxu0 %v990
        %v1131 = vpop.f32.mrb[0].mxu0
        %v1132 = vadd.f32 0.0, %v1131
        %v1133 = vpop.f32.mrb[0].mxu0
        %1134 = vdwg.mxu0
        %1136 = vset.pattern.permute.xlu0 0
        %1137 = vperm.xlu0 %1136, %v1132
        %v1138 = vpop.permute.xlu0 %1137
        %v1140 = vmul.f32 %v1138, %v687
        %1141 = vset.pattern.permute.xlu0 1
        %1142 = vperm.xlu0 %1141, %v1132
        %v1143 = vpop.permute.xlu0 %1142
        %v1145 = vmul.f32 %v1143, %v690
        %v1146 = vadd.f32 %v1140, %v1145
        %1147 = vset.pattern.permute.xlu0 2
        %1148 = vperm.xlu0 %1147, %v1132
        %v1149 = vpop.permute.xlu0 %1148
        %v1151 = vmul.f32 %v1149, %v693
        %v1152 = vadd.f32 %v1146, %v1151
        %v1153 = vadd.f32 %v1064, %v1152
        %v1154 = vadd.f32 %v1153, %v866
        %v1155 = vsel %vm697, %v1154, -inf
        %1156 = vmax.xlane.f32.xlu0 %v1155
        %v1157 = vpop.xlane.xlu0 %1156
        %v1158 = vsub.f32 %v1154, %v1157
        %v1159 = vmul.f32 %v1158, 1.442695
        %v1160 = vpow.pop %v1159
        %v1161 = vsel %vm697, %v1160, 0.0
        %1162 = vadd.xlane.f32.xlu0 %v1161
        %v1163 = vpop.xlane.xlu0 %1162
        %v1164 = vrcp.pop %v1163
        %v1165 = vmul.f32 %v1160, %v1164
        %v1166 = vmul.f32 %v1165, %v687
        %v1167 = vsel %vm697, %v1166, 0.0
        %1168 = vadd.xlane.f32.xlu0 %v1167
        %v1169 = vpop.xlane.xlu0 %1168
        %v1170 = vmul.f32 %v1169, %v887
        %1171 = vrot.lane.b32.xlu0 %v680, 56
        %v1172 = vpop.permute.xlu0 %1171
        %v1175 = vsel %vm697, %v1165, 0
        %1177 = vmatprep.subr.mxu0 0.0
        %1178 = vmatpush1.msra.mxu0 %v1172
        %1179 = vmatprep.subr.mxu0 0.0
        %1180 = vmatpush1.msra.mxu0 0.0
        %1181 = vmatprep.subr.mxu0 0.0
        %1182 = vmatpush1.msra.mxu0 0.0
        %1183 = vmatprep.subr.mxu0 0.0
        %1184 = vmatpush1.msra.mxu0 0.0
        %1185 = vmatprep.subr.mxu0 0.0
        %1186 = vmatpush1.msra.mxu0 0.0
        %1187 = vmatprep.subr.mxu0 0.0
        %1188 = vmatpush1.msra.mxu0 0.0
        %1189 = vmatprep.subr.mxu0 0.0
        %1190 = vmatpush1.msra.mxu0 0.0
        %1191 = vmatprep.subr.mxu0 0.0
        %1192 = vmatpush1.msra.mxu0 0.0
        %1193 = vmatprep.subr.mxu0 0.0
        %1194 = vmatpush1.msra.mxu0 0.0
        %1195 = vmatprep.subr.mxu0 0.0
        %1196 = vmatpush1.msra.mxu0 0.0
        %1197 = vmatprep.subr.mxu0 0.0
        %1198 = vmatpush1.msra.mxu0 0.0
        %1199 = vmatprep.subr.mxu0 0.0
        %1200 = vmatpush1.msra.mxu0 0.0
        %1201 = vmatprep.subr.mxu0 0.0
        %1202 = vmatpush1.msra.mxu0 0.0
        %1203 = vmatprep.subr.mxu0 0.0
        %1204 = vmatpush1.msra.mxu0 0.0
        %1205 = vmatprep.subr.mxu0 0.0
        %1206 = vmatpush1.msra.mxu0 0.0
        %1207 = vmatprep.subr.mxu0 0.0
        %1208 = vmatpush1.msra.mxu0 0.0
        %1209 = vmatprep.subr.mxu0 0.0
        %1210 = vmatpush1.msra.mxu0 0.0
        %1211 = vmatprep.subr.mxu0 0.0
        %1212 = vmatpush1.msra.mxu0 0.0
        %1213 = vmatprep.subr.mxu0 0.0
        %1214 = vmatpush1.msra.mxu0 0.0
        %1215 = vmatprep.subr.mxu0 0.0
        %1216 = vmatpush1.msra.mxu0 0.0
        %1217 = vmatprep.subr.mxu0 0.0
        %1218 = vmatpush1.msra.mxu0 0.0
        %1219 = vmatprep.subr.mxu0 0.0
        %1220 = vmatpush1.msra.mxu0 0.0
        %1221 = vmatprep.subr.mxu0 0.0
        %1222 = vmatpush1.msra.mxu0 0.0
        %1223 = vmatprep.subr.mxu0 0.0
        %1224 = vmatpush1.msra.mxu0 0.0
        %1225 = vmatprep.subr.mxu0 0.0
        %1226 = vmatpush1.msra.mxu0 0.0
        %1227 = vmatprep.subr.mxu0 0.0
        %1228 = vmatpush1.msra.mxu0 0.0
        %1229 = vmatprep.subr.mxu0 0.0
        %1230 = vmatpush1.msra.mxu0 0.0
        %1231 = vmatprep.subr.mxu0 0.0
        %1232 = vmatpush1.msra.mxu0 0.0
        %1233 = vmatprep.subr.mxu0 0.0
        %1234 = vmatpush1.msra.mxu0 0.0
        %1235 = vmatprep.subr.mxu0 0.0
        %1236 = vmatpush1.msra.mxu0 0.0
        %1237 = vmatprep.subr.mxu0 0.0
        %1238 = vmatpush1.msra.mxu0 0.0
        %1239 = vmatprep.subr.mxu0 0.0
        %1240 = vmatpush1.msra.mxu0 0.0
        %1241 = vmatprep.mubr.f32.mxu0 0.0
        %1242 = vmatmul.mubr.f32.gmra.mrb[0].mxu0 %v1175
        %v1243 = vpop.f32.mrb[0].mxu0
        %v1244 = vadd.f32 %v1170, %v1243
        %v1245 = vpop.f32.mrb[0].mxu0
        %1246 = vdwg.mxu0
        %v1247 = vmul.f32 %v1165, %v690
        %v1248 = vsel %vm697, %v1247, 0.0
        %1249 = vadd.xlane.f32.xlu0 %v1248
        %v1250 = vpop.xlane.xlu0 %1249
        %v1251 = vmul.f32 %v1250, %v972
        %v1252 = vadd.f32 %v1244, %v1251
        %v1253 = vmul.f32 %v1165, %v693
        %v1254 = vsel %vm697, %v1253, 0.0
        %1255 = vadd.xlane.f32.xlu0 %v1254
        %v1256 = vpop.xlane.xlu0 %1255
        %v1257 = vmul.f32 %v1256, %v982
        %v1258 = vadd.f32 %v1252, %v1257
        %v1259 = vld [vmem:[%s7 + $0x8] sm:$0xff]
        %v1261 = vsel %vm697, %v1258, 0
        %1263 = vmatprep.subr.mxu0 0.0
        %1264 = vmatpush1.msra.mxu0 %v1259
        %1265 = vmatprep.subr.mxu0 0.0
        %1266 = vmatpush1.msra.mxu0 0.0
        %1267 = vmatprep.subr.mxu0 0.0
        %1268 = vmatpush1.msra.mxu0 0.0
        %1269 = vmatprep.subr.mxu0 0.0
        %1270 = vmatpush1.msra.mxu0 0.0
        %1271 = vmatprep.subr.mxu0 0.0
        %1272 = vmatpush1.msra.mxu0 0.0
        %1273 = vmatprep.subr.mxu0 0.0
        %1274 = vmatpush1.msra.mxu0 0.0
        %1275 = vmatprep.subr.mxu0 0.0
        %1276 = vmatpush1.msra.mxu0 0.0
        %1277 = vmatprep.subr.mxu0 0.0
        %1278 = vmatpush1.msra.mxu0 0.0
        %1279 = vmatprep.subr.mxu0 0.0
        %1280 = vmatpush1.msra.mxu0 0.0
        %1281 = vmatprep.subr.mxu0 0.0
        %1282 = vmatpush1.msra.mxu0 0.0
        %1283 = vmatprep.subr.mxu0 0.0
        %1284 = vmatpush1.msra.mxu0 0.0
        %1285 = vmatprep.subr.mxu0 0.0
        %1286 = vmatpush1.msra.mxu0 0.0
        %1287 = vmatprep.subr.mxu0 0.0
        %1288 = vmatpush1.msra.mxu0 0.0
        %1289 = vmatprep.subr.mxu0 0.0
        %1290 = vmatpush1.msra.mxu0 0.0
        %1291 = vmatprep.subr.mxu0 0.0
        %1292 = vmatpush1.msra.mxu0 0.0
        %1293 = vmatprep.subr.mxu0 0.0
        %1294 = vmatpush1.msra.mxu0 0.0
        %1295 = vmatprep.subr.mxu0 0.0
        %1296 = vmatpush1.msra.mxu0 0.0
        %1297 = vmatprep.subr.mxu0 0.0
        %1298 = vmatpush1.msra.mxu0 0.0
        %1299 = vmatprep.subr.mxu0 0.0
        %1300 = vmatpush1.msra.mxu0 0.0
        %1301 = vmatprep.subr.mxu0 0.0
        %1302 = vmatpush1.msra.mxu0 0.0
        %1303 = vmatprep.subr.mxu0 0.0
        %1304 = vmatpush1.msra.mxu0 0.0
        %1305 = vmatprep.subr.mxu0 0.0
        %1306 = vmatpush1.msra.mxu0 0.0
        %1307 = vmatprep.subr.mxu0 0.0
        %1308 = vmatpush1.msra.mxu0 0.0
        %1309 = vmatprep.subr.mxu0 0.0
        %1310 = vmatpush1.msra.mxu0 0.0
        %1311 = vmatprep.subr.mxu0 0.0
        %1312 = vmatpush1.msra.mxu0 0.0
        %1313 = vmatprep.subr.mxu0 0.0
        %1314 = vmatpush1.msra.mxu0 0.0
        %1315 = vmatprep.subr.mxu0 0.0
        %1316 = vmatpush1.msra.mxu0 0.0
        %1317 = vmatprep.subr.mxu0 0.0
        %1318 = vmatpush1.msra.mxu0 0.0
        %1319 = vmatprep.subr.mxu0 0.0
        %1320 = vmatpush1.msra.mxu0 0.0
        %1321 = vmatprep.subr.mxu0 0.0
        %1322 = vmatpush1.msra.mxu0 0.0
        %1323 = vmatprep.subr.mxu0 0.0
        %1324 = vmatpush1.msra.mxu0 0.0
        %1325 = vmatprep.subr.mxu0 0.0
        %1326 = vmatpush1.msra.mxu0 0.0
        %1327 = vmatprep.mubr.f32.mxu0 0.0
        %1328 = vmatmul.mubr.f32.gmra.mrb[0].mxu0 %v1261
        %v1329 = vpop.f32.mrb[0].mxu0
        %v1330 = vadd.f32 0.0, %v1329
        %v1331 = vpop.f32.mrb[0].mxu0
        %1332 = vdwg.mxu0
        %v1334 = vsel %vm697, %v984, 0
        %1336 = vmatprep.subr.mxu0 0.0
        %1337 = vmatpush1.msra.mxu0 %v985
        %1338 = vmatprep.subr.mxu0 0.0
        %1339 = vmatpush1.msra.mxu0 0.0
        %1340 = vmatprep.subr.mxu0 0.0
        %1341 = vmatpush1.msra.mxu0 0.0
        %1342 = vmatprep.subr.mxu0 0.0
        %1343 = vmatpush1.msra.mxu0 0.0
        %1344 = vmatprep.subr.mxu0 0.0
        %1345 = vmatpush1.msra.mxu0 0.0
        %1346 = vmatprep.subr.mxu0 0.0
        %1347 = vmatpush1.msra.mxu0 0.0
        %1348 = vmatprep.subr.mxu0 0.0
        %1349 = vmatpush1.msra.mxu0 0.0
        %1350 = vmatprep.subr.mxu0 0.0
        %1351 = vmatpush1.msra.mxu0 0.0
        %1352 = vmatprep.subr.mxu0 0.0
        %1353 = vmatpush1.msra.mxu0 0.0
        %1354 = vmatprep.subr.mxu0 0.0
        %1355 = vmatpush1.msra.mxu0 0.0
        %1356 = vmatprep.subr.mxu0 0.0
        %1357 = vmatpush1.msra.mxu0 0.0
        %1358 = vmatprep.subr.mxu0 0.0
        %1359 = vmatpush1.msra.mxu0 0.0
        %1360 = vmatprep.subr.mxu0 0.0
        %1361 = vmatpush1.msra.mxu0 0.0
        %1362 = vmatprep.subr.mxu0 0.0
        %1363 = vmatpush1.msra.mxu0 0.0
        %1364 = vmatprep.subr.mxu0 0.0
        %1365 = vmatpush1.msra.mxu0 0.0
        %1366 = vmatprep.subr.mxu0 0.0
        %1367 = vmatpush1.msra.mxu0 0.0
        %1368 = vmatprep.subr.mxu0 0.0
        %1369 = vmatpush1.msra.mxu0 0.0
        %1370 = vmatprep.subr.mxu0 0.0
        %1371 = vmatpush1.msra.mxu0 0.0
        %1372 = vmatprep.subr.mxu0 0.0
        %1373 = vmatpush1.msra.mxu0 0.0
        %1374 = vmatprep.subr.mxu0 0.0
        %1375 = vmatpush1.msra.mxu0 0.0
        %1376 = vmatprep.subr.mxu0 0.0
        %1377 = vmatpush1.msra.mxu0 0.0
        %1378 = vmatprep.subr.mxu0 0.0
        %1379 = vmatpush1.msra.mxu0 0.0
        %1380 = vmatprep.subr.mxu0 0.0
        %1381 = vmatpush1.msra.mxu0 0.0
        %1382 = vmatprep.subr.mxu0 0.0
        %1383 = vmatpush1.msra.mxu0 0.0
        %1384 = vmatprep.subr.mxu0 0.0
        %1385 = vmatpush1.msra.mxu0 0.0
        %1386 = vmatprep.subr.mxu0 0.0
        %1387 = vmatpush1.msra.mxu0 0.0
        %1388 = vmatprep.subr.mxu0 0.0
        %1389 = vmatpush1.msra.mxu0 0.0
        %1390 = vmatprep.subr.mxu0 0.0
        %1391 = vmatpush1.msra.mxu0 0.0
        %1392 = vmatprep.subr.mxu0 0.0
        %1393 = vmatpush1.msra.mxu0 0.0
        %1394 = vmatprep.subr.mxu0 0.0
        %1395 = vmatpush1.msra.mxu0 0.0
        %1396 = vmatprep.subr.mxu0 0.0
        %1397 = vmatpush1.msra.mxu0 0.0
        %1398 = vmatprep.subr.mxu0 0.0
        %1399 = vmatpush1.msra.mxu0 0.0
        %1400 = vmatprep.mubr.f32.mxu0 0.0
        %1401 = vmatmul.mubr.f32.gmra.mrb[0].mxu0 %v1334
        %v1402 = vpop.f32.mrb[0].mxu0
        %v1403 = vadd.f32 %v1330, %v1402
        %v1404 = vpop.f32.mrb[0].mxu0
        %1405 = vdwg.mxu0
        %1406 = vrot.lane.b32.xlu0 %v680, 112
        %v1407 = vpop.permute.xlu0 %1406
        %1408 = vrot.lane.b32.xlu0 %v680, 80
        %v1409 = vpop.permute.xlu0 %1408
        %v1410 = vsel %vm697, %v1407, 0
        %v1412 = vsel %vm697, %v1409, 0
        %1414 = vmatprep.subr.mxu0 0.0
        %1415 = vmatpush1.xpose.msra.mxu0 %v1412
        %1416 = vmatprep.subr.mxu0 0.0
        %1417 = vmatpush1.xpose.msra.mxu0 0.0
        %1418 = vmatprep.subr.mxu0 0.0
        %1419 = vmatpush1.xpose.msra.mxu0 0.0
        %1420 = vmatprep.subr.mxu0 0.0
        %1421 = vmatpush1.xpose.msra.mxu0 0.0
        %1422 = vmatprep.subr.mxu0 0.0
        %1423 = vmatpush1.xpose.msra.mxu0 0.0
        %1424 = vmatprep.subr.mxu0 0.0
        %1425 = vmatpush1.xpose.msra.mxu0 0.0
        %1426 = vmatprep.subr.mxu0 0.0
        %1427 = vmatpush1.xpose.msra.mxu0 0.0
        %1428 = vmatprep.subr.mxu0 0.0
        %1429 = vmatpush1.xpose.msra.mxu0 0.0
        %1430 = vmatprep.subr.mxu0 0.0
        %1431 = vmatpush1.xpose.msra.mxu0 0.0
        %1432 = vmatprep.subr.mxu0 0.0
        %1433 = vmatpush1.xpose.msra.mxu0 0.0
        %1434 = vmatprep.subr.mxu0 0.0
        %1435 = vmatpush1.xpose.msra.mxu0 0.0
        %1436 = vmatprep.subr.mxu0 0.0
        %1437 = vmatpush1.xpose.msra.mxu0 0.0
        %1438 = vmatprep.subr.mxu0 0.0
        %1439 = vmatpush1.xpose.msra.mxu0 0.0
        %1440 = vmatprep.subr.mxu0 0.0
        %1441 = vmatpush1.xpose.msra.mxu0 0.0
        %1442 = vmatprep.subr.mxu0 0.0
        %1443 = vmatpush1.xpose.msra.mxu0 0.0
        %1444 = vmatprep.subr.mxu0 0.0
        %1445 = vmatpush1.xpose.msra.mxu0 0.0
        %1446 = vmatprep.subr.mxu0 0.0
        %1447 = vmatpush1.xpose.msra.mxu0 0.0
        %1448 = vmatprep.subr.mxu0 0.0
        %1449 = vmatpush1.xpose.msra.mxu0 0.0
        %1450 = vmatprep.subr.mxu0 0.0
        %1451 = vmatpush1.xpose.msra.mxu0 0.0
        %1452 = vmatprep.subr.mxu0 0.0
        %1453 = vmatpush1.xpose.msra.mxu0 0.0
        %1454 = vmatprep.subr.mxu0 0.0
        %1455 = vmatpush1.xpose.msra.mxu0 0.0
        %1456 = vmatprep.subr.mxu0 0.0
        %1457 = vmatpush1.xpose.msra.mxu0 0.0
        %1458 = vmatprep.subr.mxu0 0.0
        %1459 = vmatpush1.xpose.msra.mxu0 0.0
        %1460 = vmatprep.subr.mxu0 0.0
        %1461 = vmatpush1.xpose.msra.mxu0 0.0
        %1462 = vmatprep.subr.mxu0 0.0
        %1463 = vmatpush1.xpose.msra.mxu0 0.0
        %1464 = vmatprep.subr.mxu0 0.0
        %1465 = vmatpush1.xpose.msra.mxu0 0.0
        %1466 = vmatprep.subr.mxu0 0.0
        %1467 = vmatpush1.xpose.msra.mxu0 0.0
        %1468 = vmatprep.subr.mxu0 0.0
        %1469 = vmatpush1.xpose.msra.mxu0 0.0
        %1470 = vmatprep.subr.mxu0 0.0
        %1471 = vmatpush1.xpose.msra.mxu0 0.0
        %1472 = vmatprep.subr.mxu0 0.0
        %1473 = vmatpush1.xpose.msra.mxu0 0.0
        %1474 = vmatprep.subr.mxu0 0.0
        %1475 = vmatpush1.xpose.msra.mxu0 0.0
        %1476 = vmatprep.subr.mxu0 0.0
        %1477 = vmatpush1.xpose.msra.mxu0 0.0
        %1478 = vmatprep.mubr.f32.mxu0 0.0
        %1479 = vmatmul.mubr.f32.gmra.mrb[0].mxu0 %v1410
        %v1480 = vpop.f32.mrb[0].mxu0
        %v1481 = vadd.f32 0.0, %v1480
        %v1482 = vpop.f32.mrb[0].mxu0
        %1483 = vdwg.mxu0
        %v1484 = vmul.f32 %v1481, 0.35355338
        %1485 = vmatprep.subr.mxu0 0.0
        %1486 = vmatpush1.msra.mxu0 %v683
        %1487 = vmatprep.subr.mxu0 0.0
        %1488 = vmatpush1.msra.mxu0 0.0
        %1489 = vmatprep.subr.mxu0 0.0
        %1490 = vmatpush1.msra.mxu0 0.0
        %1491 = vmatprep.subr.mxu0 0.0
        %1492 = vmatpush1.msra.mxu0 0.0
        %1493 = vmatprep.subr.mxu0 0.0
        %1494 = vmatpush1.msra.mxu0 0.0
        %1495 = vmatprep.subr.mxu0 0.0
        %1496 = vmatpush1.msra.mxu0 0.0
        %1497 = vmatprep.subr.mxu0 0.0
        %1498 = vmatpush1.msra.mxu0 0.0
        %1499 = vmatprep.subr.mxu0 0.0
        %1500 = vmatpush1.msra.mxu0 0.0
        %1501 = vmatprep.subr.mxu0 0.0
        %1502 = vmatpush1.msra.mxu0 0.0
        %1503 = vmatprep.subr.mxu0 0.0
        %1504 = vmatpush1.msra.mxu0 0.0
        %1505 = vmatprep.subr.mxu0 0.0
        %1506 = vmatpush1.msra.mxu0 0.0
        %1507 = vmatprep.subr.mxu0 0.0
        %1508 = vmatpush1.msra.mxu0 0.0
        %1509 = vmatprep.subr.mxu0 0.0
        %1510 = vmatpush1.msra.mxu0 0.0
        %1511 = vmatprep.subr.mxu0 0.0
        %1512 = vmatpush1.msra.mxu0 0.0
        %1513 = vmatprep.subr.mxu0 0.0
        %1514 = vmatpush1.msra.mxu0 0.0
        %1515 = vmatprep.subr.mxu0 0.0
        %1516 = vmatpush1.msra.mxu0 0.0
        %1517 = vmatprep.subr.mxu0 0.0
        %1518 = vmatpush1.msra.mxu0 0.0
        %1519 = vmatprep.subr.mxu0 0.0
        %1520 = vmatpush1.msra.mxu0 0.0
        %1521 = vmatprep.subr.mxu0 0.0
        %1522 = vmatpush1.msra.mxu0 0.0
        %1523 = vmatprep.subr.mxu0 0.0
        %1524 = vmatpush1.msra.mxu0 0.0
        %1525 = vmatprep.subr.mxu0 0.0
        %1526 = vmatpush1.msra.mxu0 0.0
        %1527 = vmatprep.subr.mxu0 0.0
        %1528 = vmatpush1.msra.mxu0 0.0
        %1529 = vmatprep.subr.mxu0 0.0
        %1530 = vmatpush1.msra.mxu0 0.0
        %1531 = vmatprep.subr.mxu0 0.0
        %1532 = vmatpush1.msra.mxu0 0.0
        %1533 = vmatprep.subr.mxu0 0.0
        %1534 = vmatpush1.msra.mxu0 0.0
        %1535 = vmatprep.subr.mxu0 0.0
        %1536 = vmatpush1.msra.mxu0 0.0
        %1537 = vmatprep.subr.mxu0 0.0
        %1538 = vmatpush1.msra.mxu0 0.0
        %1539 = vmatprep.subr.mxu0 0.0
        %1540 = vmatpush1.msra.mxu0 0.0
        %1541 = vmatprep.subr.mxu0 0.0
        %1542 = vmatpush1.msra.mxu0 0.0
        %1543 = vmatprep.subr.mxu0 0.0
        %1544 = vmatpush1.msra.mxu0 0.0
        %1545 = vmatprep.subr.mxu0 0.0
        %1546 = vmatpush1.msra.mxu0 0.0
        %1547 = vmatprep.subr.mxu0 0.0
        %1548 = vmatpush1.msra.mxu0 0.0
        %1549 = vmatprep.mubr.f32.mxu0 0.0
        %1550 = vmatmul.mubr.f32.gmra.mrb[0].mxu0 %v1410
        %v1551 = vpop.f32.mrb[0].mxu0
        %v1552 = vadd.f32 0.0, %v1551
        %v1553 = vpop.f32.mrb[0].mxu0
        %1554 = vdwg.mxu0
        %1556 = vset.pattern.permute.xlu0 0
        %1557 = vperm.xlu0 %1556, %v1552
        %v1558 = vpop.permute.xlu0 %1557
        %v1560 = vmul.f32 %v1558, %v687
        %1561 = vset.pattern.permute.xlu0 1
        %1562 = vperm.xlu0 %1561, %v1552
        %v1563 = vpop.permute.xlu0 %1562
        %v1565 = vmul.f32 %v1563, %v690
        %v1566 = vadd.f32 %v1560, %v1565
        %1567 = vset.pattern.permute.xlu0 2
        %1568 = vperm.xlu0 %1567, %v1552
        %v1569 = vpop.permute.xlu0 %1568
        %v1571 = vmul.f32 %v1569, %v693
        %v1572 = vadd.f32 %v1566, %v1571
        %v1573 = vadd.f32 %v1484, %v1572
        %v1574 = vadd.f32 %v1573, %v866
        %v1575 = vsel %vm697, %v1574, -inf
        %1576 = vmax.xlane.f32.xlu0 %v1575
        %v1577 = vpop.xlane.xlu0 %1576
        %v1578 = vsub.f32 %v1574, %v1577
        %v1579 = vmul.f32 %v1578, 1.442695
        %v1580 = vpow.pop %v1579
        %v1581 = vsel %vm697, %v1580, 0.0
        %1582 = vadd.xlane.f32.xlu0 %v1581
        %v1583 = vpop.xlane.xlu0 %1582
        %v1584 = vrcp.pop %v1583
        %v1585 = vmul.f32 %v1580, %v1584
        %v1586 = vmul.f32 %v1585, %v687
        %v1587 = vsel %vm697, %v1586, 0.0
        %1588 = vadd.xlane.f32.xlu0 %v1587
        %v1589 = vpop.xlane.xlu0 %1588
        %v1590 = vmul.f32 %v1589, %v887
        %1591 = vrot.lane.b32.xlu0 %v680, 48
        %v1592 = vpop.permute.xlu0 %1591
        %v1595 = vsel %vm697, %v1585, 0
        %1597 = vmatprep.subr.mxu0 0.0
        %1598 = vmatpush1.msra.mxu0 %v1592
        %1599 = vmatprep.subr.mxu0 0.0
        %1600 = vmatpush1.msra.mxu0 0.0
        %1601 = vmatprep.subr.mxu0 0.0
        %1602 = vmatpush1.msra.mxu0 0.0
        %1603 = vmatprep.subr.mxu0 0.0
        %1604 = vmatpush1.msra.mxu0 0.0
        %1605 = vmatprep.subr.mxu0 0.0
        %1606 = vmatpush1.msra.mxu0 0.0
        %1607 = vmatprep.subr.mxu0 0.0
        %1608 = vmatpush1.msra.mxu0 0.0
        %1609 = vmatprep.subr.mxu0 0.0
        %1610 = vmatpush1.msra.mxu0 0.0
        %1611 = vmatprep.subr.mxu0 0.0
        %1612 = vmatpush1.msra.mxu0 0.0
        %1613 = vmatprep.subr.mxu0 0.0
        %1614 = vmatpush1.msra.mxu0 0.0
        %1615 = vmatprep.subr.mxu0 0.0
        %1616 = vmatpush1.msra.mxu0 0.0
        %1617 = vmatprep.subr.mxu0 0.0
        %1618 = vmatpush1.msra.mxu0 0.0
        %1619 = vmatprep.subr.mxu0 0.0
        %1620 = vmatpush1.msra.mxu0 0.0
        %1621 = vmatprep.subr.mxu0 0.0
        %1622 = vmatpush1.msra.mxu0 0.0
        %1623 = vmatprep.subr.mxu0 0.0
        %1624 = vmatpush1.msra.mxu0 0.0
        %1625 = vmatprep.subr.mxu0 0.0
        %1626 = vmatpush1.msra.mxu0 0.0
        %1627 = vmatprep.subr.mxu0 0.0
        %1628 = vmatpush1.msra.mxu0 0.0
        %1629 = vmatprep.subr.mxu0 0.0
        %1630 = vmatpush1.msra.mxu0 0.0
        %1631 = vmatprep.subr.mxu0 0.0
        %1632 = vmatpush1.msra.mxu0 0.0
        %1633 = vmatprep.subr.mxu0 0.0
        %1634 = vmatpush1.msra.mxu0 0.0
        %1635 = vmatprep.subr.mxu0 0.0
        %1636 = vmatpush1.msra.mxu0 0.0
        %1637 = vmatprep.subr.mxu0 0.0
        %1638 = vmatpush1.msra.mxu0 0.0
        %1639 = vmatprep.subr.mxu0 0.0
        %1640 = vmatpush1.msra.mxu0 0.0
        %1641 = vmatprep.subr.mxu0 0.0
        %1642 = vmatpush1.msra.mxu0 0.0
        %1643 = vmatprep.subr.mxu0 0.0
        %1644 = vmatpush1.msra.mxu0 0.0
        %1645 = vmatprep.subr.mxu0 0.0
        %1646 = vmatpush1.msra.mxu0 0.0
        %1647 = vmatprep.subr.mxu0 0.0
        %1648 = vmatpush1.msra.mxu0 0.0
        %1649 = vmatprep.subr.mxu0 0.0
        %1650 = vmatpush1.msra.mxu0 0.0
        %1651 = vmatprep.subr.mxu0 0.0
        %1652 = vmatpush1.msra.mxu0 0.0
        %1653 = vmatprep.subr.mxu0 0.0
        %1654 = vmatpush1.msra.mxu0 0.0
        %1655 = vmatprep.subr.mxu0 0.0
        %1656 = vmatpush1.msra.mxu0 0.0
        %1657 = vmatprep.subr.mxu0 0.0
        %1658 = vmatpush1.msra.mxu0 0.0
        %1659 = vmatprep.subr.mxu0 0.0
        %1660 = vmatpush1.msra.mxu0 0.0
        %1661 = vmatprep.mubr.f32.mxu0 0.0
        %1662 = vmatmul.mubr.f32.gmra.mrb[0].mxu0 %v1595
        %v1663 = vpop.f32.mrb[0].mxu0
        %v1664 = vadd.f32 %v1590, %v1663
        %v1665 = vpop.f32.mrb[0].mxu0
        %1666 = vdwg.mxu0
        %v1667 = vmul.f32 %v1585, %v690
        %v1668 = vsel %vm697, %v1667, 0.0
        %1669 = vadd.xlane.f32.xlu0 %v1668
        %v1670 = vpop.xlane.xlu0 %1669
        %v1671 = vmul.f32 %v1670, %v972
        %v1672 = vadd.f32 %v1664, %v1671
        %v1673 = vmul.f32 %v1585, %v693
        %v1674 = vsel %vm697, %v1673, 0.0
        %1675 = vadd.xlane.f32.xlu0 %v1674
        %v1676 = vpop.xlane.xlu0 %1675
        %v1677 = vmul.f32 %v1676, %v982
        %v1678 = vadd.f32 %v1672, %v1677
        %v1679 = vld [vmem:[%s7 + $0x10] sm:$0xff]
        %v1681 = vsel %vm697, %v1678, 0
        %1683 = vmatprep.subr.mxu0 0.0
        %1684 = vmatpush1.msra.mxu0 %v1679
        %1685 = vmatprep.subr.mxu0 0.0
        %1686 = vmatpush1.msra.mxu0 0.0
        %1687 = vmatprep.subr.mxu0 0.0
        %1688 = vmatpush1.msra.mxu0 0.0
        %1689 = vmatprep.subr.mxu0 0.0
        %1690 = vmatpush1.msra.mxu0 0.0
        %1691 = vmatprep.subr.mxu0 0.0
        %1692 = vmatpush1.msra.mxu0 0.0
        %1693 = vmatprep.subr.mxu0 0.0
        %1694 = vmatpush1.msra.mxu0 0.0
        %1695 = vmatprep.subr.mxu0 0.0
        %1696 = vmatpush1.msra.mxu0 0.0
        %1697 = vmatprep.subr.mxu0 0.0
        %1698 = vmatpush1.msra.mxu0 0.0
        %1699 = vmatprep.subr.mxu0 0.0
        %1700 = vmatpush1.msra.mxu0 0.0
        %1701 = vmatprep.subr.mxu0 0.0
        %1702 = vmatpush1.msra.mxu0 0.0
        %1703 = vmatprep.subr.mxu0 0.0
        %1704 = vmatpush1.msra.mxu0 0.0
        %1705 = vmatprep.subr.mxu0 0.0
        %1706 = vmatpush1.msra.mxu0 0.0
        %1707 = vmatprep.subr.mxu0 0.0
        %1708 = vmatpush1.msra.mxu0 0.0
        %1709 = vmatprep.subr.mxu0 0.0
        %1710 = vmatpush1.msra.mxu0 0.0
        %1711 = vmatprep.subr.mxu0 0.0
        %1712 = vmatpush1.msra.mxu0 0.0
        %1713 = vmatprep.subr.mxu0 0.0
        %1714 = vmatpush1.msra.mxu0 0.0
        %1715 = vmatprep.subr.mxu0 0.0
        %1716 = vmatpush1.msra.mxu0 0.0
        %1717 = vmatprep.subr.mxu0 0.0
        %1718 = vmatpush1.msra.mxu0 0.0
        %1719 = vmatprep.subr.mxu0 0.0
        %1720 = vmatpush1.msra.mxu0 0.0
        %1721 = vmatprep.subr.mxu0 0.0
        %1722 = vmatpush1.msra.mxu0 0.0
        %1723 = vmatprep.subr.mxu0 0.0
        %1724 = vmatpush1.msra.mxu0 0.0
        %1725 = vmatprep.subr.mxu0 0.0
        %1726 = vmatpush1.msra.mxu0 0.0
        %1727 = vmatprep.subr.mxu0 0.0
        %1728 = vmatpush1.msra.mxu0 0.0
        %1729 = vmatprep.subr.mxu0 0.0
        %1730 = vmatpush1.msra.mxu0 0.0
        %1731 = vmatprep.subr.mxu0 0.0
        %1732 = vmatpush1.msra.mxu0 0.0
        %1733 = vmatprep.subr.mxu0 0.0
        %1734 = vmatpush1.msra.mxu0 0.0
        %1735 = vmatprep.subr.mxu0 0.0
        %1736 = vmatpush1.msra.mxu0 0.0
        %1737 = vmatprep.subr.mxu0 0.0
        %1738 = vmatpush1.msra.mxu0 0.0
        %1739 = vmatprep.subr.mxu0 0.0
        %1740 = vmatpush1.msra.mxu0 0.0
        %1741 = vmatprep.subr.mxu0 0.0
        %1742 = vmatpush1.msra.mxu0 0.0
        %1743 = vmatprep.subr.mxu0 0.0
        %1744 = vmatpush1.msra.mxu0 0.0
        %1745 = vmatprep.subr.mxu0 0.0
        %1746 = vmatpush1.msra.mxu0 0.0
        %1747 = vmatprep.mubr.f32.mxu0 0.0
        %1748 = vmatmul.mubr.f32.gmra.mrb[0].mxu0 %v1681
        %v1749 = vpop.f32.mrb[0].mxu0
        %v1750 = vadd.f32 0.0, %v1749
        %v1751 = vpop.f32.mrb[0].mxu0
        %1752 = vdwg.mxu0
        %v1753 = vadd.f32 %v1403, %v1750
        %1754 = vrot.lane.b32.xlu0 %v680, 104
        %v1755 = vpop.permute.xlu0 %1754
        %1756 = vrot.lane.b32.xlu0 %v680, 72
        %v1757 = vpop.permute.xlu0 %1756
        %v1758 = vsel %vm697, %v1755, 0
        %v1760 = vsel %vm697, %v1757, 0
        %1762 = vmatprep.subr.mxu0 0.0
        %1763 = vmatpush1.xpose.msra.mxu0 %v1760
        %1764 = vmatprep.subr.mxu0 0.0
        %1765 = vmatpush1.xpose.msra.mxu0 0.0
        %1766 = vmatprep.subr.mxu0 0.0
        %1767 = vmatpush1.xpose.msra.mxu0 0.0
        %1768 = vmatprep.subr.mxu0 0.0
        %1769 = vmatpush1.xpose.msra.mxu0 0.0
        %1770 = vmatprep.subr.mxu0 0.0
        %1771 = vmatpush1.xpose.msra.mxu0 0.0
        %1772 = vmatprep.subr.mxu0 0.0
        %1773 = vmatpush1.xpose.msra.mxu0 0.0
        %1774 = vmatprep.subr.mxu0 0.0
        %1775 = vmatpush1.xpose.msra.mxu0 0.0
        %1776 = vmatprep.subr.mxu0 0.0
        %1777 = vmatpush1.xpose.msra.mxu0 0.0
        %1778 = vmatprep.subr.mxu0 0.0
        %1779 = vmatpush1.xpose.msra.mxu0 0.0
        %1780 = vmatprep.subr.mxu0 0.0
        %1781 = vmatpush1.xpose.msra.mxu0 0.0
        %1782 = vmatprep.subr.mxu0 0.0
        %1783 = vmatpush1.xpose.msra.mxu0 0.0
        %1784 = vmatprep.subr.mxu0 0.0
        %1785 = vmatpush1.xpose.msra.mxu0 0.0
        %1786 = vmatprep.subr.mxu0 0.0
        %1787 = vmatpush1.xpose.msra.mxu0 0.0
        %1788 = vmatprep.subr.mxu0 0.0
        %1789 = vmatpush1.xpose.msra.mxu0 0.0
        %1790 = vmatprep.subr.mxu0 0.0
        %1791 = vmatpush1.xpose.msra.mxu0 0.0
        %1792 = vmatprep.subr.mxu0 0.0
        %1793 = vmatpush1.xpose.msra.mxu0 0.0
        %1794 = vmatprep.subr.mxu0 0.0
        %1795 = vmatpush1.xpose.msra.mxu0 0.0
        %1796 = vmatprep.subr.mxu0 0.0
        %1797 = vmatpush1.xpose.msra.mxu0 0.0
        %1798 = vmatprep.subr.mxu0 0.0
        %1799 = vmatpush1.xpose.msra.mxu0 0.0
        %1800 = vmatprep.subr.mxu0 0.0
        %1801 = vmatpush1.xpose.msra.mxu0 0.0
        %1802 = vmatprep.subr.mxu0 0.0
        %1803 = vmatpush1.xpose.msra.mxu0 0.0
        %1804 = vmatprep.subr.mxu0 0.0
        %1805 = vmatpush1.xpose.msra.mxu0 0.0
        %1806 = vmatprep.subr.mxu0 0.0
        %1807 = vmatpush1.xpose.msra.mxu0 0.0
        %1808 = vmatprep.subr.mxu0 0.0
        %1809 = vmatpush1.xpose.msra.mxu0 0.0
        %1810 = vmatprep.subr.mxu0 0.0
        %1811 = vmatpush1.xpose.msra.mxu0 0.0
        %1812 = vmatprep.subr.mxu0 0.0
        %1813 = vmatpush1.xpose.msra.mxu0 0.0
        %1814 = vmatprep.subr.mxu0 0.0
        %1815 = vmatpush1.xpose.msra.mxu0 0.0
        %1816 = vmatprep.subr.mxu0 0.0
        %1817 = vmatpush1.xpose.msra.mxu0 0.0
        %1818 = vmatprep.subr.mxu0 0.0
        %1819 = vmatpush1.xpose.msra.mxu0 0.0
        %1820 = vmatprep.subr.mxu0 0.0
        %1821 = vmatpush1.xpose.msra.mxu0 0.0
        %1822 = vmatprep.subr.mxu0 0.0
        %1823 = vmatpush1.xpose.msra.mxu0 0.0
        %1824 = vmatprep.subr.mxu0 0.0
        %1825 = vmatpush1.xpose.msra.mxu0 0.0
        %1826 = vmatprep.mubr.f32.mxu0 0.0
        %1827 = vmatmul.mubr.f32.gmra.mrb[0].mxu0 %v1758
        %v1828 = vpop.f32.mrb[0].mxu0
        %v1829 = vadd.f32 0.0, %v1828
        %v1830 = vpop.f32.mrb[0].mxu0
        %1831 = vdwg.mxu0
        %v1832 = vmul.f32 %v1829, 0.35355338
        %1833 = vmatprep.subr.mxu0 0.0
        %1834 = vmatpush1.msra.mxu0 %v683
        %1835 = vmatprep.subr.mxu0 0.0
        %1836 = vmatpush1.msra.mxu0 0.0
        %1837 = vmatprep.subr.mxu0 0.0
        %1838 = vmatpush1.msra.mxu0 0.0
        %1839 = vmatprep.subr.mxu0 0.0
        %1840 = vmatpush1.msra.mxu0 0.0
        %1841 = vmatprep.subr.mxu0 0.0
        %1842 = vmatpush1.msra.mxu0 0.0
        %1843 = vmatprep.subr.mxu0 0.0
        %1844 = vmatpush1.msra.mxu0 0.0
        %1845 = vmatprep.subr.mxu0 0.0
        %1846 = vmatpush1.msra.mxu0 0.0
        %1847 = vmatprep.subr.mxu0 0.0
        %1848 = vmatpush1.msra.mxu0 0.0
        %1849 = vmatprep.subr.mxu0 0.0
        %1850 = vmatpush1.msra.mxu0 0.0
        %1851 = vmatprep.subr.mxu0 0.0
        %1852 = vmatpush1.msra.mxu0 0.0
        %1853 = vmatprep.subr.mxu0 0.0
        %1854 = vmatpush1.msra.mxu0 0.0
        %1855 = vmatprep.subr.mxu0 0.0
        %1856 = vmatpush1.msra.mxu0 0.0
        %1857 = vmatprep.subr.mxu0 0.0
        %1858 = vmatpush1.msra.mxu0 0.0
        %1859 = vmatprep.subr.mxu0 0.0
        %1860 = vmatpush1.msra.mxu0 0.0
        %1861 = vmatprep.subr.mxu0 0.0
        %1862 = vmatpush1.msra.mxu0 0.0
        %1863 = vmatprep.subr.mxu0 0.0
        %1864 = vmatpush1.msra.mxu0 0.0
        %1865 = vmatprep.subr.mxu0 0.0
        %1866 = vmatpush1.msra.mxu0 0.0
        %1867 = vmatprep.subr.mxu0 0.0
        %1868 = vmatpush1.msra.mxu0 0.0
        %1869 = vmatprep.subr.mxu0 0.0
        %1870 = vmatpush1.msra.mxu0 0.0
        %1871 = vmatprep.subr.mxu0 0.0
        %1872 = vmatpush1.msra.mxu0 0.0
        %1873 = vmatprep.subr.mxu0 0.0
        %1874 = vmatpush1.msra.mxu0 0.0
        %1875 = vmatprep.subr.mxu0 0.0
        %1876 = vmatpush1.msra.mxu0 0.0
        %1877 = vmatprep.subr.mxu0 0.0
        %1878 = vmatpush1.msra.mxu0 0.0
        %1879 = vmatprep.subr.mxu0 0.0
        %1880 = vmatpush1.msra.mxu0 0.0
        %1881 = vmatprep.subr.mxu0 0.0
        %1882 = vmatpush1.msra.mxu0 0.0
        %1883 = vmatprep.subr.mxu0 0.0
        %1884 = vmatpush1.msra.mxu0 0.0
        %1885 = vmatprep.subr.mxu0 0.0
        %1886 = vmatpush1.msra.mxu0 0.0
        %1887 = vmatprep.subr.mxu0 0.0
        %1888 = vmatpush1.msra.mxu0 0.0
        %1889 = vmatprep.subr.mxu0 0.0
        %1890 = vmatpush1.msra.mxu0 0.0
        %1891 = vmatprep.subr.mxu0 0.0
        %1892 = vmatpush1.msra.mxu0 0.0
        %1893 = vmatprep.subr.mxu0 0.0
        %1894 = vmatpush1.msra.mxu0 0.0
        %1895 = vmatprep.subr.mxu0 0.0
        %1896 = vmatpush1.msra.mxu0 0.0
        %1897 = vmatprep.mubr.f32.mxu0 0.0
        %1898 = vmatmul.mubr.f32.gmra.mrb[0].mxu0 %v1758
        %v1899 = vpop.f32.mrb[0].mxu0
        %v1900 = vadd.f32 0.0, %v1899
        %v1901 = vpop.f32.mrb[0].mxu0
        %1902 = vdwg.mxu0
        %1904 = vset.pattern.permute.xlu0 0
        %1905 = vperm.xlu0 %1904, %v1900
        %v1906 = vpop.permute.xlu0 %1905
        %v1908 = vmul.f32 %v1906, %v687
        %1909 = vset.pattern.permute.xlu0 1
        %1910 = vperm.xlu0 %1909, %v1900
        %v1911 = vpop.permute.xlu0 %1910
        %v1913 = vmul.f32 %v1911, %v690
        %v1914 = vadd.f32 %v1908, %v1913
        %1915 = vset.pattern.permute.xlu0 2
        %1916 = vperm.xlu0 %1915, %v1900
        %v1917 = vpop.permute.xlu0 %1916
        %v1919 = vmul.f32 %v1917, %v693
        %v1920 = vadd.f32 %v1914, %v1919
        %v1921 = vadd.f32 %v1832, %v1920
        %v1922 = vadd.f32 %v1921, %v866
        %v1923 = vsel %vm697, %v1922, -inf
        %1924 = vmax.xlane.f32.xlu0 %v1923
        %v1925 = vpop.xlane.xlu0 %1924
        %v1926 = vsub.f32 %v1922, %v1925
        %v1927 = vmul.f32 %v1926, 1.442695
        %v1928 = vpow.pop %v1927
        %v1929 = vsel %vm697, %v1928, 0.0
        %1930 = vadd.xlane.f32.xlu0 %v1929
        %v1931 = vpop.xlane.xlu0 %1930
        %v1932 = vrcp.pop %v1931
        %v1933 = vmul.f32 %v1928, %v1932
        %v1934 = vmul.f32 %v1933, %v687
        %v1935 = vsel %vm697, %v1934, 0.0
        %1936 = vadd.xlane.f32.xlu0 %v1935
        %v1937 = vpop.xlane.xlu0 %1936
        %v1938 = vmul.f32 %v1937, %v887
        %1939 = vrot.lane.b32.xlu0 %v680, 40
        %v1940 = vpop.permute.xlu0 %1939
        %v1943 = vsel %vm697, %v1933, 0
        %1945 = vmatprep.subr.mxu0 0.0
        %1946 = vmatpush1.msra.mxu0 %v1940
        %1947 = vmatprep.subr.mxu0 0.0
        %1948 = vmatpush1.msra.mxu0 0.0
        %1949 = vmatprep.subr.mxu0 0.0
        %1950 = vmatpush1.msra.mxu0 0.0
        %1951 = vmatprep.subr.mxu0 0.0
        %1952 = vmatpush1.msra.mxu0 0.0
        %1953 = vmatprep.subr.mxu0 0.0
        %1954 = vmatpush1.msra.mxu0 0.0
        %1955 = vmatprep.subr.mxu0 0.0
        %1956 = vmatpush1.msra.mxu0 0.0
        %1957 = vmatprep.subr.mxu0 0.0
        %1958 = vmatpush1.msra.mxu0 0.0
        %1959 = vmatprep.subr.mxu0 0.0
        %1960 = vmatpush1.msra.mxu0 0.0
        %1961 = vmatprep.subr.mxu0 0.0
        %1962 = vmatpush1.msra.mxu0 0.0
        %1963 = vmatprep.subr.mxu0 0.0
        %1964 = vmatpush1.msra.mxu0 0.0
        %1965 = vmatprep.subr.mxu0 0.0
        %1966 = vmatpush1.msra.mxu0 0.0
        %1967 = vmatprep.subr.mxu0 0.0
        %1968 = vmatpush1.msra.mxu0 0.0
        %1969 = vmatprep.subr.mxu0 0.0
        %1970 = vmatpush1.msra.mxu0 0.0
        %1971 = vmatprep.subr.mxu0 0.0
        %1972 = vmatpush1.msra.mxu0 0.0
        %1973 = vmatprep.subr.mxu0 0.0
        %1974 = vmatpush1.msra.mxu0 0.0
        %1975 = vmatprep.subr.mxu0 0.0
        %1976 = vmatpush1.msra.mxu0 0.0
        %1977 = vmatprep.subr.mxu0 0.0
        %1978 = vmatpush1.msra.mxu0 0.0
        %1979 = vmatprep.subr.mxu0 0.0
        %1980 = vmatpush1.msra.mxu0 0.0
        %1981 = vmatprep.subr.mxu0 0.0
        %1982 = vmatpush1.msra.mxu0 0.0
        %1983 = vmatprep.subr.mxu0 0.0
        %1984 = vmatpush1.msra.mxu0 0.0
        %1985 = vmatprep.subr.mxu0 0.0
        %1986 = vmatpush1.msra.mxu0 0.0
        %1987 = vmatprep.subr.mxu0 0.0
        %1988 = vmatpush1.msra.mxu0 0.0
        %1989 = vmatprep.subr.mxu0 0.0
        %1990 = vmatpush1.msra.mxu0 0.0
        %1991 = vmatprep.subr.mxu0 0.0
        %1992 = vmatpush1.msra.mxu0 0.0
        %1993 = vmatprep.subr.mxu0 0.0
        %1994 = vmatpush1.msra.mxu0 0.0
        %1995 = vmatprep.subr.mxu0 0.0
        %1996 = vmatpush1.msra.mxu0 0.0
        %1997 = vmatprep.subr.mxu0 0.0
        %1998 = vmatpush1.msra.mxu0 0.0
        %1999 = vmatprep.subr.mxu0 0.0
        %2000 = vmatpush1.msra.mxu0 0.0
        %2001 = vmatprep.subr.mxu0 0.0
        %2002 = vmatpush1.msra.mxu0 0.0
        %2003 = vmatprep.subr.mxu0 0.0
        %2004 = vmatpush1.msra.mxu0 0.0
        %2005 = vmatprep.subr.mxu0 0.0
        %2006 = vmatpush1.msra.mxu0 0.0
        %2007 = vmatprep.subr.mxu0 0.0
        %2008 = vmatpush1.msra.mxu0 0.0
        %2009 = vmatprep.mubr.f32.mxu0 0.0
        %2010 = vmatmul.mubr.f32.gmra.mrb[0].mxu0 %v1943
        %v2011 = vpop.f32.mrb[0].mxu0
        %v2012 = vadd.f32 %v1938, %v2011
        %v2013 = vpop.f32.mrb[0].mxu0
        %2014 = vdwg.mxu0
        %v2015 = vmul.f32 %v1933, %v690
        %v2016 = vsel %vm697, %v2015, 0.0
        %2017 = vadd.xlane.f32.xlu0 %v2016
        %v2018 = vpop.xlane.xlu0 %2017
        %v2019 = vmul.f32 %v2018, %v972
        %v2020 = vadd.f32 %v2012, %v2019
        %v2021 = vmul.f32 %v1933, %v693
        %v2022 = vsel %vm697, %v2021, 0.0
        %2023 = vadd.xlane.f32.xlu0 %v2022
        %v2024 = vpop.xlane.xlu0 %2023
        %v2025 = vmul.f32 %v2024, %v982
        %v2026 = vadd.f32 %v2020, %v2025
        %v2027 = vld [vmem:[%s7 + $0x18] sm:$0xff]
        %v2029 = vsel %vm697, %v2026, 0
        %2031 = vmatprep.subr.mxu0 0.0
        %2032 = vmatpush1.msra.mxu0 %v2027
        %2033 = vmatprep.subr.mxu0 0.0
        %2034 = vmatpush1.msra.mxu0 0.0
        %2035 = vmatprep.subr.mxu0 0.0
        %2036 = vmatpush1.msra.mxu0 0.0
        %2037 = vmatprep.subr.mxu0 0.0
        %2038 = vmatpush1.msra.mxu0 0.0
        %2039 = vmatprep.subr.mxu0 0.0
        %2040 = vmatpush1.msra.mxu0 0.0
        %2041 = vmatprep.subr.mxu0 0.0
        %2042 = vmatpush1.msra.mxu0 0.0
        %2043 = vmatprep.subr.mxu0 0.0
        %2044 = vmatpush1.msra.mxu0 0.0
        %2045 = vmatprep.subr.mxu0 0.0
        %2046 = vmatpush1.msra.mxu0 0.0
        %2047 = vmatprep.subr.mxu0 0.0
        %2048 = vmatpush1.msra.mxu0 0.0
        %2049 = vmatprep.subr.mxu0 0.0
        %2050 = vmatpush1.msra.mxu0 0.0
        %2051 = vmatprep.subr.mxu0 0.0
        %2052 = vmatpush1.msra.mxu0 0.0
        %2053 = vmatprep.subr.mxu0 0.0
        %2054 = vmatpush1.msra.mxu0 0.0
        %2055 = vmatprep.subr.mxu0 0.0
        %2056 = vmatpush1.msra.mxu0 0.0
        %2057 = vmatprep.subr.mxu0 0.0
        %2058 = vmatpush1.msra.mxu0 0.0
        %2059 = vmatprep.subr.mxu0 0.0
        %2060 = vmatpush1.msra.mxu0 0.0
        %2061 = vmatprep.subr.mxu0 0.0
        %2062 = vmatpush1.msra.mxu0 0.0
        %2063 = vmatprep.subr.mxu0 0.0
        %2064 = vmatpush1.msra.mxu0 0.0
        %2065 = vmatprep.subr.mxu0 0.0
        %2066 = vmatpush1.msra.mxu0 0.0
        %2067 = vmatprep.subr.mxu0 0.0
        %2068 = vmatpush1.msra.mxu0 0.0
        %2069 = vmatprep.subr.mxu0 0.0
        %2070 = vmatpush1.msra.mxu0 0.0
        %2071 = vmatprep.subr.mxu0 0.0
        %2072 = vmatpush1.msra.mxu0 0.0
        %2073 = vmatprep.subr.mxu0 0.0
        %2074 = vmatpush1.msra.mxu0 0.0
        %2075 = vmatprep.subr.mxu0 0.0
        %2076 = vmatpush1.msra.mxu0 0.0
        %2077 = vmatprep.subr.mxu0 0.0
        %2078 = vmatpush1.msra.mxu0 0.0
        %2079 = vmatprep.subr.mxu0 0.0
        %2080 = vmatpush1.msra.mxu0 0.0
        %2081 = vmatprep.subr.mxu0 0.0
        %2082 = vmatpush1.msra.mxu0 0.0
        %2083 = vmatprep.subr.mxu0 0.0
        %2084 = vmatpush1.msra.mxu0 0.0
        %2085 = vmatprep.subr.mxu0 0.0
        %2086 = vmatpush1.msra.mxu0 0.0
        %2087 = vmatprep.subr.mxu0 0.0
        %2088 = vmatpush1.msra.mxu0 0.0
        %2089 = vmatprep.subr.mxu0 0.0
        %2090 = vmatpush1.msra.mxu0 0.0
        %2091 = vmatprep.subr.mxu0 0.0
        %2092 = vmatpush1.msra.mxu0 0.0
        %2093 = vmatprep.subr.mxu0 0.0
        %2094 = vmatpush1.msra.mxu0 0.0
        %2095 = vmatprep.mubr.f32.mxu0 0.0
        %2096 = vmatmul.mubr.f32.gmra.mrb[0].mxu0 %v2029
        %v2097 = vpop.f32.mrb[0].mxu0
        %v2098 = vadd.f32 0.0, %v2097
        %v2099 = vpop.f32.mrb[0].mxu0
        %2100 = vdwg.mxu0
        %v2101 = vadd.f32 %v1753, %v2098
        %v2102 = vld [vmem:[%s8] sm:$0x1]
        %v2104 = vlaneseq
        %v2105 = vshrl.u32 %v2104, 7
        %v2106 = vsub.s32 0, %v2105
        %v2107 = vrot.slane %v2102, %v2106
        %v2109 = vadd.f32 %v2101, %v2107
        %v2110 = vadd.f32 %v2109, %v595
        %v2111 = vld [vmem:[%s9] sm:$0x1]
        %v2112 = vld [vmem:[%s10] sm:$0x1]
        %v2113 = vsel %vm609, %v2110, 0.0
        %2114 = vadd.xlane.f32.xlu0 %v2113
        %v2115 = vpop.xlane.xlu0 %2114
        %v2116 = vrcp.pop 32.0
        %v2117 = vmul.f32 %v2115, %v2116
        %v2118 = vsub.f32 %v2110, %v2117
        %v2119 = vmul.f32 %v2118, %v2118
        %v2120 = vsel %vm609, %v2119, 0.0
        %2121 = vadd.xlane.f32.xlu0 %v2120
        %v2122 = vpop.xlane.xlu0 %2121
        %v2123 = vmul.f32 %v2122, %v2116
        %v2124 = vadd.f32 %v2123, 1e-12
        %v2125 = vrsqrt.pop %v2124
        %v2126 = vmul.f32 %v2118, %v2125
        %v2128 = vlaneseq
        %v2129 = vshrl.u32 %v2128, 7
        %v2130 = vsub.s32 0, %v2129
        %v2131 = vrot.slane %v2111, %v2130
        %v2133 = vmul.f32 %v2126, %v2131
        %v2135 = vlaneseq
        %v2136 = vshrl.u32 %v2135, 7
        %v2137 = vsub.s32 0, %v2136
        %v2138 = vrot.slane %v2112, %v2137
        %v2140 = vadd.f32 %v2133, %v2138
        %v2141 = vld [vmem:[%s11] sm:$0xff]
        %v2142 = vld [vmem:[%s11 + $0x8] sm:$0xff]
        %v2143 = vld [vmem:[%s11 + $0x10] sm:$0xff]
        %v2144 = vld [vmem:[%s11 + $0x18] sm:$0xff]
        %v2145 = vld [vmem:[%s12] sm:$0x1]
        %v2147 = vlaneseq
        %v2148 = vshrl.u32 %v2147, 7
        %v2149 = vsub.s32 0, %v2148
        %v2150 = vrot.slane %v2145, %v2149
        %v2153 = vsel %vm609, %v2140, 0
        %2155 = vmatprep.subr.mxu0 0.0
        %2156 = vmatpush1.msra.mxu0 %v2141
        %2157 = vmatprep.subr.mxu0 0.0
        %2158 = vmatpush1.msra.mxu0 %v2142
        %2159 = vmatprep.subr.mxu0 0.0
        %2160 = vmatpush1.msra.mxu0 %v2143
        %2161 = vmatprep.subr.mxu0 0.0
        %2162 = vmatpush1.msra.mxu0 %v2144
        %2163 = vmatprep.subr.mxu0 0.0
        %2164 = vmatpush1.msra.mxu0 0.0
        %2165 = vmatprep.subr.mxu0 0.0
        %2166 = vmatpush1.msra.mxu0 0.0
        %2167 = vmatprep.subr.mxu0 0.0
        %2168 = vmatpush1.msra.mxu0 0.0
        %2169 = vmatprep.subr.mxu0 0.0
        %2170 = vmatpush1.msra.mxu0 0.0
        %2171 = vmatprep.subr.mxu0 0.0
        %2172 = vmatpush1.msra.mxu0 0.0
        %2173 = vmatprep.subr.mxu0 0.0
        %2174 = vmatpush1.msra.mxu0 0.0
        %2175 = vmatprep.subr.mxu0 0.0
        %2176 = vmatpush1.msra.mxu0 0.0
        %2177 = vmatprep.subr.mxu0 0.0
        %2178 = vmatpush1.msra.mxu0 0.0
        %2179 = vmatprep.subr.mxu0 0.0
        %2180 = vmatpush1.msra.mxu0 0.0
        %2181 = vmatprep.subr.mxu0 0.0
        %2182 = vmatpush1.msra.mxu0 0.0
        %2183 = vmatprep.subr.mxu0 0.0
        %2184 = vmatpush1.msra.mxu0 0.0
        %2185 = vmatprep.subr.mxu0 0.0
        %2186 = vmatpush1.msra.mxu0 0.0
        %2187 = vmatprep.subr.mxu0 0.0
        %2188 = vmatpush1.msra.mxu0 0.0
        %2189 = vmatprep.subr.mxu0 0.0
        %2190 = vmatpush1.msra.mxu0 0.0
        %2191 = vmatprep.subr.mxu0 0.0
        %2192 = vmatpush1.msra.mxu0 0.0
        %2193 = vmatprep.subr.mxu0 0.0
        %2194 = vmatpush1.msra.mxu0 0.0
        %2195 = vmatprep.subr.mxu0 0.0
        %2196 = vmatpush1.msra.mxu0 0.0
        %2197 = vmatprep.subr.mxu0 0.0
        %2198 = vmatpush1.msra.mxu0 0.0
        %2199 = vmatprep.subr.mxu0 0.0
        %2200 = vmatpush1.msra.mxu0 0.0
        %2201 = vmatprep.subr.mxu0 0.0
        %2202 = vmatpush1.msra.mxu0 0.0
        %2203 = vmatprep.subr.mxu0 0.0
        %2204 = vmatpush1.msra.mxu0 0.0
        %2205 = vmatprep.subr.mxu0 0.0
        %2206 = vmatpush1.msra.mxu0 0.0
        %2207 = vmatprep.subr.mxu0 0.0
        %2208 = vmatpush1.msra.mxu0 0.0
        %2209 = vmatprep.subr.mxu0 0.0
        %2210 = vmatpush1.msra.mxu0 0.0
        %2211 = vmatprep.subr.mxu0 0.0
        %2212 = vmatpush1.msra.mxu0 0.0
        %2213 = vmatprep.subr.mxu0 0.0
        %2214 = vmatpush1.msra.mxu0 0.0
        %2215 = vmatprep.subr.mxu0 0.0
        %2216 = vmatpush1.msra.mxu0 0.0
        %2217 = vmatprep.subr.mxu0 0.0
        %2218 = vmatpush1.msra.mxu0 0.0
        %2219 = vmatprep.mubr.f32.mxu0 0.0
        %2220 = vmatmul.mubr.f32.gmra.mrb[0].mxu0 %v2153
        %v2221 = vpop.f32.mrb[0].mxu0
        %v2222 = vadd.f32 %v2150, %v2221
        %v2223 = vpop.f32.mrb[0].mxu0
        %2224 = vdwg.mxu0
        %v2225 = vmul.f32 %v2222, 0.5
        %v2226 = vmul.f32 %v2222, 0.044715
        %v2227 = vmul.f32 %v2226, %v2222
        %v2228 = vmul.f32 %v2227, %v2222
        %v2229 = vadd.f32 %v2222, %v2228
        %v2230 = vmul.f32 %v2229, 0.7978846
        %v2231 = vtanh.pop %v2230
        %v2232 = vadd.f32 %v2231, 1.0
        %v2233 = vmul.f32 %v2225, %v2232
        %v2234 = vld [vmem:[%s13] sm:$0xff]
        %v2235 = vld [vmem:[%s13 + $0x8] sm:$0xff]
        %v2236 = vld [vmem:[%s13 + $0x10] sm:$0xff]
        %v2237 = vld [vmem:[%s13 + $0x18] sm:$0xff]
        %v2238 = vld [vmem:[%s13 + $0x20] sm:$0xff]
        %v2239 = vld [vmem:[%s13 + $0x28] sm:$0xff]
        %v2240 = vld [vmem:[%s13 + $0x30] sm:$0xff]
        %v2241 = vld [vmem:[%s13 + $0x38] sm:$0xff]
        %v2242 = vld [vmem:[%s14] sm:$0x1]
        %v2244 = vlaneseq
        %v2245 = vshrl.u32 %v2244, 7
        %v2246 = vsub.s32 0, %v2245
        %v2247 = vrot.slane %v2242, %v2246
        %vm2249 = vcmask 523264
        %v2251 = vsel %vm2249, %v2233, 0
        %2253 = vmatprep.subr.mxu0 0.0
        %2254 = vmatpush1.msra.mxu0 %v2234
        %2255 = vmatprep.subr.mxu0 0.0
        %2256 = vmatpush1.msra.mxu0 %v2235
        %2257 = vmatprep.subr.mxu0 0.0
        %2258 = vmatpush1.msra.mxu0 %v2236
        %2259 = vmatprep.subr.mxu0 0.0
        %2260 = vmatpush1.msra.mxu0 %v2237
        %2261 = vmatprep.subr.mxu0 0.0
        %2262 = vmatpush1.msra.mxu0 %v2238
        %2263 = vmatprep.subr.mxu0 0.0
        %2264 = vmatpush1.msra.mxu0 %v2239
        %2265 = vmatprep.subr.mxu0 0.0
        %2266 = vmatpush1.msra.mxu0 %v2240
        %2267 = vmatprep.subr.mxu0 0.0
        %2268 = vmatpush1.msra.mxu0 %v2241
        %2269 = vmatprep.subr.mxu0 0.0
        %2270 = vmatpush1.msra.mxu0 0.0
        %2271 = vmatprep.subr.mxu0 0.0
        %2272 = vmatpush1.msra.mxu0 0.0
        %2273 = vmatprep.subr.mxu0 0.0
        %2274 = vmatpush1.msra.mxu0 0.0
        %2275 = vmatprep.subr.mxu0 0.0
        %2276 = vmatpush1.msra.mxu0 0.0
        %2277 = vmatprep.subr.mxu0 0.0
        %2278 = vmatpush1.msra.mxu0 0.0
        %2279 = vmatprep.subr.mxu0 0.0
        %2280 = vmatpush1.msra.mxu0 0.0
        %2281 = vmatprep.subr.mxu0 0.0
        %2282 = vmatpush1.msra.mxu0 0.0
        %2283 = vmatprep.subr.mxu0 0.0
        %2284 = vmatpush1.msra.mxu0 0.0
        %2285 = vmatprep.subr.mxu0 0.0
        %2286 = vmatpush1.msra.mxu0 0.0
        %2287 = vmatprep.subr.mxu0 0.0
        %2288 = vmatpush1.msra.mxu0 0.0
        %2289 = vmatprep.subr.mxu0 0.0
        %2290 = vmatpush1.msra.mxu0 0.0
        %2291 = vmatprep.subr.mxu0 0.0
        %2292 = vmatpush1.msra.mxu0 0.0
        %2293 = vmatprep.subr.mxu0 0.0
        %2294 = vmatpush1.msra.mxu0 0.0
        %2295 = vmatprep.subr.mxu0 0.0
        %2296 = vmatpush1.msra.mxu0 0.0
        %2297 = vmatprep.subr.mxu0 0.0
        %2298 = vmatpush1.msra.mxu0 0.0
        %2299 = vmatprep.subr.mxu0 0.0
        %2300 = vmatpush1.msra.mxu0 0.0
        %2301 = vmatprep.subr.mxu0 0.0
        %2302 = vmatpush1.msra.mxu0 0.0
        %2303 = vmatprep.subr.mxu0 0.0
        %2304 = vmatpush1.msra.mxu0 0.0
        %2305 = vmatprep.subr.mxu0 0.0
        %2306 = vmatpush1.msra.mxu0 0.0
        %2307 = vmatprep.subr.mxu0 0.0
        %2308 = vmatpush1.msra.mxu0 0.0
        %2309 = vmatprep.subr.mxu0 0.0
        %2310 = vmatpush1.msra.mxu0 0.0
        %2311 = vmatprep.subr.mxu0 0.0
        %2312 = vmatpush1.msra.mxu0 0.0
        %2313 = vmatprep.subr.mxu0 0.0
        %2314 = vmatpush1.msra.mxu0 0.0
        %2315 = vmatprep.subr.mxu0 0.0
        %2316 = vmatpush1.msra.mxu0 0.0
        %2317 = vmatprep.mubr.f32.mxu0 0.0
        %2318 = vmatmul.mubr.f32.gmra.mrb[0].mxu0 %v2251
        %v2319 = vpop.f32.mrb[0].mxu0
        %v2320 = vadd.f32 %v2247, %v2319
        %v2321 = vpop.f32.mrb[0].mxu0
        %2322 = vdwg.mxu0
        %v2323 = vadd.f32 %v2320, %v2140
        %v2324 = vld [vmem:[%s15] sm:$0x1]
        %v2325 = vld [vmem:[%s16] sm:$0x1]
        %v2326 = vsel %vm609, %v2323, 0.0
        %2327 = vadd.xlane.f32.xlu0 %v2326
        %v2328 = vpop.xlane.xlu0 %2327
        %v2329 = vmul.f32 %v2328, %v2116
        %v2330 = vsub.f32 %v2323, %v2329
        %v2331 = vmul.f32 %v2330, %v2330
        %v2332 = vsel %vm609, %v2331, 0.0
        %2333 = vadd.xlane.f32.xlu0 %v2332
        %v2334 = vpop.xlane.xlu0 %2333
        %v2335 = vmul.f32 %v2334, %v2116
        %v2336 = vadd.f32 %v2335, 1e-12
        %v2337 = vrsqrt.pop %v2336
        %v2338 = vmul.f32 %v2330, %v2337
        %v2340 = vlaneseq
        %v2341 = vshrl.u32 %v2340, 7
        %v2342 = vsub.s32 0, %v2341
        %v2343 = vrot.slane %v2324, %v2342
        %v2345 = vmul.f32 %v2338, %v2343
        %v2347 = vlaneseq
        %v2348 = vshrl.u32 %v2347, 7
        %v2349 = vsub.s32 0, %v2348
        %v2350 = vrot.slane %v2325, %v2349
        %v2352 = vadd.f32 %v2345, %v2350
        %2353 = vst.msk [vmem:[%s587] sm:$0xff] %vm609, %v2352
        %s2354 = sand.u32 %s414, 1
        %s2355 = scalar_lea.sflag [#allocation4], %s2354
        %s2356 = sand.u32 %s414, 1
        %s2357 = smul.addr %s2356, 8
        %s2358 = scalar_lea.vmem [#allocation5], %s2357
        // Predicated region
        $region93: #{tpu_custom_call.1} parent=87 // pred_check
          %p2359 = pneg %p424
        $region94: #{tpu_custom_call.1} parent=87 // pred_check_branch
          %2361 = sbr.rel (%p2359) target = $region96
        $region95: #{tpu_custom_call.1} parent=87 // pred_region
          %s2363 = ssub.s32 128, 128
          %2364 = vsyncadd %s2355, %s2363
          %s2365 = smul.addr %s34, 128
          %s2366 = scalar_lea.hbm %s17, %s2365
          %s2368 = sshll.u32 %s2358, 4
          %s2369 = int_to_ptr.vmem [resolvable:$true] %s2368
          %2371 = dma.vmem_to_hbm [thread:$0]  %s2369, 128, %s2366, %s2355
        $region96: #{tpu_custom_call.1} parent=87 // pred_fallthru
          _
      $region88: #{tpu_custom_call.1} parent=5 // pred_fallthru
        _
      %p2372 = scmp.le.s32.totalorder 2, %s29
      // Predicated region
      $region97: #{tpu_custom_call.1} parent=5 // pred_check
        %p2373 = pneg %p2372
      $region98: #{tpu_custom_call.1} parent=5 // pred_check_branch
        %2375 = sbr.rel (%p2373) target = $region100
      $region99: #{tpu_custom_call.1} parent=5 // pred_region
        %s2376 = ssub.s32 %s29, 2
        // Predicated region
        $region101: #{tpu_custom_call.1} parent=99 // pred_check
          %p2377 = pneg %p430
        $region102: #{tpu_custom_call.1} parent=99 // pred_check_branch
          %2379 = sbr.rel (%p2377) target = $region104
        $region103: #{tpu_custom_call.1} parent=99 // pred_region
          %s2380 = sand.u32 %s415, 1
          %s2381 = scalar_lea.sflag [#allocation4], %s2380
          %s2382 = sand.u32 %s415, 1
          %s2383 = smul.addr %s2382, 8
          %s2384 = scalar_lea.vmem [#allocation5], %s2383
          %2385 = dma.done %s2381, 128
        $region104: #{tpu_custom_call.1} parent=99 // pred_fallthru
          _
      $region100: #{tpu_custom_call.1} parent=5 // pred_fallthru
        _
    $region6: #{tpu_custom_call.1} parent=1 // loop_footer
      %s33 = sadd.s32 1, %s29
    $region7: #{tpu_custom_call.1} parent=1 // loop_footer_branch
      %28 = sbr.rel target = $region3
    $region8: #{tpu_custom_call.1} parent=1 // loop_exit
      _
    %2386 = vsyncpa [#allocation3], 1
    %s2387 = scalar_lea.sflag [#allocation3], 1
    %2388 = vsyncpa %s2387, 1
    %2389 = vsyncpa [#allocation4], 1
    %s2390 = scalar_lea.sflag [#allocation4], 1
    %2391 = vsyncpa %s2390, 1

</llo_original>
